<compile_context>
chip_gen: v5e
topology: v5e:2x2
jax: 0.10.0
libtpu: 0.0.40
codegen_flags: <defaults>
</compile_context>

<pallas_src>
import numpy as np

import jax
import jax.numpy as jnp
from jax.experimental import pallas as pl
from jax.experimental.pallas import tpu as pltpu


def _cp(c):
    """Channel count padded up to a multiple of 8 (sublane granularity)."""
    return max(8, ((c + 7) // 8) * 8)


def _taps_for(h, w):
    """3x3 taps that can ever be non-zero for an h x w image (padding=1)."""
    return [(dy, dx) for dy in (-1, 0, 1) for dx in (-1, 0, 1)
            if (h > 1 or dy == 0) and (w > 1 or dx == 0)]


# ----------------------------------------------------------------------------
# Deterministic parameter initialization (shapes follow the PyTorch module).
# ----------------------------------------------------------------------------
def init_params(key, in_channels=2, out_channels=1):
    keys = iter(jax.random.split(key, 64))

    def conv_p(cin, cout, k):
        w = 0.1 * jax.random.normal(next(keys), (k, k, cin, cout), jnp.float32)
        b = 0.1 * jax.random.normal(next(keys), (cout,), jnp.float32)
        return w, b

    def bn_p(c):  # PyTorch BatchNorm2d defaults, eval mode
        return dict(gamma=jnp.ones((c,), jnp.float32),
                    beta=jnp.zeros((c,), jnp.float32),
                    mean=jnp.zeros((c,), jnp.float32),
                    var=jnp.ones((c,), jnp.float32))

    ic = in_channels
    return {
        "layer1":   dict(conv=conv_p(ic, ic, 3), bn=bn_p(ic)),
        "layer2":   dict(conv=conv_p(ic, 4, 3)),
        "layer3":   dict(conv=conv_p(4, 8, 3),   bn=bn_p(8)),
        "layer4":   dict(conv=conv_p(8, 16, 3),  bn=bn_p(16)),
        "layer5":   dict(conv=conv_p(16, 16, 3), bn=bn_p(16)),
        "upconv5":  conv_p(16, 16, 2),
        "upconv4":  conv_p(16, 8, 2),
        "upconv3":  conv_p(8, 4, 2),
        "upconv2":  conv_p(4, 2, 2),
        "uplayer4": dict(conv=conv_p(32, 16, 3), bn=bn_p(16)),
        "uplayer3": dict(conv=conv_p(16, 8, 3),  bn=bn_p(8)),
        "uplayer2": dict(conv=conv_p(8, 4, 3),   bn=bn_p(4)),
        "uplayer1": dict(conv=conv_p(ic + 2, ic, 3), bn=bn_p(ic)),
        "final_out": conv_p(ic, out_channels, 1),
    }


# ----------------------------------------------------------------------------
# Parameter packing: many tiny blocks -> one bf16 slab + one f32 bias column.
# ----------------------------------------------------------------------------
class _Packer:
    """Packs 2-D parameter blocks into one (rows, width) buffer.  Row offsets
    are 8-aligned so all in-kernel slices are sublane aligned."""

    def __init__(self):
        self._blocks = []
        self.rows = 0
        self.width = 0

    def add(self, arr):
        arr = jnp.asarray(arr, jnp.float32)
        r, c = arr.shape
        rp = ((r + 7) // 8) * 8
        off = self.rows
        self._blocks.append((arr, rp))
        self.rows += rp
        self.width = max(self.width, c)
        return off

    def finalize(self, dtype):
        padded = [jnp.pad(a, ((0, rp - a.shape[0]), (0, self.width - a.shape[1])))
                  for a, rp in self._blocks]
        return jnp.concatenate(padded, axis=0).astype(dtype)


# ----------------------------------------------------------------------------
# Build packed buffers + a static plan that the fused kernel walks.
# All shapes / offsets in the plan are Python ints.
# ----------------------------------------------------------------------------
def build_program(params, in_channels, H, W, eps=1e-5):
    wp = _Packer()   # bf16: conv/upconv weights + pool / pixel-shuffle constants
    bp = _Packer()   # f32 : per-channel bias columns (BN folded in)
    plan = []
    skip_shapes = []

    def add_conv(name, use_bn, srcs, hw, dst, skip_store=None):
        h, w = hw
        taps = _taps_for(h, w)
        wt, bc = params[name]["conv"]              # (3,3,cin_tot,cout), (cout,)
        cout = wt.shape[-1]
        coutp = _cp(cout)
        if use_bn:
            bn = params[name]["bn"]
            s = bn["gamma"] * jax.lax.rsqrt(bn["var"] + eps)
            t = bn["beta"] + (bc - bn["mean"]) * s
        else:
            s = jnp.ones_like(bc)
            t = bc
        K = sum(len(taps) * cinp for (_, _, _, cinp) in srcs)
        w2 = jnp.zeros((coutp, K), jnp.float32)    # BN scale folded into weight
        base, goff = 0, 0
        for (_, _, cin, cinp) in srcs:             # cat([up, skip]) channel order
            for ti, (dy, dx) in enumerate(taps):
                blk = (wt[dy + 1, dx + 1, goff:goff + cin, :] * s[None, :]).T
                w2 = w2.at[:cout, base + ti * cinp: base + ti * cinp + cin].set(blk)
            base += len(taps) * cinp
            goff += cin
        b_col = jnp.zeros((coutp, 1), jnp.float32).at[:cout, 0].set(t)
        plan.append(dict(kind="conv3", H=h, W=w, taps=taps, srcs=srcs, K=K,
                         coutp=coutp, w_off=wp.add(w2), b_off=bp.add(b_col),
                         skip_store=skip_store, dst=dst))
        return coutp

    def add_pool(src, dst, hi, wi):
        ho, wo = hi // 2, wi // 2
        m = np.zeros((hi * wi, ho * wo), np.float32)
        for i in range(ho):
            for j in range(wo):
                for a in range(2):
                    for b in range(2):
                        m[(2 * i + a) * wi + 2 * j + b, i * wo + j] = 0.25
        plan.append(dict(kind="pool", src=src, dst=dst, w_off=wp.add(m),
                         HWi=hi * wi, HWo=ho * wo))

    def add_upconv(name, src, dst, hi, wi, cinp):
        wt, bc = params[name]                      # (2,2,cin,cout), (cout,)
        cin, cout = wt.shape[2], wt.shape[3]
        coutp = _cp(cout)
        wall = jnp.zeros((4 * coutp, cinp), jnp.float32)
        for a in range(2):
            for b in range(2):
                ph = a * 2 + b
                wall = wall.at[ph * coutp: ph * coutp + cout, :cin].set(wt[a, b].T)
        ho, wo = 2 * hi, 2 * wi
        s_offs = []
        for a in range(2):                         # 0/1 pixel-shuffle scatter
            for b in range(2):
                sc = np.zeros((hi * wi, ho * wo), np.float32)
                for i in range(hi):
                    for j in range(wi):
                        sc[i * wi + j, (2 * i + a) * wo + (2 * j + b)] = 1.0
                s_offs.append(wp.add(sc))
        b_col = jnp.zeros((coutp, 1), jnp.float32).at[:cout, 0].set(bc)
        plan.append(dict(kind="upconv", src=src, dst=dst, w_off=wp.add(wall),
                         s_offs=s_offs, b_off=bp.add(b_col), cinp=cinp,
                         coutp=coutp, HWi=hi * wi, HWo=ho * wo))
        return coutp

    ic = in_channels
    icp = _cp(ic)
    dims = [(H, W), (H // 2, W // 2), (H // 4, W // 4),
            (H // 8, W // 8), (H // 16, W // 16)]

    # ------------------------------- encoder -------------------------------
    c1 = add_conv("layer1", True,  [("env", "x0", ic, icp)], dims[0], "x1", 0)
    skip_shapes.append((c1, dims[0][0] * dims[0][1]))
    add_pool("x1", "p1", *dims[0])
    c2 = add_conv("layer2", False, [("env", "p1", ic, c1)], dims[1], "x2", 1)
    skip_shapes.append((c2, dims[1][0] * dims[1][1]))
    add_pool("x2", "p2", *dims[1])
    c3 = add_conv("layer3", True,  [("env", "p2", 4, c2)], dims[2], "x3", 2)
    skip_shapes.append((c3, dims[2][0] * dims[2][1]))
    add_pool("x3", "p3", *dims[2])
    c4 = add_conv("layer4", True,  [("env", "p3", 8, c3)], dims[3], "x4", 3)
    skip_shapes.append((c4, dims[3][0] * dims[3][1]))
    add_pool("x4", "p4", *dims[3])
    c5 = add_conv("layer5", True,  [("env", "p4", 16, c4)], dims[4], "x5")

    # ------------------------------- decoder -------------------------------
    u5 = add_upconv("upconv5", "x5", "u5", *dims[4], cinp=c5)
    d4 = add_conv("uplayer4", True,
                  [("env", "u5", 16, u5), ("skip", 3, 16, c4)], dims[3], "d4")
    u4 = add_upconv("upconv4", "d4", "u4", *dims[3], cinp=d4)
    d3 = add_conv("uplayer3", True,
                  [("env", "u4", 8, u4), ("skip", 2, 8, c3)], dims[2], "d3")
    u3 = add_upconv("upconv3", "d3", "u3", *dims[2], cinp=d3)
    d2 = add_conv("uplayer2", True,
                  [("env", "u3", 4, u3), ("skip", 1, 4, c2)], dims[1], "d2")
    u2 = add_upconv("upconv2", "d2", "u2", *dims[1], cinp=d2)
    d1 = add_conv("uplayer1", True,
                  [("env", "u2", 2, u2), ("skip", 0, ic, c1)], dims[0], "d1")

    # final 1x1 conv (no BN, no ReLU)
    wf, bf = params["final_out"]                   # (1,1,cin,cout), (cout,)
    cin, cout = wf.shape[2], wf.shape[3]
    coutp = _cp(cout)
    w1 = jnp.zeros((coutp, d1), jnp.float32).at[:cout, :cin].set(wf[0, 0].T)
    b1 = jnp.zeros((coutp, 1), jnp.float32).at[:cout, 0].set(bf)
    plan.append(dict(kind="conv1x1", src="d1", dst="out", cinp=d1, coutp=coutp,
                     w_off=wp.add(w1), b_off=bp.add(b1)))

    return (wp.finalize(jnp.bfloat16), bp.finalize(jnp.float32),
            plan, skip_shapes, coutp)


# ----------------------------------------------------------------------------
# The fused kernel: walks the static plan; every activation stays in VMEM.
# ----------------------------------------------------------------------------
def _make_kernel(plan):

    def _shift(x, off):
        """y[:, p] = x[:, p + off] with zero fill outside [0, HW)."""
        if off == 0:
            return x
        n = x.shape[1]
        z = jnp.zeros((x.shape[0], abs(off)), x.dtype)
        if off > 0:
            return jnp.concatenate([x[:, off:], z], axis=1)
        return jnp.concatenate([z, x[:, :n + off]], axis=1)

    def kernel(x_ref, w_ref, b_ref, o_ref, *skips):
        env = {"x0": x_ref[0]}                         # (Cp, HW) f32

        for st in plan:
            kind = st["kind"]

            if kind == "conv3":
                h, w = st["H"], st["W"]
                hw = h * w
                if w > 1:                              # hoisted column masks
                    col = jax.lax.broadcasted_iota(jnp.int32, (1, hw), 1) % w
                    mask_m = col >= 1                  # dx == -1
                    mask_p = col < (w - 1)             # dx == +1
                blocks = []
                for (skind, skey, _cin, _cinp) in st["srcs"]:
                    src = env[skey] if skind == "env" else skips[skey][...]
                    xb = src.astype(jnp.bfloat16)      # cast once per source
                    for (dy, dx) in st["taps"]:
                        t = _shift(xb, dy * w + dx)
                        if dx == -1:
                            t = jnp.where(mask_m, t, jnp.zeros_like(t))
                        elif dx == 1:
                            t = jnp.where(mask_p, t, jnp.zeros_like(t))
                        blocks.append(t)
                # stack all taps (and both sources) along the contraction axis
                taps = blocks[0] if len(blocks) == 1 else jnp.concatenate(blocks, axis=0)
                w2 = w_ref[st["w_off"]:st["w_off"] + st["coutp"], 0:st["K"]]
                y = jnp.dot(w2, taps, preferred_element_type=jnp.float32)
                y = y + b_ref[st["b_off"]:st["b_off"] + st["coutp"], 0:1]
                y = jnp.maximum(y, 0.0)                # ReLU
                if st["skip_store"] is not None:
                    skips[st["skip_store"]][...] = y.astype(jnp.bfloat16)
                env[st["dst"]] = y

            elif kind == "pool":                       # AvgPool2d(2) as one dot
                xb = env[st["src"]].astype(jnp.bfloat16)
                m = w_ref[st["w_off"]:st["w_off"] + st["HWi"], 0:st["HWo"]]
                env[st["dst"]] = jnp.dot(xb, m, preferred_element_type=jnp.float32)

            elif kind == "upconv":                     # ConvTranspose2d(2, 2)
                coutp, cinp = st["coutp"], st["cinp"]
                xb = env[st["src"]].astype(jnp.bfloat16)
                wall = w_ref[st["w_off"]:st["w_off"] + 4 * coutp, 0:cinp]
                yall = jnp.dot(wall, xb, preferred_element_type=jnp.float32)
                yall = yall.astype(jnp.bfloat16)       # (4*coutp, HWi)
                acc = None
                for ph in range(4):                    # pixel-shuffle scatter
                    sc = w_ref[st["s_offs"][ph]:st["s_offs"][ph] + st["HWi"],
                               0:st["HWo"]]
                    d = jnp.dot(yall[ph * coutp:(ph + 1) * coutp, :], sc,
                                preferred_element_type=jnp.float32)
                    acc = d if acc is None else acc + d
                env[st["dst"]] = acc + b_ref[st["b_off"]:st["b_off"] + coutp, 0:1]

            else:                                      # final 1x1 conv
                xb = env[st["src"]].astype(jnp.bfloat16)
                w1 = w_ref[st["w_off"]:st["w_off"] + st["coutp"], 0:st["cinp"]]
                y = jnp.dot(w1, xb, preferred_element_type=jnp.float32)
                env[st["dst"]] = y + b_ref[st["b_off"]:st["b_off"] + st["coutp"], 0:1]

        o_ref[0] = env["out"].astype(o_ref.dtype)

    return kernel


# ----------------------------------------------------------------------------
# Public entry point: NCHW in (PyTorch convention), NCHW out.
# ----------------------------------------------------------------------------
def unet_forward(x_nchw, params):
    N, Cin, H, W = x_nchw.shape
    assert H % 16 == 0 and W % 16 == 0, "4 pooling levels need H, W % 16 == 0"
    HW = H * W
    wbuf, bbuf, plan, skip_shapes, out_cp = build_program(params, Cin, H, W)

    icp = _cp(Cin)
    # channels-first, spatial flattened onto lanes: (N, Cp, H*W)
    x = x_nchw.reshape(N, Cin, HW).astype(jnp.float32)
    x = jnp.pad(x, ((0, 0), (0, icp - Cin), (0, 0)))

    out = pl.pallas_call(
        _make_kernel(plan),
        out_shape=jax.ShapeDtypeStruct((N, out_cp, HW), jnp.float32),
        grid=(N,),
        in_specs=[
            pl.BlockSpec((1, icp, HW), lambda n: (n, 0, 0)),    # image n
            pl.BlockSpec(wbuf.shape, lambda n: (0, 0)),         # packed weights
            pl.BlockSpec(bbuf.shape, lambda n: (0, 0)),         # packed biases
        ],
        out_specs=pl.BlockSpec((1, out_cp, HW), lambda n: (n, 0, 0)),
        scratch_shapes=[pltpu.VMEM(s, jnp.bfloat16) for s in skip_shapes],
        compiler_params=pltpu.CompilerParams(
            dimension_semantics=("parallel",)),   # batch split across TensorCores
    )(x, wbuf, bbuf)

    out_ch = params["final_out"][0].shape[-1]
    return out[:, :out_ch, :].reshape(N, out_ch, H, W)


if __name__ == "__main__":
    key = jax.random.PRNGKey(0)
    k_param, k_input = jax.random.split(key)
    params = init_params(k_param, in_channels=2, out_channels=1)

    # NCHW input, matching PyTorch: batch=2, in_channels=2, 16x16 spatial.
    x = jax.random.normal(k_input, (2, 2, 16, 16), jnp.float32)

    fwd = jax.jit(unet_forward)
    y = jax.block_until_ready(fwd(x, params))

    assert y.shape == (2, 1, 16, 16), y.shape
    assert bool(jnp.all(jnp.isfinite(y)))
    print("KERNEL_OK")
</pallas_src>

<mosaic_0001>
module attributes {stable_mosaic.version = 11 : i64} {
  func.func @kernel(%arg0: i32, %arg1: memref<1x8x256xf32, #tpu.memory_space<vmem>>, %arg2: memref<992x288xbf16, #tpu.memory_space<vmem>>, %arg3: memref<144x1xf32, #tpu.memory_space<vmem>>, %arg4: memref<1x8x256xf32, #tpu.memory_space<vmem>>, %arg5: memref<8x256xbf16, #tpu.memory_space<vmem>>, %arg6: memref<8x64xbf16, #tpu.memory_space<vmem>>, %arg7: memref<8x16xbf16, #tpu.memory_space<vmem>>, %arg8: memref<16x4xbf16, #tpu.memory_space<vmem>>) attributes {dimension_semantics = [#tpu.dimension_semantics<parallel>], iteration_bounds = array<i64: 2>, scalar_prefetch = 0 : i64, scratch_operands = 4 : i64, tpu.core_type = #tpu.core_type<tc>, window_params = [{transform_indices = @transform_0, window_bounds = array<i64: 1, 8, 256>}, {pipeline_mode = #tpu.pipeline_mode<synchronous>, transform_indices = @transform_1, window_bounds = array<i64: 992, 288>}, {pipeline_mode = #tpu.pipeline_mode<synchronous>, transform_indices = @transform_2, window_bounds = array<i64: 144, 1>}, {transform_indices = @transform_3, window_bounds = array<i64: 1, 8, 256>}]} {
    %c0 = arith.constant 0 : index
    %c0_0 = arith.constant 0 : index
    %c0_1 = arith.constant 0 : index
    %0 = vector.load %arg1[%c0, %c0_0, %c0_1] : memref<1x8x256xf32, #tpu.memory_space<vmem>>, vector<1x8x256xf32>
    %1 = vector.shape_cast %0 : vector<1x8x256xf32> to vector<8x256xf32>
    %2 = tpu.iota {dimensions = array<i32: 1>} : vector<1x256xi32>
    %c16_i32 = arith.constant 16 : i32
    %c0_i32 = arith.constant 0 : i32
    %3 = arith.cmpi eq, %c16_i32, %c0_i32 : i32
    %c1_i32 = arith.constant 1 : i32
    %4 = arith.select %3, %c1_i32, %c16_i32 : i32
    %5 = vector.broadcast %4 : i32 to vector<1x256xi32>
    %6 = arith.remsi %2, %5 : vector<1x256xi32>
    %c0_i32_2 = arith.constant 0 : i32
    %7 = vector.broadcast %c0_i32_2 : i32 to vector<1x256xi32>
    %8 = arith.cmpi ne, %6, %7 : vector<1x256xi32>
    %c0_i32_3 = arith.constant 0 : i32
    %9 = vector.broadcast %c0_i32_3 : i32 to vector<1x256xi32>
    %10 = arith.cmpi slt, %6, %9 : vector<1x256xi32>
    %c0_i32_4 = arith.constant 0 : i32
    %11 = arith.cmpi slt, %4, %c0_i32_4 : i32
    %12 = vector.broadcast %11 : i1 to vector<1x256xi1>
    %13 = vector.broadcast %12 : vector<1x256xi1> to vector<1x256xi1>
    %14 = arith.xori %10, %13 : vector<1x256xi1>
    %15 = arith.andi %14, %8 : vector<1x256xi1>
    %16 = vector.broadcast %4 : i32 to vector<1x256xi32>
    %17 = arith.addi %6, %16 : vector<1x256xi32>
    %18 = arith.select %15, %17, %6 : vector<1x256xi1>, vector<1x256xi32>
    %c1_i32_5 = arith.constant 1 : i32
    %19 = vector.broadcast %c1_i32_5 : i32 to vector<1x256xi32>
    %20 = arith.cmpi sge, %18, %19 : vector<1x256xi32>
    %c15_i32 = arith.constant 15 : i32
    %21 = vector.broadcast %c15_i32 : i32 to vector<1x256xi32>
    %22 = arith.cmpi slt, %18, %21 : vector<1x256xi32>
    %23 = arith.truncf %1 : vector<8x256xf32> to vector<8x256xbf16>
    %cst = arith.constant 0.000000e+00 : bf16
    %24 = vector.broadcast %cst : bf16 to vector<8x17xbf16>
    %25 = vector.extract_strided_slice %23 {offsets = [0, 0], sizes = [8, 239], strides = [1, 1]} : vector<8x256xbf16> to vector<8x239xbf16>
    %26 = tpu.concatenate %24, %25 in 1 : vector<8x17xbf16>, vector<8x239xbf16> -> vector<8x256xbf16>
    %cst_6 = arith.constant 0.000000e+00 : bf16
    %27 = vector.broadcast %cst_6 : bf16 to vector<8x256xbf16>
    %28 = vector.shape_cast %20 : vector<1x256xi1> to vector<1x256xi1>
    %29 = vector.broadcast %28 : vector<1x256xi1> to vector<8x256xi1>
    %30 = arith.select %29, %26, %27 : vector<8x256xi1>, vector<8x256xbf16>
    %cst_7 = arith.constant 0.000000e+00 : bf16
    %31 = vector.broadcast %cst_7 : bf16 to vector<8x16xbf16>
    %32 = vector.extract_strided_slice %23 {offsets = [0, 0], sizes = [8, 240], strides = [1, 1]} : vector<8x256xbf16> to vector<8x240xbf16>
    %33 = tpu.concatenate %31, %32 in 1 : vector<8x16xbf16>, vector<8x240xbf16> -> vector<8x256xbf16>
    %cst_8 = arith.constant 0.000000e+00 : bf16
    %34 = vector.broadcast %cst_8 : bf16 to vector<8x15xbf16>
    %35 = vector.extract_strided_slice %23 {offsets = [0, 0], sizes = [8, 241], strides = [1, 1]} : vector<8x256xbf16> to vector<8x241xbf16>
    %36 = tpu.concatenate %34, %35 in 1 : vector<8x15xbf16>, vector<8x241xbf16> -> vector<8x256xbf16>
    %cst_9 = arith.constant 0.000000e+00 : bf16
    %37 = vector.broadcast %cst_9 : bf16 to vector<8x256xbf16>
    %38 = vector.shape_cast %22 : vector<1x256xi1> to vector<1x256xi1>
    %39 = vector.broadcast %38 : vector<1x256xi1> to vector<8x256xi1>
    %40 = arith.select %39, %36, %37 : vector<8x256xi1>, vector<8x256xbf16>
    %cst_10 = arith.constant 0.000000e+00 : bf16
    %41 = vector.broadcast %cst_10 : bf16 to vector<8x1xbf16>
    %42 = vector.extract_strided_slice %23 {offsets = [0, 0], sizes = [8, 255], strides = [1, 1]} : vector<8x256xbf16> to vector<8x255xbf16>
    %43 = tpu.concatenate %41, %42 in 1 : vector<8x1xbf16>, vector<8x255xbf16> -> vector<8x256xbf16>
    %cst_11 = arith.constant 0.000000e+00 : bf16
    %44 = vector.broadcast %cst_11 : bf16 to vector<8x256xbf16>
    %45 = vector.shape_cast %20 : vector<1x256xi1> to vector<1x256xi1>
    %46 = vector.broadcast %45 : vector<1x256xi1> to vector<8x256xi1>
    %47 = arith.select %46, %43, %44 : vector<8x256xi1>, vector<8x256xbf16>
    %cst_12 = arith.constant 0.000000e+00 : bf16
    %48 = vector.broadcast %cst_12 : bf16 to vector<8x1xbf16>
    %49 = vector.extract_strided_slice %23 {offsets = [0, 1], sizes = [8, 255], strides = [1, 1]} : vector<8x256xbf16> to vector<8x255xbf16>
    %50 = tpu.concatenate %49, %48 in 1 : vector<8x255xbf16>, vector<8x1xbf16> -> vector<8x256xbf16>
    %cst_13 = arith.constant 0.000000e+00 : bf16
    %51 = vector.broadcast %cst_13 : bf16 to vector<8x256xbf16>
    %52 = vector.shape_cast %22 : vector<1x256xi1> to vector<1x256xi1>
    %53 = vector.broadcast %52 : vector<1x256xi1> to vector<8x256xi1>
    %54 = arith.select %53, %50, %51 : vector<8x256xi1>, vector<8x256xbf16>
    %cst_14 = arith.constant 0.000000e+00 : bf16
    %55 = vector.broadcast %cst_14 : bf16 to vector<8x15xbf16>
    %56 = vector.extract_strided_slice %23 {offsets = [0, 15], sizes = [8, 241], strides = [1, 1]} : vector<8x256xbf16> to vector<8x241xbf16>
    %57 = tpu.concatenate %56, %55 in 1 : vector<8x241xbf16>, vector<8x15xbf16> -> vector<8x256xbf16>
    %cst_15 = arith.constant 0.000000e+00 : bf16
    %58 = vector.broadcast %cst_15 : bf16 to vector<8x256xbf16>
    %59 = vector.shape_cast %20 : vector<1x256xi1> to vector<1x256xi1>
    %60 = vector.broadcast %59 : vector<1x256xi1> to vector<8x256xi1>
    %61 = arith.select %60, %57, %58 : vector<8x256xi1>, vector<8x256xbf16>
    %cst_16 = arith.constant 0.000000e+00 : bf16
    %62 = vector.broadcast %cst_16 : bf16 to vector<8x16xbf16>
    %63 = vector.extract_strided_slice %23 {offsets = [0, 16], sizes = [8, 240], strides = [1, 1]} : vector<8x256xbf16> to vector<8x240xbf16>
    %64 = tpu.concatenate %63, %62 in 1 : vector<8x240xbf16>, vector<8x16xbf16> -> vector<8x256xbf16>
    %cst_17 = arith.constant 0.000000e+00 : bf16
    %65 = vector.broadcast %cst_17 : bf16 to vector<8x17xbf16>
    %66 = vector.extract_strided_slice %23 {offsets = [0, 17], sizes = [8, 239], strides = [1, 1]} : vector<8x256xbf16> to vector<8x239xbf16>
    %67 = tpu.concatenate %66, %65 in 1 : vector<8x239xbf16>, vector<8x17xbf16> -> vector<8x256xbf16>
    %cst_18 = arith.constant 0.000000e+00 : bf16
    %68 = vector.broadcast %cst_18 : bf16 to vector<8x256xbf16>
    %69 = vector.shape_cast %22 : vector<1x256xi1> to vector<1x256xi1>
    %70 = vector.broadcast %69 : vector<1x256xi1> to vector<8x256xi1>
    %71 = arith.select %70, %67, %68 : vector<8x256xi1>, vector<8x256xbf16>
    %72 = tpu.concatenate %30, %33, %40, %47, %23, %54, %61, %64, %71 in 0 : vector<8x256xbf16>, vector<8x256xbf16>, vector<8x256xbf16>, vector<8x256xbf16>, vector<8x256xbf16>, vector<8x256xbf16>, vector<8x256xbf16>, vector<8x256xbf16>, vector<8x256xbf16> -> vector<72x256xbf16>
    %c0_19 = arith.constant 0 : index
    %c0_20 = arith.constant 0 : index
    %73 = vector.load %arg2[%c0_19, %c0_20] : memref<992x288xbf16, #tpu.memory_space<vmem>>, vector<8x72xbf16>
    %cst_21 = arith.constant dense<0.000000e+00> : vector<8x256xf32>
    %74 = tpu.matmul %73, %72, %cst_21 {dimension_numbers = #tpu.dot_dimension_numbers<[1], [0], [0], [1], [0, 0, 1, 1], [], []>} : vector<8x72xbf16>, vector<72x256xbf16>, vector<8x256xf32> -> vector<8x256xf32>
    %c0_22 = arith.constant 0 : index
    %c0_23 = arith.constant 0 : index
    %75 = vector.load %arg3[%c0_22, %c0_23] : memref<144x1xf32, #tpu.memory_space<vmem>>, vector<8x1xf32>
    %76 = vector.broadcast %75 : vector<8x1xf32> to vector<8x256xf32>
    %77 = arith.addf %74, %76 : vector<8x256xf32>
    %cst_24 = arith.constant 0.000000e+00 : f32
    %78 = vector.broadcast %cst_24 : f32 to vector<8x256xf32>
    %79 = arith.maximumf %77, %78 : vector<8x256xf32>
    %80 = arith.truncf %79 : vector<8x256xf32> to vector<8x256xbf16>
    %c0_25 = arith.constant 0 : index
    %c0_26 = arith.constant 0 : index
    %81 = vector.load %arg5[%c0_25, %c0_26] : memref<8x256xbf16, #tpu.memory_space<vmem>>, vector<8x256xbf16>
    tpu.vector_store %arg5[%c0_25, %c0_26], %80 {strides = array<i32>} : memref<8x256xbf16, #tpu.memory_space<vmem>>, vector<8x256xbf16>,
    %82 = arith.truncf %79 : vector<8x256xf32> to vector<8x256xbf16>
    %c8 = arith.constant 8 : index
    %c0_27 = arith.constant 0 : index
    %83 = vector.load %arg2[%c8, %c0_27] : memref<992x288xbf16, #tpu.memory_space<vmem>>, vector<256x64xbf16>
    %cst_28 = arith.constant dense<0.000000e+00> : vector<8x64xf32>
    %84 = tpu.matmul %82, %83, %cst_28 {dimension_numbers = #tpu.dot_dimension_numbers<[1], [0], [0], [1], [0, 0, 1, 1], [], []>} : vector<8x256xbf16>, vector<256x64xbf16>, vector<8x64xf32> -> vector<8x64xf32>
    %85 = tpu.iota {dimensions = array<i32: 1>} : vector<1x64xi32>
    %c8_i32 = arith.constant 8 : i32
    %c0_i32_29 = arith.constant 0 : i32
    %86 = arith.cmpi eq, %c8_i32, %c0_i32_29 : i32
    %c1_i32_30 = arith.constant 1 : i32
    %87 = arith.select %86, %c1_i32_30, %c8_i32 : i32
    %88 = vector.broadcast %87 : i32 to vector<1x64xi32>
    %89 = arith.remsi %85, %88 : vector<1x64xi32>
    %c0_i32_31 = arith.constant 0 : i32
    %90 = vector.broadcast %c0_i32_31 : i32 to vector<1x64xi32>
    %91 = arith.cmpi ne, %89, %90 : vector<1x64xi32>
    %c0_i32_32 = arith.constant 0 : i32
    %92 = vector.broadcast %c0_i32_32 : i32 to vector<1x64xi32>
    %93 = arith.cmpi slt, %89, %92 : vector<1x64xi32>
    %c0_i32_33 = arith.constant 0 : i32
    %94 = arith.cmpi slt, %87, %c0_i32_33 : i32
    %95 = vector.broadcast %94 : i1 to vector<1x64xi1>
    %96 = vector.broadcast %95 : vector<1x64xi1> to vector<1x64xi1>
    %97 = arith.xori %93, %96 : vector<1x64xi1>
    %98 = arith.andi %97, %91 : vector<1x64xi1>
    %99 = vector.broadcast %87 : i32 to vector<1x64xi32>
    %100 = arith.addi %89, %99 : vector<1x64xi32>
    %101 = arith.select %98, %100, %89 : vector<1x64xi1>, vector<1x64xi32>
    %c1_i32_34 = arith.constant 1 : i32
    %102 = vector.broadcast %c1_i32_34 : i32 to vector<1x64xi32>
    %103 = arith.cmpi sge, %101, %102 : vector<1x64xi32>
    %c7_i32 = arith.constant 7 : i32
    %104 = vector.broadcast %c7_i32 : i32 to vector<1x64xi32>
    %105 = arith.cmpi slt, %101, %104 : vector<1x64xi32>
    %106 = arith.truncf %84 : vector<8x64xf32> to vector<8x64xbf16>
    %cst_35 = arith.constant 0.000000e+00 : bf16
    %107 = vector.broadcast %cst_35 : bf16 to vector<8x9xbf16>
    %108 = vector.extract_strided_slice %106 {offsets = [0, 0], sizes = [8, 55], strides = [1, 1]} : vector<8x64xbf16> to vector<8x55xbf16>
    %109 = tpu.concatenate %107, %108 in 1 : vector<8x9xbf16>, vector<8x55xbf16> -> vector<8x64xbf16>
    %cst_36 = arith.constant 0.000000e+00 : bf16
    %110 = vector.broadcast %cst_36 : bf16 to vector<8x64xbf16>
    %111 = vector.shape_cast %103 : vector<1x64xi1> to vector<1x64xi1>
    %112 = vector.broadcast %111 : vector<1x64xi1> to vector<8x64xi1>
    %113 = arith.select %112, %109, %110 : vector<8x64xi1>, vector<8x64xbf16>
    %cst_37 = arith.constant 0.000000e+00 : bf16
    %114 = vector.broadcast %cst_37 : bf16 to vector<8x8xbf16>
    %115 = vector.extract_strided_slice %106 {offsets = [0, 0], sizes = [8, 56], strides = [1, 1]} : vector<8x64xbf16> to vector<8x56xbf16>
    %116 = tpu.concatenate %114, %115 in 1 : vector<8x8xbf16>, vector<8x56xbf16> -> vector<8x64xbf16>
    %cst_38 = arith.constant 0.000000e+00 : bf16
    %117 = vector.broadcast %cst_38 : bf16 to vector<8x7xbf16>
    %118 = vector.extract_strided_slice %106 {offsets = [0, 0], sizes = [8, 57], strides = [1, 1]} : vector<8x64xbf16> to vector<8x57xbf16>
    %119 = tpu.concatenate %117, %118 in 1 : vector<8x7xbf16>, vector<8x57xbf16> -> vector<8x64xbf16>
    %cst_39 = arith.constant 0.000000e+00 : bf16
    %120 = vector.broadcast %cst_39 : bf16 to vector<8x64xbf16>
    %121 = vector.shape_cast %105 : vector<1x64xi1> to vector<1x64xi1>
    %122 = vector.broadcast %121 : vector<1x64xi1> to vector<8x64xi1>
    %123 = arith.select %122, %119, %120 : vector<8x64xi1>, vector<8x64xbf16>
    %cst_40 = arith.constant 0.000000e+00 : bf16
    %124 = vector.broadcast %cst_40 : bf16 to vector<8x1xbf16>
    %125 = vector.extract_strided_slice %106 {offsets = [0, 0], sizes = [8, 63], strides = [1, 1]} : vector<8x64xbf16> to vector<8x63xbf16>
    %126 = tpu.concatenate %124, %125 in 1 : vector<8x1xbf16>, vector<8x63xbf16> -> vector<8x64xbf16>
    %cst_41 = arith.constant 0.000000e+00 : bf16
    %127 = vector.broadcast %cst_41 : bf16 to vector<8x64xbf16>
    %128 = vector.shape_cast %103 : vector<1x64xi1> to vector<1x64xi1>
    %129 = vector.broadcast %128 : vector<1x64xi1> to vector<8x64xi1>
    %130 = arith.select %129, %126, %127 : vector<8x64xi1>, vector<8x64xbf16>
    %cst_42 = arith.constant 0.000000e+00 : bf16
    %131 = vector.broadcast %cst_42 : bf16 to vector<8x1xbf16>
    %132 = vector.extract_strided_slice %106 {offsets = [0, 1], sizes = [8, 63], strides = [1, 1]} : vector<8x64xbf16> to vector<8x63xbf16>
    %133 = tpu.concatenate %132, %131 in 1 : vector<8x63xbf16>, vector<8x1xbf16> -> vector<8x64xbf16>
    %cst_43 = arith.constant 0.000000e+00 : bf16
    %134 = vector.broadcast %cst_43 : bf16 to vector<8x64xbf16>
    %135 = vector.shape_cast %105 : vector<1x64xi1> to vector<1x64xi1>
    %136 = vector.broadcast %135 : vector<1x64xi1> to vector<8x64xi1>
    %137 = arith.select %136, %133, %134 : vector<8x64xi1>, vector<8x64xbf16>
    %cst_44 = arith.constant 0.000000e+00 : bf16
    %138 = vector.broadcast %cst_44 : bf16 to vector<8x7xbf16>
    %139 = vector.extract_strided_slice %106 {offsets = [0, 7], sizes = [8, 57], strides = [1, 1]} : vector<8x64xbf16> to vector<8x57xbf16>
    %140 = tpu.concatenate %139, %138 in 1 : vector<8x57xbf16>, vector<8x7xbf16> -> vector<8x64xbf16>
    %cst_45 = arith.constant 0.000000e+00 : bf16
    %141 = vector.broadcast %cst_45 : bf16 to vector<8x64xbf16>
    %142 = vector.shape_cast %103 : vector<1x64xi1> to vector<1x64xi1>
    %143 = vector.broadcast %142 : vector<1x64xi1> to vector<8x64xi1>
    %144 = arith.select %143, %140, %141 : vector<8x64xi1>, vector<8x64xbf16>
    %cst_46 = arith.constant 0.000000e+00 : bf16
    %145 = vector.broadcast %cst_46 : bf16 to vector<8x8xbf16>
    %146 = vector.extract_strided_slice %106 {offsets = [0, 8], sizes = [8, 56], strides = [1, 1]} : vector<8x64xbf16> to vector<8x56xbf16>
    %147 = tpu.concatenate %146, %145 in 1 : vector<8x56xbf16>, vector<8x8xbf16> -> vector<8x64xbf16>
    %cst_47 = arith.constant 0.000000e+00 : bf16
    %148 = vector.broadcast %cst_47 : bf16 to vector<8x9xbf16>
    %149 = vector.extract_strided_slice %106 {offsets = [0, 9], sizes = [8, 55], strides = [1, 1]} : vector<8x64xbf16> to vector<8x55xbf16>
    %150 = tpu.concatenate %149, %148 in 1 : vector<8x55xbf16>, vector<8x9xbf16> -> vector<8x64xbf16>
    %cst_48 = arith.constant 0.000000e+00 : bf16
    %151 = vector.broadcast %cst_48 : bf16 to vector<8x64xbf16>
    %152 = vector.shape_cast %105 : vector<1x64xi1> to vector<1x64xi1>
    %153 = vector.broadcast %152 : vector<1x64xi1> to vector<8x64xi1>
    %154 = arith.select %153, %150, %151 : vector<8x64xi1>, vector<8x64xbf16>
    %155 = tpu.concatenate %113, %116, %123, %130, %106, %137, %144, %147, %154 in 0 : vector<8x64xbf16>, vector<8x64xbf16>, vector<8x64xbf16>, vector<8x64xbf16>, vector<8x64xbf16>, vector<8x64xbf16>, vector<8x64xbf16>, vector<8x64xbf16>, vector<8x64xbf16> -> vector<72x64xbf16>
    %c264 = arith.constant 264 : index
    %c0_49 = arith.constant 0 : index
    %156 = vector.load %arg2[%c264, %c0_49] : memref<992x288xbf16, #tpu.memory_space<vmem>>, vector<8x72xbf16>
    %cst_50 = arith.constant dense<0.000000e+00> : vector<8x64xf32>
    %157 = tpu.matmul %156, %155, %cst_50 {dimension_numbers = #tpu.dot_dimension_numbers<[1], [0], [0], [1], [0, 0, 1, 1], [], []>} : vector<8x72xbf16>, vector<72x64xbf16>, vector<8x64xf32> -> vector<8x64xf32>
    %c8_51 = arith.constant 8 : index
    %c0_52 = arith.constant 0 : index
    %158 = vector.load %arg3[%c8_51, %c0_52] : memref<144x1xf32, #tpu.memory_space<vmem>>, vector<8x1xf32>
    %159 = vector.broadcast %158 : vector<8x1xf32> to vector<8x64xf32>
    %160 = arith.addf %157, %159 : vector<8x64xf32>
    %cst_53 = arith.constant 0.000000e+00 : f32
    %161 = vector.broadcast %cst_53 : f32 to vector<8x64xf32>
    %162 = arith.maximumf %160, %161 : vector<8x64xf32>
    %163 = arith.truncf %162 : vector<8x64xf32> to vector<8x64xbf16>
    %c0_54 = arith.constant 0 : index
    %c0_55 = arith.constant 0 : index
    %164 = vector.load %arg6[%c0_54, %c0_55] : memref<8x64xbf16, #tpu.memory_space<vmem>>, vector<8x64xbf16>
    tpu.vector_store %arg6[%c0_54, %c0_55], %163 {strides = array<i32>} : memref<8x64xbf16, #tpu.memory_space<vmem>>, vector<8x64xbf16>,
    %165 = arith.truncf %162 : vector<8x64xf32> to vector<8x64xbf16>
    %c272 = arith.constant 272 : index
    %c0_56 = arith.constant 0 : index
    %166 = vector.load %arg2[%c272, %c0_56] : memref<992x288xbf16, #tpu.memory_space<vmem>>, vector<64x16xbf16>
    %cst_57 = arith.constant dense<0.000000e+00> : vector<8x16xf32>
    %167 = tpu.matmul %165, %166, %cst_57 {dimension_numbers = #tpu.dot_dimension_numbers<[1], [0], [0], [1], [0, 0, 1, 1], [], []>} : vector<8x64xbf16>, vector<64x16xbf16>, vector<8x16xf32> -> vector<8x16xf32>
    %168 = tpu.iota {dimensions = array<i32: 1>} : vector<1x16xi32>
    %c4_i32 = arith.constant 4 : i32
    %c0_i32_58 = arith.constant 0 : i32
    %169 = arith.cmpi eq, %c4_i32, %c0_i32_58 : i32
    %c1_i32_59 = arith.constant 1 : i32
    %170 = arith.select %169, %c1_i32_59, %c4_i32 : i32
    %171 = vector.broadcast %170 : i32 to vector<1x16xi32>
    %172 = arith.remsi %168, %171 : vector<1x16xi32>
    %c0_i32_60 = arith.constant 0 : i32
    %173 = vector.broadcast %c0_i32_60 : i32 to vector<1x16xi32>
    %174 = arith.cmpi ne, %172, %173 : vector<1x16xi32>
    %c0_i32_61 = arith.constant 0 : i32
    %175 = vector.broadcast %c0_i32_61 : i32 to vector<1x16xi32>
    %176 = arith.cmpi slt, %172, %175 : vector<1x16xi32>
    %c0_i32_62 = arith.constant 0 : i32
    %177 = arith.cmpi slt, %170, %c0_i32_62 : i32
    %178 = vector.broadcast %177 : i1 to vector<1x16xi1>
    %179 = vector.broadcast %178 : vector<1x16xi1> to vector<1x16xi1>
    %180 = arith.xori %176, %179 : vector<1x16xi1>
    %181 = arith.andi %180, %174 : vector<1x16xi1>
    %182 = vector.broadcast %170 : i32 to vector<1x16xi32>
    %183 = arith.addi %172, %182 : vector<1x16xi32>
    %184 = arith.select %181, %183, %172 : vector<1x16xi1>, vector<1x16xi32>
    %c1_i32_63 = arith.constant 1 : i32
    %185 = vector.broadcast %c1_i32_63 : i32 to vector<1x16xi32>
    %186 = arith.cmpi sge, %184, %185 : vector<1x16xi32>
    %c3_i32 = arith.constant 3 : i32
    %187 = vector.broadcast %c3_i32 : i32 to vector<1x16xi32>
    %188 = arith.cmpi slt, %184, %187 : vector<1x16xi32>
    %189 = arith.truncf %167 : vector<8x16xf32> to vector<8x16xbf16>
    %cst_64 = arith.constant 0.000000e+00 : bf16
    %190 = vector.broadcast %cst_64 : bf16 to vector<8x5xbf16>
    %191 = vector.extract_strided_slice %189 {offsets = [0, 0], sizes = [8, 11], strides = [1, 1]} : vector<8x16xbf16> to vector<8x11xbf16>
    %192 = tpu.concatenate %190, %191 in 1 : vector<8x5xbf16>, vector<8x11xbf16> -> vector<8x16xbf16>
    %cst_65 = arith.constant 0.000000e+00 : bf16
    %193 = vector.broadcast %cst_65 : bf16 to vector<8x16xbf16>
    %194 = vector.shape_cast %186 : vector<1x16xi1> to vector<1x16xi1>
    %195 = vector.broadcast %194 : vector<1x16xi1> to vector<8x16xi1>
    %196 = arith.select %195, %192, %193 : vector<8x16xi1>, vector<8x16xbf16>
    %cst_66 = arith.constant 0.000000e+00 : bf16
    %197 = vector.broadcast %cst_66 : bf16 to vector<8x4xbf16>
    %198 = vector.extract_strided_slice %189 {offsets = [0, 0], sizes = [8, 12], strides = [1, 1]} : vector<8x16xbf16> to vector<8x12xbf16>
    %199 = tpu.concatenate %197, %198 in 1 : vector<8x4xbf16>, vector<8x12xbf16> -> vector<8x16xbf16>
    %cst_67 = arith.constant 0.000000e+00 : bf16
    %200 = vector.broadcast %cst_67 : bf16 to vector<8x3xbf16>
    %201 = vector.extract_strided_slice %189 {offsets = [0, 0], sizes = [8, 13], strides = [1, 1]} : vector<8x16xbf16> to vector<8x13xbf16>
    %202 = tpu.concatenate %200, %201 in 1 : vector<8x3xbf16>, vector<8x13xbf16> -> vector<8x16xbf16>
    %cst_68 = arith.constant 0.000000e+00 : bf16
    %203 = vector.broadcast %cst_68 : bf16 to vector<8x16xbf16>
    %204 = vector.shape_cast %188 : vector<1x16xi1> to vector<1x16xi1>
    %205 = vector.broadcast %204 : vector<1x16xi1> to vector<8x16xi1>
    %206 = arith.select %205, %202, %203 : vector<8x16xi1>, vector<8x16xbf16>
    %cst_69 = arith.constant 0.000000e+00 : bf16
    %207 = vector.broadcast %cst_69 : bf16 to vector<8x1xbf16>
    %208 = vector.extract_strided_slice %189 {offsets = [0, 0], sizes = [8, 15], strides = [1, 1]} : vector<8x16xbf16> to vector<8x15xbf16>
    %209 = tpu.concatenate %207, %208 in 1 : vector<8x1xbf16>, vector<8x15xbf16> -> vector<8x16xbf16>
    %cst_70 = arith.constant 0.000000e+00 : bf16
    %210 = vector.broadcast %cst_70 : bf16 to vector<8x16xbf16>
    %211 = vector.shape_cast %186 : vector<1x16xi1> to vector<1x16xi1>
    %212 = vector.broadcast %211 : vector<1x16xi1> to vector<8x16xi1>
    %213 = arith.select %212, %209, %210 : vector<8x16xi1>, vector<8x16xbf16>
    %cst_71 = arith.constant 0.000000e+00 : bf16
    %214 = vector.broadcast %cst_71 : bf16 to vector<8x1xbf16>
    %215 = vector.extract_strided_slice %189 {offsets = [0, 1], sizes = [8, 15], strides = [1, 1]} : vector<8x16xbf16> to vector<8x15xbf16>
    %216 = tpu.concatenate %215, %214 in 1 : vector<8x15xbf16>, vector<8x1xbf16> -> vector<8x16xbf16>
    %cst_72 = arith.constant 0.000000e+00 : bf16
    %217 = vector.broadcast %cst_72 : bf16 to vector<8x16xbf16>
    %218 = vector.shape_cast %188 : vector<1x16xi1> to vector<1x16xi1>
    %219 = vector.broadcast %218 : vector<1x16xi1> to vector<8x16xi1>
    %220 = arith.select %219, %216, %217 : vector<8x16xi1>, vector<8x16xbf16>
    %cst_73 = arith.constant 0.000000e+00 : bf16
    %221 = vector.broadcast %cst_73 : bf16 to vector<8x3xbf16>
    %222 = vector.extract_strided_slice %189 {offsets = [0, 3], sizes = [8, 13], strides = [1, 1]} : vector<8x16xbf16> to vector<8x13xbf16>
    %223 = tpu.concatenate %222, %221 in 1 : vector<8x13xbf16>, vector<8x3xbf16> -> vector<8x16xbf16>
    %cst_74 = arith.constant 0.000000e+00 : bf16
    %224 = vector.broadcast %cst_74 : bf16 to vector<8x16xbf16>
    %225 = vector.shape_cast %186 : vector<1x16xi1> to vector<1x16xi1>
    %226 = vector.broadcast %225 : vector<1x16xi1> to vector<8x16xi1>
    %227 = arith.select %226, %223, %224 : vector<8x16xi1>, vector<8x16xbf16>
    %cst_75 = arith.constant 0.000000e+00 : bf16
    %228 = vector.broadcast %cst_75 : bf16 to vector<8x4xbf16>
    %229 = vector.extract_strided_slice %189 {offsets = [0, 4], sizes = [8, 12], strides = [1, 1]} : vector<8x16xbf16> to vector<8x12xbf16>
    %230 = tpu.concatenate %229, %228 in 1 : vector<8x12xbf16>, vector<8x4xbf16> -> vector<8x16xbf16>
    %cst_76 = arith.constant 0.000000e+00 : bf16
    %231 = vector.broadcast %cst_76 : bf16 to vector<8x5xbf16>
    %232 = vector.extract_strided_slice %189 {offsets = [0, 5], sizes = [8, 11], strides = [1, 1]} : vector<8x16xbf16> to vector<8x11xbf16>
    %233 = tpu.concatenate %232, %231 in 1 : vector<8x11xbf16>, vector<8x5xbf16> -> vector<8x16xbf16>
    %cst_77 = arith.constant 0.000000e+00 : bf16
    %234 = vector.broadcast %cst_77 : bf16 to vector<8x16xbf16>
    %235 = vector.shape_cast %188 : vector<1x16xi1> to vector<1x16xi1>
    %236 = vector.broadcast %235 : vector<1x16xi1> to vector<8x16xi1>
    %237 = arith.select %236, %233, %234 : vector<8x16xi1>, vector<8x16xbf16>
    %238 = tpu.concatenate %196, %199, %206, %213, %189, %220, %227, %230, %237 in 0 : vector<8x16xbf16>, vector<8x16xbf16>, vector<8x16xbf16>, vector<8x16xbf16>, vector<8x16xbf16>, vector<8x16xbf16>, vector<8x16xbf16>, vector<8x16xbf16>, vector<8x16xbf16> -> vector<72x16xbf16>
    %c336 = arith.constant 336 : index
    %c0_78 = arith.constant 0 : index
    %239 = vector.load %arg2[%c336, %c0_78] : memref<992x288xbf16, #tpu.memory_space<vmem>>, vector<8x72xbf16>
    %cst_79 = arith.constant dense<0.000000e+00> : vector<8x16xf32>
    %240 = tpu.matmul %239, %238, %cst_79 {dimension_numbers = #tpu.dot_dimension_numbers<[1], [0], [0], [1], [0, 0, 1, 1], [], []>} : vector<8x72xbf16>, vector<72x16xbf16>, vector<8x16xf32> -> vector<8x16xf32>
    %c16 = arith.constant 16 : index
    %c0_80 = arith.constant 0 : index
    %241 = vector.load %arg3[%c16, %c0_80] : memref<144x1xf32, #tpu.memory_space<vmem>>, vector<8x1xf32>
    %242 = vector.broadcast %241 : vector<8x1xf32> to vector<8x16xf32>
    %243 = arith.addf %240, %242 : vector<8x16xf32>
    %cst_81 = arith.constant 0.000000e+00 : f32
    %244 = vector.broadcast %cst_81 : f32 to vector<8x16xf32>
    %245 = arith.maximumf %243, %244 : vector<8x16xf32>
    %246 = arith.truncf %245 : vector<8x16xf32> to vector<8x16xbf16>
    %c0_82 = arith.constant 0 : index
    %c0_83 = arith.constant 0 : index
    %247 = vector.load %arg7[%c0_82, %c0_83] : memref<8x16xbf16, #tpu.memory_space<vmem>>, vector<8x16xbf16>
    tpu.vector_store %arg7[%c0_82, %c0_83], %246 {strides = array<i32>} : memref<8x16xbf16, #tpu.memory_space<vmem>>, vector<8x16xbf16>,
    %248 = arith.truncf %245 : vector<8x16xf32> to vector<8x16xbf16>
    %c344 = arith.constant 344 : index
    %c0_84 = arith.constant 0 : index
    %249 = vector.load %arg2[%c344, %c0_84] : memref<992x288xbf16, #tpu.memory_space<vmem>>, vector<16x4xbf16>
    %cst_85 = arith.constant dense<0.000000e+00> : vector<8x4xf32>
    %250 = tpu.matmul %248, %249, %cst_85 {dimension_numbers = #tpu.dot_dimension_numbers<[1], [0], [0], [1], [0, 0, 1, 1], [], []>} : vector<8x16xbf16>, vector<16x4xbf16>, vector<8x4xf32> -> vector<8x4xf32>
    %251 = tpu.iota {dimensions = array<i32: 1>} : vector<1x4xi32>
    %c2_i32 = arith.constant 2 : i32
    %c0_i32_86 = arith.constant 0 : i32
    %252 = arith.cmpi eq, %c2_i32, %c0_i32_86 : i32
    %c1_i32_87 = arith.constant 1 : i32
    %253 = arith.select %252, %c1_i32_87, %c2_i32 : i32
    %254 = vector.broadcast %253 : i32 to vector<1x4xi32>
    %255 = arith.remsi %251, %254 : vector<1x4xi32>
    %c0_i32_88 = arith.constant 0 : i32
    %256 = vector.broadcast %c0_i32_88 : i32 to vector<1x4xi32>
    %257 = arith.cmpi ne, %255, %256 : vector<1x4xi32>
    %c0_i32_89 = arith.constant 0 : i32
    %258 = vector.broadcast %c0_i32_89 : i32 to vector<1x4xi32>
    %259 = arith.cmpi slt, %255, %258 : vector<1x4xi32>
    %c0_i32_90 = arith.constant 0 : i32
    %260 = arith.cmpi slt, %253, %c0_i32_90 : i32
    %261 = vector.broadcast %260 : i1 to vector<1x4xi1>
    %262 = vector.broadcast %261 : vector<1x4xi1> to vector<1x4xi1>
    %263 = arith.xori %259, %262 : vector<1x4xi1>
    %264 = arith.andi %263, %257 : vector<1x4xi1>
    %265 = vector.broadcast %253 : i32 to vector<1x4xi32>
    %266 = arith.addi %255, %265 : vector<1x4xi32>
    %267 = arith.select %264, %266, %255 : vector<1x4xi1>, vector<1x4xi32>
    %c1_i32_91 = arith.constant 1 : i32
    %268 = vector.broadcast %c1_i32_91 : i32 to vector<1x4xi32>
    %269 = arith.cmpi sge, %267, %268 : vector<1x4xi32>
    %c1_i32_92 = arith.constant 1 : i32
    %270 = vector.broadcast %c1_i32_92 : i32 to vector<1x4xi32>
    %271 = arith.cmpi slt, %267, %270 : vector<1x4xi32>
    %272 = arith.truncf %250 : vector<8x4xf32> to vector<8x4xbf16>
    %cst_93 = arith.constant 0.000000e+00 : bf16
    %273 = vector.broadcast %cst_93 : bf16 to vector<8x3xbf16>
    %274 = vector.extract_strided_slice %272 {offsets = [0, 0], sizes = [8, 1], strides = [1, 1]} : vector<8x4xbf16> to vector<8x1xbf16>
    %275 = tpu.concatenate %273, %274 in 1 : vector<8x3xbf16>, vector<8x1xbf16> -> vector<8x4xbf16>
    %cst_94 = arith.constant 0.000000e+00 : bf16
    %276 = vector.broadcast %cst_94 : bf16 to vector<8x4xbf16>
    %277 = vector.shape_cast %269 : vector<1x4xi1> to vector<1x4xi1>
    %278 = vector.broadcast %277 : vector<1x4xi1> to vector<8x4xi1>
    %279 = arith.select %278, %275, %276 : vector<8x4xi1>, vector<8x4xbf16>
    %cst_95 = arith.constant 0.000000e+00 : bf16
    %280 = vector.broadcast %cst_95 : bf16 to vector<8x2xbf16>
    %281 = vector.extract_strided_slice %272 {offsets = [0, 0], sizes = [8, 2], strides = [1, 1]} : vector<8x4xbf16> to vector<8x2xbf16>
    %282 = tpu.concatenate %280, %281 in 1 : vector<8x2xbf16>, vector<8x2xbf16> -> vector<8x4xbf16>
    %cst_96 = arith.constant 0.000000e+00 : bf16
    %283 = vector.broadcast %cst_96 : bf16 to vector<8x1xbf16>
    %284 = vector.extract_strided_slice %272 {offsets = [0, 0], sizes = [8, 3], strides = [1, 1]} : vector<8x4xbf16> to vector<8x3xbf16>
    %285 = tpu.concatenate %283, %284 in 1 : vector<8x1xbf16>, vector<8x3xbf16> -> vector<8x4xbf16>
    %cst_97 = arith.constant 0.000000e+00 : bf16
    %286 = vector.broadcast %cst_97 : bf16 to vector<8x4xbf16>
    %287 = vector.shape_cast %271 : vector<1x4xi1> to vector<1x4xi1>
    %288 = vector.broadcast %287 : vector<1x4xi1> to vector<8x4xi1>
    %289 = arith.select %288, %285, %286 : vector<8x4xi1>, vector<8x4xbf16>
    %cst_98 = arith.constant 0.000000e+00 : bf16
    %290 = vector.broadcast %cst_98 : bf16 to vector<8x1xbf16>
    %291 = vector.extract_strided_slice %272 {offsets = [0, 0], sizes = [8, 3], strides = [1, 1]} : vector<8x4xbf16> to vector<8x3xbf16>
    %292 = tpu.concatenate %290, %291 in 1 : vector<8x1xbf16>, vector<8x3xbf16> -> vector<8x4xbf16>
    %cst_99 = arith.constant 0.000000e+00 : bf16
    %293 = vector.broadcast %cst_99 : bf16 to vector<8x4xbf16>
    %294 = vector.shape_cast %269 : vector<1x4xi1> to vector<1x4xi1>
    %295 = vector.broadcast %294 : vector<1x4xi1> to vector<8x4xi1>
    %296 = arith.select %295, %292, %293 : vector<8x4xi1>, vector<8x4xbf16>
    %cst_100 = arith.constant 0.000000e+00 : bf16
    %297 = vector.broadcast %cst_100 : bf16 to vector<8x1xbf16>
    %298 = vector.extract_strided_slice %272 {offsets = [0, 1], sizes = [8, 3], strides = [1, 1]} : vector<8x4xbf16> to vector<8x3xbf16>
    %299 = tpu.concatenate %298, %297 in 1 : vector<8x3xbf16>, vector<8x1xbf16> -> vector<8x4xbf16>
    %cst_101 = arith.constant 0.000000e+00 : bf16
    %300 = vector.broadcast %cst_101 : bf16 to vector<8x4xbf16>
    %301 = vector.shape_cast %271 : vector<1x4xi1> to vector<1x4xi1>
    %302 = vector.broadcast %301 : vector<1x4xi1> to vector<8x4xi1>
    %303 = arith.select %302, %299, %300 : vector<8x4xi1>, vector<8x4xbf16>
    %cst_102 = arith.constant 0.000000e+00 : bf16
    %304 = vector.broadcast %cst_102 : bf16 to vector<8x1xbf16>
    %305 = vector.extract_strided_slice %272 {offsets = [0, 1], sizes = [8, 3], strides = [1, 1]} : vector<8x4xbf16> to vector<8x3xbf16>
    %306 = tpu.concatenate %305, %304 in 1 : vector<8x3xbf16>, vector<8x1xbf16> -> vector<8x4xbf16>
    %cst_103 = arith.constant 0.000000e+00 : bf16
    %307 = vector.broadcast %cst_103 : bf16 to vector<8x4xbf16>
    %308 = vector.shape_cast %269 : vector<1x4xi1> to vector<1x4xi1>
    %309 = vector.broadcast %308 : vector<1x4xi1> to vector<8x4xi1>
    %310 = arith.select %309, %306, %307 : vector<8x4xi1>, vector<8x4xbf16>
    %cst_104 = arith.constant 0.000000e+00 : bf16
    %311 = vector.broadcast %cst_104 : bf16 to vector<8x2xbf16>
    %312 = vector.extract_strided_slice %272 {offsets = [0, 2], sizes = [8, 2], strides = [1, 1]} : vector<8x4xbf16> to vector<8x2xbf16>
    %313 = tpu.concatenate %312, %311 in 1 : vector<8x2xbf16>, vector<8x2xbf16> -> vector<8x4xbf16>
    %cst_105 = arith.constant 0.000000e+00 : bf16
    %314 = vector.broadcast %cst_105 : bf16 to vector<8x3xbf16>
    %315 = vector.extract_strided_slice %272 {offsets = [0, 3], sizes = [8, 1], strides = [1, 1]} : vector<8x4xbf16> to vector<8x1xbf16>
    %316 = tpu.concatenate %315, %314 in 1 : vector<8x1xbf16>, vector<8x3xbf16> -> vector<8x4xbf16>
    %cst_106 = arith.constant 0.000000e+00 : bf16
    %317 = vector.broadcast %cst_106 : bf16 to vector<8x4xbf16>
    %318 = vector.shape_cast %271 : vector<1x4xi1> to vector<1x4xi1>
    %319 = vector.broadcast %318 : vector<1x4xi1> to vector<8x4xi1>
    %320 = arith.select %319, %316, %317 : vector<8x4xi1>, vector<8x4xbf16>
    %321 = tpu.concatenate %279, %282, %289, %296, %272, %303, %310, %313, %320 in 0 : vector<8x4xbf16>, vector<8x4xbf16>, vector<8x4xbf16>, vector<8x4xbf16>, vector<8x4xbf16>, vector<8x4xbf16>, vector<8x4xbf16>, vector<8x4xbf16>, vector<8x4xbf16> -> vector<72x4xbf16>
    %c360 = arith.constant 360 : index
    %c0_107 = arith.constant 0 : index
    %322 = vector.load %arg2[%c360, %c0_107] : memref<992x288xbf16, #tpu.memory_space<vmem>>, vector<16x72xbf16>
    %cst_108 = arith.constant dense<0.000000e+00> : vector<16x4xf32>
    %323 = tpu.matmul %322, %321, %cst_108 {dimension_numbers = #tpu.dot_dimension_numbers<[1], [0], [0], [1], [0, 0, 1, 1], [], []>} : vector<16x72xbf16>, vector<72x4xbf16>, vector<16x4xf32> -> vector<16x4xf32>
    %c24 = arith.constant 24 : index
    %c0_109 = arith.constant 0 : index
    %324 = vector.load %arg3[%c24, %c0_109] : memref<144x1xf32, #tpu.memory_space<vmem>>, vector<16x1xf32>
    %325 = vector.broadcast %324 : vector<16x1xf32> to vector<16x4xf32>
    %326 = arith.addf %323, %325 : vector<16x4xf32>
    %cst_110 = arith.constant 0.000000e+00 : f32
    %327 = vector.broadcast %cst_110 : f32 to vector<16x4xf32>
    %328 = arith.maximumf %326, %327 : vector<16x4xf32>
    %329 = arith.truncf %328 : vector<16x4xf32> to vector<16x4xbf16>
    %c0_111 = arith.constant 0 : index
    %c0_112 = arith.constant 0 : index
    %330 = vector.load %arg8[%c0_111, %c0_112] : memref<16x4xbf16, #tpu.memory_space<vmem>>, vector<16x4xbf16>
    tpu.vector_store %arg8[%c0_111, %c0_112], %329 {strides = array<i32>} : memref<16x4xbf16, #tpu.memory_space<vmem>>, vector<16x4xbf16>,
    %331 = arith.truncf %328 : vector<16x4xf32> to vector<16x4xbf16>
    %c376 = arith.constant 376 : index
    %c0_113 = arith.constant 0 : index
    %332 = vector.load %arg2[%c376, %c0_113] : memref<992x288xbf16, #tpu.memory_space<vmem>>, vector<4x1xbf16>
    %cst_114 = arith.constant dense<0.000000e+00> : vector<16x1xf32>
    %333 = tpu.matmul %331, %332, %cst_114 {dimension_numbers = #tpu.dot_dimension_numbers<[1], [0], [0], [1], [0, 0, 1, 1], [], []>} : vector<16x4xbf16>, vector<4x1xbf16>, vector<16x1xf32> -> vector<16x1xf32>
    %334 = arith.truncf %333 : vector<16x1xf32> to vector<16x1xbf16>
    %c384 = arith.constant 384 : index
    %c0_115 = arith.constant 0 : index
    %335 = vector.load %arg2[%c384, %c0_115] : memref<992x288xbf16, #tpu.memory_space<vmem>>, vector<16x16xbf16>
    %cst_116 = arith.constant dense<0.000000e+00> : vector<16x1xf32>
    %336 = tpu.matmul %335, %334, %cst_116 {dimension_numbers = #tpu.dot_dimension_numbers<[1], [0], [0], [1], [0, 0, 1, 1], [], []>} : vector<16x16xbf16>, vector<16x1xbf16>, vector<16x1xf32> -> vector<16x1xf32>
    %c40 = arith.constant 40 : index
    %c0_117 = arith.constant 0 : index
    %337 = vector.load %arg3[%c40, %c0_117] : memref<144x1xf32, #tpu.memory_space<vmem>>, vector<16x1xf32>
    %338 = arith.addf %336, %337 : vector<16x1xf32>
    %cst_118 = arith.constant 0.000000e+00 : f32
    %339 = vector.broadcast %cst_118 : f32 to vector<16x1xf32>
    %340 = arith.maximumf %338, %339 : vector<16x1xf32>
    %341 = arith.truncf %340 : vector<16x1xf32> to vector<16x1xbf16>
    %c432 = arith.constant 432 : index
    %c0_119 = arith.constant 0 : index
    %342 = vector.load %arg2[%c432, %c0_119] : memref<992x288xbf16, #tpu.memory_space<vmem>>, vector<64x16xbf16>
    %cst_120 = arith.constant dense<0.000000e+00> : vector<64x1xf32>
    %343 = tpu.matmul %342, %341, %cst_120 {dimension_numbers = #tpu.dot_dimension_numbers<[1], [0], [0], [1], [0, 0, 1, 1], [], []>} : vector<64x16xbf16>, vector<16x1xbf16>, vector<64x1xf32> -> vector<64x1xf32>
    %344 = arith.truncf %343 : vector<64x1xf32> to vector<64x1xbf16>
    %c400 = arith.constant 400 : index
    %c0_121 = arith.constant 0 : index
    %345 = vector.load %arg2[%c400, %c0_121] : memref<992x288xbf16, #tpu.memory_space<vmem>>, vector<1x4xbf16>
    %346 = vector.extract_strided_slice %344 {offsets = [0, 0], sizes = [16, 1], strides = [1, 1]} : vector<64x1xbf16> to vector<16x1xbf16>
    %cst_122 = arith.constant dense<0.000000e+00> : vector<16x4xf32>
    %347 = tpu.matmul %346, %345, %cst_122 {dimension_numbers = #tpu.dot_dimension_numbers<[1], [0], [0], [1], [0, 0, 1, 1], [], []>} : vector<16x1xbf16>, vector<1x4xbf16>, vector<16x4xf32> -> vector<16x4xf32>
    %c408 = arith.constant 408 : index
    %c0_123 = arith.constant 0 : index
    %348 = vector.load %arg2[%c408, %c0_123] : memref<992x288xbf16, #tpu.memory_space<vmem>>, vector<1x4xbf16>
    %349 = vector.extract_strided_slice %344 {offsets = [16, 0], sizes = [16, 1], strides = [1, 1]} : vector<64x1xbf16> to vector<16x1xbf16>
    %cst_124 = arith.constant dense<0.000000e+00> : vector<16x4xf32>
    %350 = tpu.matmul %349, %348, %cst_124 {dimension_numbers = #tpu.dot_dimension_numbers<[1], [0], [0], [1], [0, 0, 1, 1], [], []>} : vector<16x1xbf16>, vector<1x4xbf16>, vector<16x4xf32> -> vector<16x4xf32>
    %351 = arith.addf %347, %350 : vector<16x4xf32>
    %c416 = arith.constant 416 : index
    %c0_125 = arith.constant 0 : index
    %352 = vector.load %arg2[%c416, %c0_125] : memref<992x288xbf16, #tpu.memory_space<vmem>>, vector<1x4xbf16>
    %353 = vector.extract_strided_slice %344 {offsets = [32, 0], sizes = [16, 1], strides = [1, 1]} : vector<64x1xbf16> to vector<16x1xbf16>
    %cst_126 = arith.constant dense<0.000000e+00> : vector<16x4xf32>
    %354 = tpu.matmul %353, %352, %cst_126 {dimension_numbers = #tpu.dot_dimension_numbers<[1], [0], [0], [1], [0, 0, 1, 1], [], []>} : vector<16x1xbf16>, vector<1x4xbf16>, vector<16x4xf32> -> vector<16x4xf32>
    %355 = arith.addf %351, %354 : vector<16x4xf32>
    %c424 = arith.constant 424 : index
    %c0_127 = arith.constant 0 : index
    %356 = vector.load %arg2[%c424, %c0_127] : memref<992x288xbf16, #tpu.memory_space<vmem>>, vector<1x4xbf16>
    %357 = vector.extract_strided_slice %344 {offsets = [48, 0], sizes = [16, 1], strides = [1, 1]} : vector<64x1xbf16> to vector<16x1xbf16>
    %cst_128 = arith.constant dense<0.000000e+00> : vector<16x4xf32>
    %358 = tpu.matmul %357, %356, %cst_128 {dimension_numbers = #tpu.dot_dimension_numbers<[1], [0], [0], [1], [0, 0, 1, 1], [], []>} : vector<16x1xbf16>, vector<1x4xbf16>, vector<16x4xf32> -> vector<16x4xf32>
    %359 = arith.addf %355, %358 : vector<16x4xf32>
    %c56 = arith.constant 56 : index
    %c0_129 = arith.constant 0 : index
    %360 = vector.load %arg3[%c56, %c0_129] : memref<144x1xf32, #tpu.memory_space<vmem>>, vector<16x1xf32>
    %361 = vector.broadcast %360 : vector<16x1xf32> to vector<16x4xf32>
    %362 = arith.addf %359, %361 : vector<16x4xf32>
    %363 = tpu.iota {dimensions = array<i32: 1>} : vector<1x4xi32>
    %c2_i32_130 = arith.constant 2 : i32
    %c0_i32_131 = arith.constant 0 : i32
    %364 = arith.cmpi eq, %c2_i32_130, %c0_i32_131 : i32
    %c1_i32_132 = arith.constant 1 : i32
    %365 = arith.select %364, %c1_i32_132, %c2_i32_130 : i32
    %366 = vector.broadcast %365 : i32 to vector<1x4xi32>
    %367 = arith.remsi %363, %366 : vector<1x4xi32>
    %c0_i32_133 = arith.constant 0 : i32
    %368 = vector.broadcast %c0_i32_133 : i32 to vector<1x4xi32>
    %369 = arith.cmpi ne, %367, %368 : vector<1x4xi32>
    %c0_i32_134 = arith.constant 0 : i32
    %370 = vector.broadcast %c0_i32_134 : i32 to vector<1x4xi32>
    %371 = arith.cmpi slt, %367, %370 : vector<1x4xi32>
    %c0_i32_135 = arith.constant 0 : i32
    %372 = arith.cmpi slt, %365, %c0_i32_135 : i32
    %373 = vector.broadcast %372 : i1 to vector<1x4xi1>
    %374 = vector.broadcast %373 : vector<1x4xi1> to vector<1x4xi1>
    %375 = arith.xori %371, %374 : vector<1x4xi1>
    %376 = arith.andi %375, %369 : vector<1x4xi1>
    %377 = vector.broadcast %365 : i32 to vector<1x4xi32>
    %378 = arith.addi %367, %377 : vector<1x4xi32>
    %379 = arith.select %376, %378, %367 : vector<1x4xi1>, vector<1x4xi32>
    %c1_i32_136 = arith.constant 1 : i32
    %380 = vector.broadcast %c1_i32_136 : i32 to vector<1x4xi32>
    %381 = arith.cmpi sge, %379, %380 : vector<1x4xi32>
    %c1_i32_137 = arith.constant 1 : i32
    %382 = vector.broadcast %c1_i32_137 : i32 to vector<1x4xi32>
    %383 = arith.cmpi slt, %379, %382 : vector<1x4xi32>
    %384 = arith.truncf %362 : vector<16x4xf32> to vector<16x4xbf16>
    %cst_138 = arith.constant 0.000000e+00 : bf16
    %385 = vector.broadcast %cst_138 : bf16 to vector<16x3xbf16>
    %386 = vector.extract_strided_slice %384 {offsets = [0, 0], sizes = [16, 1], strides = [1, 1]} : vector<16x4xbf16> to vector<16x1xbf16>
    %387 = tpu.concatenate %385, %386 in 1 : vector<16x3xbf16>, vector<16x1xbf16> -> vector<16x4xbf16>
    %cst_139 = arith.constant 0.000000e+00 : bf16
    %388 = vector.broadcast %cst_139 : bf16 to vector<16x4xbf16>
    %389 = vector.shape_cast %381 : vector<1x4xi1> to vector<1x4xi1>
    %390 = vector.broadcast %389 : vector<1x4xi1> to vector<16x4xi1>
    %391 = arith.select %390, %387, %388 : vector<16x4xi1>, vector<16x4xbf16>
    %cst_140 = arith.constant 0.000000e+00 : bf16
    %392 = vector.broadcast %cst_140 : bf16 to vector<16x2xbf16>
    %393 = vector.extract_strided_slice %384 {offsets = [0, 0], sizes = [16, 2], strides = [1, 1]} : vector<16x4xbf16> to vector<16x2xbf16>
    %394 = tpu.concatenate %392, %393 in 1 : vector<16x2xbf16>, vector<16x2xbf16> -> vector<16x4xbf16>
    %cst_141 = arith.constant 0.000000e+00 : bf16
    %395 = vector.broadcast %cst_141 : bf16 to vector<16x1xbf16>
    %396 = vector.extract_strided_slice %384 {offsets = [0, 0], sizes = [16, 3], strides = [1, 1]} : vector<16x4xbf16> to vector<16x3xbf16>
    %397 = tpu.concatenate %395, %396 in 1 : vector<16x1xbf16>, vector<16x3xbf16> -> vector<16x4xbf16>
    %cst_142 = arith.constant 0.000000e+00 : bf16
    %398 = vector.broadcast %cst_142 : bf16 to vector<16x4xbf16>
    %399 = vector.shape_cast %383 : vector<1x4xi1> to vector<1x4xi1>
    %400 = vector.broadcast %399 : vector<1x4xi1> to vector<16x4xi1>
    %401 = arith.select %400, %397, %398 : vector<16x4xi1>, vector<16x4xbf16>
    %cst_143 = arith.constant 0.000000e+00 : bf16
    %402 = vector.broadcast %cst_143 : bf16 to vector<16x1xbf16>
    %403 = vector.extract_strided_slice %384 {offsets = [0, 0], sizes = [16, 3], strides = [1, 1]} : vector<16x4xbf16> to vector<16x3xbf16>
    %404 = tpu.concatenate %402, %403 in 1 : vector<16x1xbf16>, vector<16x3xbf16> -> vector<16x4xbf16>
    %cst_144 = arith.constant 0.000000e+00 : bf16
    %405 = vector.broadcast %cst_144 : bf16 to vector<16x4xbf16>
    %406 = vector.shape_cast %381 : vector<1x4xi1> to vector<1x4xi1>
    %407 = vector.broadcast %406 : vector<1x4xi1> to vector<16x4xi1>
    %408 = arith.select %407, %404, %405 : vector<16x4xi1>, vector<16x4xbf16>
    %cst_145 = arith.constant 0.000000e+00 : bf16
    %409 = vector.broadcast %cst_145 : bf16 to vector<16x1xbf16>
    %410 = vector.extract_strided_slice %384 {offsets = [0, 1], sizes = [16, 3], strides = [1, 1]} : vector<16x4xbf16> to vector<16x3xbf16>
    %411 = tpu.concatenate %410, %409 in 1 : vector<16x3xbf16>, vector<16x1xbf16> -> vector<16x4xbf16>
    %cst_146 = arith.constant 0.000000e+00 : bf16
    %412 = vector.broadcast %cst_146 : bf16 to vector<16x4xbf16>
    %413 = vector.shape_cast %383 : vector<1x4xi1> to vector<1x4xi1>
    %414 = vector.broadcast %413 : vector<1x4xi1> to vector<16x4xi1>
    %415 = arith.select %414, %411, %412 : vector<16x4xi1>, vector<16x4xbf16>
    %cst_147 = arith.constant 0.000000e+00 : bf16
    %416 = vector.broadcast %cst_147 : bf16 to vector<16x1xbf16>
    %417 = vector.extract_strided_slice %384 {offsets = [0, 1], sizes = [16, 3], strides = [1, 1]} : vector<16x4xbf16> to vector<16x3xbf16>
    %418 = tpu.concatenate %417, %416 in 1 : vector<16x3xbf16>, vector<16x1xbf16> -> vector<16x4xbf16>
    %cst_148 = arith.constant 0.000000e+00 : bf16
    %419 = vector.broadcast %cst_148 : bf16 to vector<16x4xbf16>
    %420 = vector.shape_cast %381 : vector<1x4xi1> to vector<1x4xi1>
    %421 = vector.broadcast %420 : vector<1x4xi1> to vector<16x4xi1>
    %422 = arith.select %421, %418, %419 : vector<16x4xi1>, vector<16x4xbf16>
    %cst_149 = arith.constant 0.000000e+00 : bf16
    %423 = vector.broadcast %cst_149 : bf16 to vector<16x2xbf16>
    %424 = vector.extract_strided_slice %384 {offsets = [0, 2], sizes = [16, 2], strides = [1, 1]} : vector<16x4xbf16> to vector<16x2xbf16>
    %425 = tpu.concatenate %424, %423 in 1 : vector<16x2xbf16>, vector<16x2xbf16> -> vector<16x4xbf16>
    %cst_150 = arith.constant 0.000000e+00 : bf16
    %426 = vector.broadcast %cst_150 : bf16 to vector<16x3xbf16>
    %427 = vector.extract_strided_slice %384 {offsets = [0, 3], sizes = [16, 1], strides = [1, 1]} : vector<16x4xbf16> to vector<16x1xbf16>
    %428 = tpu.concatenate %427, %426 in 1 : vector<16x1xbf16>, vector<16x3xbf16> -> vector<16x4xbf16>
    %cst_151 = arith.constant 0.000000e+00 : bf16
    %429 = vector.broadcast %cst_151 : bf16 to vector<16x4xbf16>
    %430 = vector.shape_cast %383 : vector<1x4xi1> to vector<1x4xi1>
    %431 = vector.broadcast %430 : vector<1x4xi1> to vector<16x4xi1>
    %432 = arith.select %431, %428, %429 : vector<16x4xi1>, vector<16x4xbf16>
    %c0_152 = arith.constant 0 : index
    %c0_153 = arith.constant 0 : index
    %433 = vector.load %arg8[%c0_152, %c0_153] : memref<16x4xbf16, #tpu.memory_space<vmem>>, vector<16x4xbf16>
    %cst_154 = arith.constant 0.000000e+00 : bf16
    %434 = vector.broadcast %cst_154 : bf16 to vector<16x3xbf16>
    %435 = vector.extract_strided_slice %433 {offsets = [0, 0], sizes = [16, 1], strides = [1, 1]} : vector<16x4xbf16> to vector<16x1xbf16>
    %436 = tpu.concatenate %434, %435 in 1 : vector<16x3xbf16>, vector<16x1xbf16> -> vector<16x4xbf16>
    %cst_155 = arith.constant 0.000000e+00 : bf16
    %437 = vector.broadcast %cst_155 : bf16 to vector<16x4xbf16>
    %438 = vector.shape_cast %381 : vector<1x4xi1> to vector<1x4xi1>
    %439 = vector.broadcast %438 : vector<1x4xi1> to vector<16x4xi1>
    %440 = arith.select %439, %436, %437 : vector<16x4xi1>, vector<16x4xbf16>
    %cst_156 = arith.constant 0.000000e+00 : bf16
    %441 = vector.broadcast %cst_156 : bf16 to vector<16x2xbf16>
    %442 = vector.extract_strided_slice %433 {offsets = [0, 0], sizes = [16, 2], strides = [1, 1]} : vector<16x4xbf16> to vector<16x2xbf16>
    %443 = tpu.concatenate %441, %442 in 1 : vector<16x2xbf16>, vector<16x2xbf16> -> vector<16x4xbf16>
    %cst_157 = arith.constant 0.000000e+00 : bf16
    %444 = vector.broadcast %cst_157 : bf16 to vector<16x1xbf16>
    %445 = vector.extract_strided_slice %433 {offsets = [0, 0], sizes = [16, 3], strides = [1, 1]} : vector<16x4xbf16> to vector<16x3xbf16>
    %446 = tpu.concatenate %444, %445 in 1 : vector<16x1xbf16>, vector<16x3xbf16> -> vector<16x4xbf16>
    %cst_158 = arith.constant 0.000000e+00 : bf16
    %447 = vector.broadcast %cst_158 : bf16 to vector<16x4xbf16>
    %448 = vector.shape_cast %383 : vector<1x4xi1> to vector<1x4xi1>
    %449 = vector.broadcast %448 : vector<1x4xi1> to vector<16x4xi1>
    %450 = arith.select %449, %446, %447 : vector<16x4xi1>, vector<16x4xbf16>
    %cst_159 = arith.constant 0.000000e+00 : bf16
    %451 = vector.broadcast %cst_159 : bf16 to vector<16x1xbf16>
    %452 = vector.extract_strided_slice %433 {offsets = [0, 0], sizes = [16, 3], strides = [1, 1]} : vector<16x4xbf16> to vector<16x3xbf16>
    %453 = tpu.concatenate %451, %452 in 1 : vector<16x1xbf16>, vector<16x3xbf16> -> vector<16x4xbf16>
    %cst_160 = arith.constant 0.000000e+00 : bf16
    %454 = vector.broadcast %cst_160 : bf16 to vector<16x4xbf16>
    %455 = vector.shape_cast %381 : vector<1x4xi1> to vector<1x4xi1>
    %456 = vector.broadcast %455 : vector<1x4xi1> to vector<16x4xi1>
    %457 = arith.select %456, %453, %454 : vector<16x4xi1>, vector<16x4xbf16>
    %cst_161 = arith.constant 0.000000e+00 : bf16
    %458 = vector.broadcast %cst_161 : bf16 to vector<16x1xbf16>
    %459 = vector.extract_strided_slice %433 {offsets = [0, 1], sizes = [16, 3], strides = [1, 1]} : vector<16x4xbf16> to vector<16x3xbf16>
    %460 = tpu.concatenate %459, %458 in 1 : vector<16x3xbf16>, vector<16x1xbf16> -> vector<16x4xbf16>
    %cst_162 = arith.constant 0.000000e+00 : bf16
    %461 = vector.broadcast %cst_162 : bf16 to vector<16x4xbf16>
    %462 = vector.shape_cast %383 : vector<1x4xi1> to vector<1x4xi1>
    %463 = vector.broadcast %462 : vector<1x4xi1> to vector<16x4xi1>
    %464 = arith.select %463, %460, %461 : vector<16x4xi1>, vector<16x4xbf16>
    %cst_163 = arith.constant 0.000000e+00 : bf16
    %465 = vector.broadcast %cst_163 : bf16 to vector<16x1xbf16>
    %466 = vector.extract_strided_slice %433 {offsets = [0, 1], sizes = [16, 3], strides = [1, 1]} : vector<16x4xbf16> to vector<16x3xbf16>
    %467 = tpu.concatenate %466, %465 in 1 : vector<16x3xbf16>, vector<16x1xbf16> -> vector<16x4xbf16>
    %cst_164 = arith.constant 0.000000e+00 : bf16
    %468 = vector.broadcast %cst_164 : bf16 to vector<16x4xbf16>
    %469 = vector.shape_cast %381 : vector<1x4xi1> to vector<1x4xi1>
    %470 = vector.broadcast %469 : vector<1x4xi1> to vector<16x4xi1>
    %471 = arith.select %470, %467, %468 : vector<16x4xi1>, vector<16x4xbf16>
    %cst_165 = arith.constant 0.000000e+00 : bf16
    %472 = vector.broadcast %cst_165 : bf16 to vector<16x2xbf16>
    %473 = vector.extract_strided_slice %433 {offsets = [0, 2], sizes = [16, 2], strides = [1, 1]} : vector<16x4xbf16> to vector<16x2xbf16>
    %474 = tpu.concatenate %473, %472 in 1 : vector<16x2xbf16>, vector<16x2xbf16> -> vector<16x4xbf16>
    %cst_166 = arith.constant 0.000000e+00 : bf16
    %475 = vector.broadcast %cst_166 : bf16 to vector<16x3xbf16>
    %476 = vector.extract_strided_slice %433 {offsets = [0, 3], sizes = [16, 1], strides = [1, 1]} : vector<16x4xbf16> to vector<16x1xbf16>
    %477 = tpu.concatenate %476, %475 in 1 : vector<16x1xbf16>, vector<16x3xbf16> -> vector<16x4xbf16>
    %cst_167 = arith.constant 0.000000e+00 : bf16
    %478 = vector.broadcast %cst_167 : bf16 to vector<16x4xbf16>
    %479 = vector.shape_cast %383 : vector<1x4xi1> to vector<1x4xi1>
    %480 = vector.broadcast %479 : vector<1x4xi1> to vector<16x4xi1>
    %481 = arith.select %480, %477, %478 : vector<16x4xi1>, vector<16x4xbf16>
    %482 = tpu.concatenate %391, %394, %401, %408, %384, %415, %422, %425, %432, %440, %443, %450, %457, %433, %464, %471 in 0 : vector<16x4xbf16>, vector<16x4xbf16>, vector<16x4xbf16>, vector<16x4xbf16>, vector<16x4xbf16>, vector<16x4xbf16>, vector<16x4xbf16>, vector<16x4xbf16>, vector<16x4xbf16>, vector<16x4xbf16>, vector<16x4xbf16>, vector<16x4xbf16>, vector<16x4xbf16>, vector<16x4xbf16>, vector<16x4xbf16>, vector<16x4xbf16> -> vector<256x4xbf16>
    %483 = tpu.concatenate %474, %481 in 0 : vector<16x4xbf16>, vector<16x4xbf16> -> vector<32x4xbf16>
    %484 = tpu.concatenate %482, %483 in 0 : vector<256x4xbf16>, vector<32x4xbf16> -> vector<288x4xbf16>
    %c496 = arith.constant 496 : index
    %c0_168 = arith.constant 0 : index
    %485 = vector.load %arg2[%c496, %c0_168] : memref<992x288xbf16, #tpu.memory_space<vmem>>, vector<16x288xbf16>
    %cst_169 = arith.constant dense<0.000000e+00> : vector<16x4xf32>
    %486 = tpu.matmul %485, %484, %cst_169 {dimension_numbers = #tpu.dot_dimension_numbers<[1], [0], [0], [1], [0, 0, 1, 1], [], []>} : vector<16x288xbf16>, vector<288x4xbf16>, vector<16x4xf32> -> vector<16x4xf32>
    %c72 = arith.constant 72 : index
    %c0_170 = arith.constant 0 : index
    %487 = vector.load %arg3[%c72, %c0_170] : memref<144x1xf32, #tpu.memory_space<vmem>>, vector<16x1xf32>
    %488 = vector.broadcast %487 : vector<16x1xf32> to vector<16x4xf32>
    %489 = arith.addf %486, %488 : vector<16x4xf32>
    %cst_171 = arith.constant 0.000000e+00 : f32
    %490 = vector.broadcast %cst_171 : f32 to vector<16x4xf32>
    %491 = arith.maximumf %489, %490 : vector<16x4xf32>
    %492 = arith.truncf %491 : vector<16x4xf32> to vector<16x4xbf16>
    %c544 = arith.constant 544 : index
    %c0_172 = arith.constant 0 : index
    %493 = vector.load %arg2[%c544, %c0_172] : memref<992x288xbf16, #tpu.memory_space<vmem>>, vector<32x16xbf16>
    %cst_173 = arith.constant dense<0.000000e+00> : vector<32x4xf32>
    %494 = tpu.matmul %493, %492, %cst_173 {dimension_numbers = #tpu.dot_dimension_numbers<[1], [0], [0], [1], [0, 0, 1, 1], [], []>} : vector<32x16xbf16>, vector<16x4xbf16>, vector<32x4xf32> -> vector<32x4xf32>
    %495 = arith.truncf %494 : vector<32x4xf32> to vector<32x4xbf16>
    %c512 = arith.constant 512 : index
    %c0_174 = arith.constant 0 : index
    %496 = vector.load %arg2[%c512, %c0_174] : memref<992x288xbf16, #tpu.memory_space<vmem>>, vector<4x16xbf16>
    %497 = vector.extract_strided_slice %495 {offsets = [0, 0], sizes = [8, 4], strides = [1, 1]} : vector<32x4xbf16> to vector<8x4xbf16>
    %cst_175 = arith.constant dense<0.000000e+00> : vector<8x16xf32>
    %498 = tpu.matmul %497, %496, %cst_175 {dimension_numbers = #tpu.dot_dimension_numbers<[1], [0], [0], [1], [0, 0, 1, 1], [], []>} : vector<8x4xbf16>, vector<4x16xbf16>, vector<8x16xf32> -> vector<8x16xf32>
    %c520 = arith.constant 520 : index
    %c0_176 = arith.constant 0 : index
    %499 = vector.load %arg2[%c520, %c0_176] : memref<992x288xbf16, #tpu.memory_space<vmem>>, vector<4x16xbf16>
    %500 = vector.extract_strided_slice %495 {offsets = [8, 0], sizes = [8, 4], strides = [1, 1]} : vector<32x4xbf16> to vector<8x4xbf16>
    %cst_177 = arith.constant dense<0.000000e+00> : vector<8x16xf32>
    %501 = tpu.matmul %500, %499, %cst_177 {dimension_numbers = #tpu.dot_dimension_numbers<[1], [0], [0], [1], [0, 0, 1, 1], [], []>} : vector<8x4xbf16>, vector<4x16xbf16>, vector<8x16xf32> -> vector<8x16xf32>
    %502 = arith.addf %498, %501 : vector<8x16xf32>
    %c528 = arith.constant 528 : index
    %c0_178 = arith.constant 0 : index
    %503 = vector.load %arg2[%c528, %c0_178] : memref<992x288xbf16, #tpu.memory_space<vmem>>, vector<4x16xbf16>
    %504 = vector.extract_strided_slice %495 {offsets = [16, 0], sizes = [8, 4], strides = [1, 1]} : vector<32x4xbf16> to vector<8x4xbf16>
    %cst_179 = arith.constant dense<0.000000e+00> : vector<8x16xf32>
    %505 = tpu.matmul %504, %503, %cst_179 {dimension_numbers = #tpu.dot_dimension_numbers<[1], [0], [0], [1], [0, 0, 1, 1], [], []>} : vector<8x4xbf16>, vector<4x16xbf16>, vector<8x16xf32> -> vector<8x16xf32>
    %506 = arith.addf %502, %505 : vector<8x16xf32>
    %c536 = arith.constant 536 : index
    %c0_180 = arith.constant 0 : index
    %507 = vector.load %arg2[%c536, %c0_180] : memref<992x288xbf16, #tpu.memory_space<vmem>>, vector<4x16xbf16>
    %508 = vector.extract_strided_slice %495 {offsets = [24, 0], sizes = [8, 4], strides = [1, 1]} : vector<32x4xbf16> to vector<8x4xbf16>
    %cst_181 = arith.constant dense<0.000000e+00> : vector<8x16xf32>
    %509 = tpu.matmul %508, %507, %cst_181 {dimension_numbers = #tpu.dot_dimension_numbers<[1], [0], [0], [1], [0, 0, 1, 1], [], []>} : vector<8x4xbf16>, vector<4x16xbf16>, vector<8x16xf32> -> vector<8x16xf32>
    %510 = arith.addf %506, %509 : vector<8x16xf32>
    %c88 = arith.constant 88 : index
    %c0_182 = arith.constant 0 : index
    %511 = vector.load %arg3[%c88, %c0_182] : memref<144x1xf32, #tpu.memory_space<vmem>>, vector<8x1xf32>
    %512 = vector.broadcast %511 : vector<8x1xf32> to vector<8x16xf32>
    %513 = arith.addf %510, %512 : vector<8x16xf32>
    %514 = tpu.iota {dimensions = array<i32: 1>} : vector<1x16xi32>
    %c4_i32_183 = arith.constant 4 : i32
    %c0_i32_184 = arith.constant 0 : i32
    %515 = arith.cmpi eq, %c4_i32_183, %c0_i32_184 : i32
    %c1_i32_185 = arith.constant 1 : i32
    %516 = arith.select %515, %c1_i32_185, %c4_i32_183 : i32
    %517 = vector.broadcast %516 : i32 to vector<1x16xi32>
    %518 = arith.remsi %514, %517 : vector<1x16xi32>
    %c0_i32_186 = arith.constant 0 : i32
    %519 = vector.broadcast %c0_i32_186 : i32 to vector<1x16xi32>
    %520 = arith.cmpi ne, %518, %519 : vector<1x16xi32>
    %c0_i32_187 = arith.constant 0 : i32
    %521 = vector.broadcast %c0_i32_187 : i32 to vector<1x16xi32>
    %522 = arith.cmpi slt, %518, %521 : vector<1x16xi32>
    %c0_i32_188 = arith.constant 0 : i32
    %523 = arith.cmpi slt, %516, %c0_i32_188 : i32
    %524 = vector.broadcast %523 : i1 to vector<1x16xi1>
    %525 = vector.broadcast %524 : vector<1x16xi1> to vector<1x16xi1>
    %526 = arith.xori %522, %525 : vector<1x16xi1>
    %527 = arith.andi %526, %520 : vector<1x16xi1>
    %528 = vector.broadcast %516 : i32 to vector<1x16xi32>
    %529 = arith.addi %518, %528 : vector<1x16xi32>
    %530 = arith.select %527, %529, %518 : vector<1x16xi1>, vector<1x16xi32>
    %c1_i32_189 = arith.constant 1 : i32
    %531 = vector.broadcast %c1_i32_189 : i32 to vector<1x16xi32>
    %532 = arith.cmpi sge, %530, %531 : vector<1x16xi32>
    %c3_i32_190 = arith.constant 3 : i32
    %533 = vector.broadcast %c3_i32_190 : i32 to vector<1x16xi32>
    %534 = arith.cmpi slt, %530, %533 : vector<1x16xi32>
    %535 = arith.truncf %513 : vector<8x16xf32> to vector<8x16xbf16>
    %cst_191 = arith.constant 0.000000e+00 : bf16
    %536 = vector.broadcast %cst_191 : bf16 to vector<8x5xbf16>
    %537 = vector.extract_strided_slice %535 {offsets = [0, 0], sizes = [8, 11], strides = [1, 1]} : vector<8x16xbf16> to vector<8x11xbf16>
    %538 = tpu.concatenate %536, %537 in 1 : vector<8x5xbf16>, vector<8x11xbf16> -> vector<8x16xbf16>
    %cst_192 = arith.constant 0.000000e+00 : bf16
    %539 = vector.broadcast %cst_192 : bf16 to vector<8x16xbf16>
    %540 = vector.shape_cast %532 : vector<1x16xi1> to vector<1x16xi1>
    %541 = vector.broadcast %540 : vector<1x16xi1> to vector<8x16xi1>
    %542 = arith.select %541, %538, %539 : vector<8x16xi1>, vector<8x16xbf16>
    %cst_193 = arith.constant 0.000000e+00 : bf16
    %543 = vector.broadcast %cst_193 : bf16 to vector<8x4xbf16>
    %544 = vector.extract_strided_slice %535 {offsets = [0, 0], sizes = [8, 12], strides = [1, 1]} : vector<8x16xbf16> to vector<8x12xbf16>
    %545 = tpu.concatenate %543, %544 in 1 : vector<8x4xbf16>, vector<8x12xbf16> -> vector<8x16xbf16>
    %cst_194 = arith.constant 0.000000e+00 : bf16
    %546 = vector.broadcast %cst_194 : bf16 to vector<8x3xbf16>
    %547 = vector.extract_strided_slice %535 {offsets = [0, 0], sizes = [8, 13], strides = [1, 1]} : vector<8x16xbf16> to vector<8x13xbf16>
    %548 = tpu.concatenate %546, %547 in 1 : vector<8x3xbf16>, vector<8x13xbf16> -> vector<8x16xbf16>
    %cst_195 = arith.constant 0.000000e+00 : bf16
    %549 = vector.broadcast %cst_195 : bf16 to vector<8x16xbf16>
    %550 = vector.shape_cast %534 : vector<1x16xi1> to vector<1x16xi1>
    %551 = vector.broadcast %550 : vector<1x16xi1> to vector<8x16xi1>
    %552 = arith.select %551, %548, %549 : vector<8x16xi1>, vector<8x16xbf16>
    %cst_196 = arith.constant 0.000000e+00 : bf16
    %553 = vector.broadcast %cst_196 : bf16 to vector<8x1xbf16>
    %554 = vector.extract_strided_slice %535 {offsets = [0, 0], sizes = [8, 15], strides = [1, 1]} : vector<8x16xbf16> to vector<8x15xbf16>
    %555 = tpu.concatenate %553, %554 in 1 : vector<8x1xbf16>, vector<8x15xbf16> -> vector<8x16xbf16>
    %cst_197 = arith.constant 0.000000e+00 : bf16
    %556 = vector.broadcast %cst_197 : bf16 to vector<8x16xbf16>
    %557 = vector.shape_cast %532 : vector<1x16xi1> to vector<1x16xi1>
    %558 = vector.broadcast %557 : vector<1x16xi1> to vector<8x16xi1>
    %559 = arith.select %558, %555, %556 : vector<8x16xi1>, vector<8x16xbf16>
    %cst_198 = arith.constant 0.000000e+00 : bf16
    %560 = vector.broadcast %cst_198 : bf16 to vector<8x1xbf16>
    %561 = vector.extract_strided_slice %535 {offsets = [0, 1], sizes = [8, 15], strides = [1, 1]} : vector<8x16xbf16> to vector<8x15xbf16>
    %562 = tpu.concatenate %561, %560 in 1 : vector<8x15xbf16>, vector<8x1xbf16> -> vector<8x16xbf16>
    %cst_199 = arith.constant 0.000000e+00 : bf16
    %563 = vector.broadcast %cst_199 : bf16 to vector<8x16xbf16>
    %564 = vector.shape_cast %534 : vector<1x16xi1> to vector<1x16xi1>
    %565 = vector.broadcast %564 : vector<1x16xi1> to vector<8x16xi1>
    %566 = arith.select %565, %562, %563 : vector<8x16xi1>, vector<8x16xbf16>
    %cst_200 = arith.constant 0.000000e+00 : bf16
    %567 = vector.broadcast %cst_200 : bf16 to vector<8x3xbf16>
    %568 = vector.extract_strided_slice %535 {offsets = [0, 3], sizes = [8, 13], strides = [1, 1]} : vector<8x16xbf16> to vector<8x13xbf16>
    %569 = tpu.concatenate %568, %567 in 1 : vector<8x13xbf16>, vector<8x3xbf16> -> vector<8x16xbf16>
    %cst_201 = arith.constant 0.000000e+00 : bf16
    %570 = vector.broadcast %cst_201 : bf16 to vector<8x16xbf16>
    %571 = vector.shape_cast %532 : vector<1x16xi1> to vector<1x16xi1>
    %572 = vector.broadcast %571 : vector<1x16xi1> to vector<8x16xi1>
    %573 = arith.select %572, %569, %570 : vector<8x16xi1>, vector<8x16xbf16>
    %cst_202 = arith.constant 0.000000e+00 : bf16
    %574 = vector.broadcast %cst_202 : bf16 to vector<8x4xbf16>
    %575 = vector.extract_strided_slice %535 {offsets = [0, 4], sizes = [8, 12], strides = [1, 1]} : vector<8x16xbf16> to vector<8x12xbf16>
    %576 = tpu.concatenate %575, %574 in 1 : vector<8x12xbf16>, vector<8x4xbf16> -> vector<8x16xbf16>
    %cst_203 = arith.constant 0.000000e+00 : bf16
    %577 = vector.broadcast %cst_203 : bf16 to vector<8x5xbf16>
    %578 = vector.extract_strided_slice %535 {offsets = [0, 5], sizes = [8, 11], strides = [1, 1]} : vector<8x16xbf16> to vector<8x11xbf16>
    %579 = tpu.concatenate %578, %577 in 1 : vector<8x11xbf16>, vector<8x5xbf16> -> vector<8x16xbf16>
    %cst_204 = arith.constant 0.000000e+00 : bf16
    %580 = vector.broadcast %cst_204 : bf16 to vector<8x16xbf16>
    %581 = vector.shape_cast %534 : vector<1x16xi1> to vector<1x16xi1>
    %582 = vector.broadcast %581 : vector<1x16xi1> to vector<8x16xi1>
    %583 = arith.select %582, %579, %580 : vector<8x16xi1>, vector<8x16xbf16>
    %c0_205 = arith.constant 0 : index
    %c0_206 = arith.constant 0 : index
    %584 = vector.load %arg7[%c0_205, %c0_206] : memref<8x16xbf16, #tpu.memory_space<vmem>>, vector<8x16xbf16>
    %cst_207 = arith.constant 0.000000e+00 : bf16
    %585 = vector.broadcast %cst_207 : bf16 to vector<8x5xbf16>
    %586 = vector.extract_strided_slice %584 {offsets = [0, 0], sizes = [8, 11], strides = [1, 1]} : vector<8x16xbf16> to vector<8x11xbf16>
    %587 = tpu.concatenate %585, %586 in 1 : vector<8x5xbf16>, vector<8x11xbf16> -> vector<8x16xbf16>
    %cst_208 = arith.constant 0.000000e+00 : bf16
    %588 = vector.broadcast %cst_208 : bf16 to vector<8x16xbf16>
    %589 = vector.shape_cast %532 : vector<1x16xi1> to vector<1x16xi1>
    %590 = vector.broadcast %589 : vector<1x16xi1> to vector<8x16xi1>
    %591 = arith.select %590, %587, %588 : vector<8x16xi1>, vector<8x16xbf16>
    %cst_209 = arith.constant 0.000000e+00 : bf16
    %592 = vector.broadcast %cst_209 : bf16 to vector<8x4xbf16>
    %593 = vector.extract_strided_slice %584 {offsets = [0, 0], sizes = [8, 12], strides = [1, 1]} : vector<8x16xbf16> to vector<8x12xbf16>
    %594 = tpu.concatenate %592, %593 in 1 : vector<8x4xbf16>, vector<8x12xbf16> -> vector<8x16xbf16>
    %cst_210 = arith.constant 0.000000e+00 : bf16
    %595 = vector.broadcast %cst_210 : bf16 to vector<8x3xbf16>
    %596 = vector.extract_strided_slice %584 {offsets = [0, 0], sizes = [8, 13], strides = [1, 1]} : vector<8x16xbf16> to vector<8x13xbf16>
    %597 = tpu.concatenate %595, %596 in 1 : vector<8x3xbf16>, vector<8x13xbf16> -> vector<8x16xbf16>
    %cst_211 = arith.constant 0.000000e+00 : bf16
    %598 = vector.broadcast %cst_211 : bf16 to vector<8x16xbf16>
    %599 = vector.shape_cast %534 : vector<1x16xi1> to vector<1x16xi1>
    %600 = vector.broadcast %599 : vector<1x16xi1> to vector<8x16xi1>
    %601 = arith.select %600, %597, %598 : vector<8x16xi1>, vector<8x16xbf16>
    %cst_212 = arith.constant 0.000000e+00 : bf16
    %602 = vector.broadcast %cst_212 : bf16 to vector<8x1xbf16>
    %603 = vector.extract_strided_slice %584 {offsets = [0, 0], sizes = [8, 15], strides = [1, 1]} : vector<8x16xbf16> to vector<8x15xbf16>
    %604 = tpu.concatenate %602, %603 in 1 : vector<8x1xbf16>, vector<8x15xbf16> -> vector<8x16xbf16>
    %cst_213 = arith.constant 0.000000e+00 : bf16
    %605 = vector.broadcast %cst_213 : bf16 to vector<8x16xbf16>
    %606 = vector.shape_cast %532 : vector<1x16xi1> to vector<1x16xi1>
    %607 = vector.broadcast %606 : vector<1x16xi1> to vector<8x16xi1>
    %608 = arith.select %607, %604, %605 : vector<8x16xi1>, vector<8x16xbf16>
    %cst_214 = arith.constant 0.000000e+00 : bf16
    %609 = vector.broadcast %cst_214 : bf16 to vector<8x1xbf16>
    %610 = vector.extract_strided_slice %584 {offsets = [0, 1], sizes = [8, 15], strides = [1, 1]} : vector<8x16xbf16> to vector<8x15xbf16>
    %611 = tpu.concatenate %610, %609 in 1 : vector<8x15xbf16>, vector<8x1xbf16> -> vector<8x16xbf16>
    %cst_215 = arith.constant 0.000000e+00 : bf16
    %612 = vector.broadcast %cst_215 : bf16 to vector<8x16xbf16>
    %613 = vector.shape_cast %534 : vector<1x16xi1> to vector<1x16xi1>
    %614 = vector.broadcast %613 : vector<1x16xi1> to vector<8x16xi1>
    %615 = arith.select %614, %611, %612 : vector<8x16xi1>, vector<8x16xbf16>
    %cst_216 = arith.constant 0.000000e+00 : bf16
    %616 = vector.broadcast %cst_216 : bf16 to vector<8x3xbf16>
    %617 = vector.extract_strided_slice %584 {offsets = [0, 3], sizes = [8, 13], strides = [1, 1]} : vector<8x16xbf16> to vector<8x13xbf16>
    %618 = tpu.concatenate %617, %616 in 1 : vector<8x13xbf16>, vector<8x3xbf16> -> vector<8x16xbf16>
    %cst_217 = arith.constant 0.000000e+00 : bf16
    %619 = vector.broadcast %cst_217 : bf16 to vector<8x16xbf16>
    %620 = vector.shape_cast %532 : vector<1x16xi1> to vector<1x16xi1>
    %621 = vector.broadcast %620 : vector<1x16xi1> to vector<8x16xi1>
    %622 = arith.select %621, %618, %619 : vector<8x16xi1>, vector<8x16xbf16>
    %cst_218 = arith.constant 0.000000e+00 : bf16
    %623 = vector.broadcast %cst_218 : bf16 to vector<8x4xbf16>
    %624 = vector.extract_strided_slice %584 {offsets = [0, 4], sizes = [8, 12], strides = [1, 1]} : vector<8x16xbf16> to vector<8x12xbf16>
    %625 = tpu.concatenate %624, %623 in 1 : vector<8x12xbf16>, vector<8x4xbf16> -> vector<8x16xbf16>
    %cst_219 = arith.constant 0.000000e+00 : bf16
    %626 = vector.broadcast %cst_219 : bf16 to vector<8x5xbf16>
    %627 = vector.extract_strided_slice %584 {offsets = [0, 5], sizes = [8, 11], strides = [1, 1]} : vector<8x16xbf16> to vector<8x11xbf16>
    %628 = tpu.concatenate %627, %626 in 1 : vector<8x11xbf16>, vector<8x5xbf16> -> vector<8x16xbf16>
    %cst_220 = arith.constant 0.000000e+00 : bf16
    %629 = vector.broadcast %cst_220 : bf16 to vector<8x16xbf16>
    %630 = vector.shape_cast %534 : vector<1x16xi1> to vector<1x16xi1>
    %631 = vector.broadcast %630 : vector<1x16xi1> to vector<8x16xi1>
    %632 = arith.select %631, %628, %629 : vector<8x16xi1>, vector<8x16xbf16>
    %633 = tpu.concatenate %542, %545, %552, %559, %535, %566, %573, %576, %583, %591, %594, %601, %608, %584, %615, %622 in 0 : vector<8x16xbf16>, vector<8x16xbf16>, vector<8x16xbf16>, vector<8x16xbf16>, vector<8x16xbf16>, vector<8x16xbf16>, vector<8x16xbf16>, vector<8x16xbf16>, vector<8x16xbf16>, vector<8x16xbf16>, vector<8x16xbf16>, vector<8x16xbf16>, vector<8x16xbf16>, vector<8x16xbf16>, vector<8x16xbf16>, vector<8x16xbf16> -> vector<128x16xbf16>
    %634 = tpu.concatenate %625, %632 in 0 : vector<8x16xbf16>, vector<8x16xbf16> -> vector<16x16xbf16>
    %635 = tpu.concatenate %633, %634 in 0 : vector<128x16xbf16>, vector<16x16xbf16> -> vector<144x16xbf16>
    %c576 = arith.constant 576 : index
    %c0_221 = arith.constant 0 : index
    %636 = vector.load %arg2[%c576, %c0_221] : memref<992x288xbf16, #tpu.memory_space<vmem>>, vector<8x144xbf16>
    %cst_222 = arith.constant dense<0.000000e+00> : vector<8x16xf32>
    %637 = tpu.matmul %636, %635, %cst_222 {dimension_numbers = #tpu.dot_dimension_numbers<[1], [0], [0], [1], [0, 0, 1, 1], [], []>} : vector<8x144xbf16>, vector<144x16xbf16>, vector<8x16xf32> -> vector<8x16xf32>
    %c96 = arith.constant 96 : index
    %c0_223 = arith.constant 0 : index
    %638 = vector.load %arg3[%c96, %c0_223] : memref<144x1xf32, #tpu.memory_space<vmem>>, vector<8x1xf32>
    %639 = vector.broadcast %638 : vector<8x1xf32> to vector<8x16xf32>
    %640 = arith.addf %637, %639 : vector<8x16xf32>
    %cst_224 = arith.constant 0.000000e+00 : f32
    %641 = vector.broadcast %cst_224 : f32 to vector<8x16xf32>
    %642 = arith.maximumf %640, %641 : vector<8x16xf32>
    %643 = arith.truncf %642 : vector<8x16xf32> to vector<8x16xbf16>
    %c648 = arith.constant 648 : index
    %c0_225 = arith.constant 0 : index
    %644 = vector.load %arg2[%c648, %c0_225] : memref<992x288xbf16, #tpu.memory_space<vmem>>, vector<32x8xbf16>
    %cst_226 = arith.constant dense<0.000000e+00> : vector<32x16xf32>
    %645 = tpu.matmul %644, %643, %cst_226 {dimension_numbers = #tpu.dot_dimension_numbers<[1], [0], [0], [1], [0, 0, 1, 1], [], []>} : vector<32x8xbf16>, vector<8x16xbf16>, vector<32x16xf32> -> vector<32x16xf32>
    %646 = arith.truncf %645 : vector<32x16xf32> to vector<32x16xbf16>
    %c584 = arith.constant 584 : index
    %c0_227 = arith.constant 0 : index
    %647 = vector.load %arg2[%c584, %c0_227] : memref<992x288xbf16, #tpu.memory_space<vmem>>, vector<16x64xbf16>
    %648 = vector.extract_strided_slice %646 {offsets = [0, 0], sizes = [8, 16], strides = [1, 1]} : vector<32x16xbf16> to vector<8x16xbf16>
    %cst_228 = arith.constant dense<0.000000e+00> : vector<8x64xf32>
    %649 = tpu.matmul %648, %647, %cst_228 {dimension_numbers = #tpu.dot_dimension_numbers<[1], [0], [0], [1], [0, 0, 1, 1], [], []>} : vector<8x16xbf16>, vector<16x64xbf16>, vector<8x64xf32> -> vector<8x64xf32>
    %c600 = arith.constant 600 : index
    %c0_229 = arith.constant 0 : index
    %650 = vector.load %arg2[%c600, %c0_229] : memref<992x288xbf16, #tpu.memory_space<vmem>>, vector<16x64xbf16>
    %651 = vector.extract_strided_slice %646 {offsets = [8, 0], sizes = [8, 16], strides = [1, 1]} : vector<32x16xbf16> to vector<8x16xbf16>
    %cst_230 = arith.constant dense<0.000000e+00> : vector<8x64xf32>
    %652 = tpu.matmul %651, %650, %cst_230 {dimension_numbers = #tpu.dot_dimension_numbers<[1], [0], [0], [1], [0, 0, 1, 1], [], []>} : vector<8x16xbf16>, vector<16x64xbf16>, vector<8x64xf32> -> vector<8x64xf32>
    %653 = arith.addf %649, %652 : vector<8x64xf32>
    %c616 = arith.constant 616 : index
    %c0_231 = arith.constant 0 : index
    %654 = vector.load %arg2[%c616, %c0_231] : memref<992x288xbf16, #tpu.memory_space<vmem>>, vector<16x64xbf16>
    %655 = vector.extract_strided_slice %646 {offsets = [16, 0], sizes = [8, 16], strides = [1, 1]} : vector<32x16xbf16> to vector<8x16xbf16>
    %cst_232 = arith.constant dense<0.000000e+00> : vector<8x64xf32>
    %656 = tpu.matmul %655, %654, %cst_232 {dimension_numbers = #tpu.dot_dimension_numbers<[1], [0], [0], [1], [0, 0, 1, 1], [], []>} : vector<8x16xbf16>, vector<16x64xbf16>, vector<8x64xf32> -> vector<8x64xf32>
    %657 = arith.addf %653, %656 : vector<8x64xf32>
    %c632 = arith.constant 632 : index
    %c0_233 = arith.constant 0 : index
    %658 = vector.load %arg2[%c632, %c0_233] : memref<992x288xbf16, #tpu.memory_space<vmem>>, vector<16x64xbf16>
    %659 = vector.extract_strided_slice %646 {offsets = [24, 0], sizes = [8, 16], strides = [1, 1]} : vector<32x16xbf16> to vector<8x16xbf16>
    %cst_234 = arith.constant dense<0.000000e+00> : vector<8x64xf32>
    %660 = tpu.matmul %659, %658, %cst_234 {dimension_numbers = #tpu.dot_dimension_numbers<[1], [0], [0], [1], [0, 0, 1, 1], [], []>} : vector<8x16xbf16>, vector<16x64xbf16>, vector<8x64xf32> -> vector<8x64xf32>
    %661 = arith.addf %657, %660 : vector<8x64xf32>
    %c104 = arith.constant 104 : index
    %c0_235 = arith.constant 0 : index
    %662 = vector.load %arg3[%c104, %c0_235] : memref<144x1xf32, #tpu.memory_space<vmem>>, vector<8x1xf32>
    %663 = vector.broadcast %662 : vector<8x1xf32> to vector<8x64xf32>
    %664 = arith.addf %661, %663 : vector<8x64xf32>
    %665 = tpu.iota {dimensions = array<i32: 1>} : vector<1x64xi32>
    %c8_i32_236 = arith.constant 8 : i32
    %c0_i32_237 = arith.constant 0 : i32
    %666 = arith.cmpi eq, %c8_i32_236, %c0_i32_237 : i32
    %c1_i32_238 = arith.constant 1 : i32
    %667 = arith.select %666, %c1_i32_238, %c8_i32_236 : i32
    %668 = vector.broadcast %667 : i32 to vector<1x64xi32>
    %669 = arith.remsi %665, %668 : vector<1x64xi32>
    %c0_i32_239 = arith.constant 0 : i32
    %670 = vector.broadcast %c0_i32_239 : i32 to vector<1x64xi32>
    %671 = arith.cmpi ne, %669, %670 : vector<1x64xi32>
    %c0_i32_240 = arith.constant 0 : i32
    %672 = vector.broadcast %c0_i32_240 : i32 to vector<1x64xi32>
    %673 = arith.cmpi slt, %669, %672 : vector<1x64xi32>
    %c0_i32_241 = arith.constant 0 : i32
    %674 = arith.cmpi slt, %667, %c0_i32_241 : i32
    %675 = vector.broadcast %674 : i1 to vector<1x64xi1>
    %676 = vector.broadcast %675 : vector<1x64xi1> to vector<1x64xi1>
    %677 = arith.xori %673, %676 : vector<1x64xi1>
    %678 = arith.andi %677, %671 : vector<1x64xi1>
    %679 = vector.broadcast %667 : i32 to vector<1x64xi32>
    %680 = arith.addi %669, %679 : vector<1x64xi32>
    %681 = arith.select %678, %680, %669 : vector<1x64xi1>, vector<1x64xi32>
    %c1_i32_242 = arith.constant 1 : i32
    %682 = vector.broadcast %c1_i32_242 : i32 to vector<1x64xi32>
    %683 = arith.cmpi sge, %681, %682 : vector<1x64xi32>
    %c7_i32_243 = arith.constant 7 : i32
    %684 = vector.broadcast %c7_i32_243 : i32 to vector<1x64xi32>
    %685 = arith.cmpi slt, %681, %684 : vector<1x64xi32>
    %686 = arith.truncf %664 : vector<8x64xf32> to vector<8x64xbf16>
    %cst_244 = arith.constant 0.000000e+00 : bf16
    %687 = vector.broadcast %cst_244 : bf16 to vector<8x9xbf16>
    %688 = vector.extract_strided_slice %686 {offsets = [0, 0], sizes = [8, 55], strides = [1, 1]} : vector<8x64xbf16> to vector<8x55xbf16>
    %689 = tpu.concatenate %687, %688 in 1 : vector<8x9xbf16>, vector<8x55xbf16> -> vector<8x64xbf16>
    %cst_245 = arith.constant 0.000000e+00 : bf16
    %690 = vector.broadcast %cst_245 : bf16 to vector<8x64xbf16>
    %691 = vector.shape_cast %683 : vector<1x64xi1> to vector<1x64xi1>
    %692 = vector.broadcast %691 : vector<1x64xi1> to vector<8x64xi1>
    %693 = arith.select %692, %689, %690 : vector<8x64xi1>, vector<8x64xbf16>
    %cst_246 = arith.constant 0.000000e+00 : bf16
    %694 = vector.broadcast %cst_246 : bf16 to vector<8x8xbf16>
    %695 = vector.extract_strided_slice %686 {offsets = [0, 0], sizes = [8, 56], strides = [1, 1]} : vector<8x64xbf16> to vector<8x56xbf16>
    %696 = tpu.concatenate %694, %695 in 1 : vector<8x8xbf16>, vector<8x56xbf16> -> vector<8x64xbf16>
    %cst_247 = arith.constant 0.000000e+00 : bf16
    %697 = vector.broadcast %cst_247 : bf16 to vector<8x7xbf16>
    %698 = vector.extract_strided_slice %686 {offsets = [0, 0], sizes = [8, 57], strides = [1, 1]} : vector<8x64xbf16> to vector<8x57xbf16>
    %699 = tpu.concatenate %697, %698 in 1 : vector<8x7xbf16>, vector<8x57xbf16> -> vector<8x64xbf16>
    %cst_248 = arith.constant 0.000000e+00 : bf16
    %700 = vector.broadcast %cst_248 : bf16 to vector<8x64xbf16>
    %701 = vector.shape_cast %685 : vector<1x64xi1> to vector<1x64xi1>
    %702 = vector.broadcast %701 : vector<1x64xi1> to vector<8x64xi1>
    %703 = arith.select %702, %699, %700 : vector<8x64xi1>, vector<8x64xbf16>
    %cst_249 = arith.constant 0.000000e+00 : bf16
    %704 = vector.broadcast %cst_249 : bf16 to vector<8x1xbf16>
    %705 = vector.extract_strided_slice %686 {offsets = [0, 0], sizes = [8, 63], strides = [1, 1]} : vector<8x64xbf16> to vector<8x63xbf16>
    %706 = tpu.concatenate %704, %705 in 1 : vector<8x1xbf16>, vector<8x63xbf16> -> vector<8x64xbf16>
    %cst_250 = arith.constant 0.000000e+00 : bf16
    %707 = vector.broadcast %cst_250 : bf16 to vector<8x64xbf16>
    %708 = vector.shape_cast %683 : vector<1x64xi1> to vector<1x64xi1>
    %709 = vector.broadcast %708 : vector<1x64xi1> to vector<8x64xi1>
    %710 = arith.select %709, %706, %707 : vector<8x64xi1>, vector<8x64xbf16>
    %cst_251 = arith.constant 0.000000e+00 : bf16
    %711 = vector.broadcast %cst_251 : bf16 to vector<8x1xbf16>
    %712 = vector.extract_strided_slice %686 {offsets = [0, 1], sizes = [8, 63], strides = [1, 1]} : vector<8x64xbf16> to vector<8x63xbf16>
    %713 = tpu.concatenate %712, %711 in 1 : vector<8x63xbf16>, vector<8x1xbf16> -> vector<8x64xbf16>
    %cst_252 = arith.constant 0.000000e+00 : bf16
    %714 = vector.broadcast %cst_252 : bf16 to vector<8x64xbf16>
    %715 = vector.shape_cast %685 : vector<1x64xi1> to vector<1x64xi1>
    %716 = vector.broadcast %715 : vector<1x64xi1> to vector<8x64xi1>
    %717 = arith.select %716, %713, %714 : vector<8x64xi1>, vector<8x64xbf16>
    %cst_253 = arith.constant 0.000000e+00 : bf16
    %718 = vector.broadcast %cst_253 : bf16 to vector<8x7xbf16>
    %719 = vector.extract_strided_slice %686 {offsets = [0, 7], sizes = [8, 57], strides = [1, 1]} : vector<8x64xbf16> to vector<8x57xbf16>
    %720 = tpu.concatenate %719, %718 in 1 : vector<8x57xbf16>, vector<8x7xbf16> -> vector<8x64xbf16>
    %cst_254 = arith.constant 0.000000e+00 : bf16
    %721 = vector.broadcast %cst_254 : bf16 to vector<8x64xbf16>
    %722 = vector.shape_cast %683 : vector<1x64xi1> to vector<1x64xi1>
    %723 = vector.broadcast %722 : vector<1x64xi1> to vector<8x64xi1>
    %724 = arith.select %723, %720, %721 : vector<8x64xi1>, vector<8x64xbf16>
    %cst_255 = arith.constant 0.000000e+00 : bf16
    %725 = vector.broadcast %cst_255 : bf16 to vector<8x8xbf16>
    %726 = vector.extract_strided_slice %686 {offsets = [0, 8], sizes = [8, 56], strides = [1, 1]} : vector<8x64xbf16> to vector<8x56xbf16>
    %727 = tpu.concatenate %726, %725 in 1 : vector<8x56xbf16>, vector<8x8xbf16> -> vector<8x64xbf16>
    %cst_256 = arith.constant 0.000000e+00 : bf16
    %728 = vector.broadcast %cst_256 : bf16 to vector<8x9xbf16>
    %729 = vector.extract_strided_slice %686 {offsets = [0, 9], sizes = [8, 55], strides = [1, 1]} : vector<8x64xbf16> to vector<8x55xbf16>
    %730 = tpu.concatenate %729, %728 in 1 : vector<8x55xbf16>, vector<8x9xbf16> -> vector<8x64xbf16>
    %cst_257 = arith.constant 0.000000e+00 : bf16
    %731 = vector.broadcast %cst_257 : bf16 to vector<8x64xbf16>
    %732 = vector.shape_cast %685 : vector<1x64xi1> to vector<1x64xi1>
    %733 = vector.broadcast %732 : vector<1x64xi1> to vector<8x64xi1>
    %734 = arith.select %733, %730, %731 : vector<8x64xi1>, vector<8x64xbf16>
    %c0_258 = arith.constant 0 : index
    %c0_259 = arith.constant 0 : index
    %735 = vector.load %arg6[%c0_258, %c0_259] : memref<8x64xbf16, #tpu.memory_space<vmem>>, vector<8x64xbf16>
    %cst_260 = arith.constant 0.000000e+00 : bf16
    %736 = vector.broadcast %cst_260 : bf16 to vector<8x9xbf16>
    %737 = vector.extract_strided_slice %735 {offsets = [0, 0], sizes = [8, 55], strides = [1, 1]} : vector<8x64xbf16> to vector<8x55xbf16>
    %738 = tpu.concatenate %736, %737 in 1 : vector<8x9xbf16>, vector<8x55xbf16> -> vector<8x64xbf16>
    %cst_261 = arith.constant 0.000000e+00 : bf16
    %739 = vector.broadcast %cst_261 : bf16 to vector<8x64xbf16>
    %740 = vector.shape_cast %683 : vector<1x64xi1> to vector<1x64xi1>
    %741 = vector.broadcast %740 : vector<1x64xi1> to vector<8x64xi1>
    %742 = arith.select %741, %738, %739 : vector<8x64xi1>, vector<8x64xbf16>
    %cst_262 = arith.constant 0.000000e+00 : bf16
    %743 = vector.broadcast %cst_262 : bf16 to vector<8x8xbf16>
    %744 = vector.extract_strided_slice %735 {offsets = [0, 0], sizes = [8, 56], strides = [1, 1]} : vector<8x64xbf16> to vector<8x56xbf16>
    %745 = tpu.concatenate %743, %744 in 1 : vector<8x8xbf16>, vector<8x56xbf16> -> vector<8x64xbf16>
    %cst_263 = arith.constant 0.000000e+00 : bf16
    %746 = vector.broadcast %cst_263 : bf16 to vector<8x7xbf16>
    %747 = vector.extract_strided_slice %735 {offsets = [0, 0], sizes = [8, 57], strides = [1, 1]} : vector<8x64xbf16> to vector<8x57xbf16>
    %748 = tpu.concatenate %746, %747 in 1 : vector<8x7xbf16>, vector<8x57xbf16> -> vector<8x64xbf16>
    %cst_264 = arith.constant 0.000000e+00 : bf16
    %749 = vector.broadcast %cst_264 : bf16 to vector<8x64xbf16>
    %750 = vector.shape_cast %685 : vector<1x64xi1> to vector<1x64xi1>
    %751 = vector.broadcast %750 : vector<1x64xi1> to vector<8x64xi1>
    %752 = arith.select %751, %748, %749 : vector<8x64xi1>, vector<8x64xbf16>
    %cst_265 = arith.constant 0.000000e+00 : bf16
    %753 = vector.broadcast %cst_265 : bf16 to vector<8x1xbf16>
    %754 = vector.extract_strided_slice %735 {offsets = [0, 0], sizes = [8, 63], strides = [1, 1]} : vector<8x64xbf16> to vector<8x63xbf16>
    %755 = tpu.concatenate %753, %754 in 1 : vector<8x1xbf16>, vector<8x63xbf16> -> vector<8x64xbf16>
    %cst_266 = arith.constant 0.000000e+00 : bf16
    %756 = vector.broadcast %cst_266 : bf16 to vector<8x64xbf16>
    %757 = vector.shape_cast %683 : vector<1x64xi1> to vector<1x64xi1>
    %758 = vector.broadcast %757 : vector<1x64xi1> to vector<8x64xi1>
    %759 = arith.select %758, %755, %756 : vector<8x64xi1>, vector<8x64xbf16>
    %cst_267 = arith.constant 0.000000e+00 : bf16
    %760 = vector.broadcast %cst_267 : bf16 to vector<8x1xbf16>
    %761 = vector.extract_strided_slice %735 {offsets = [0, 1], sizes = [8, 63], strides = [1, 1]} : vector<8x64xbf16> to vector<8x63xbf16>
    %762 = tpu.concatenate %761, %760 in 1 : vector<8x63xbf16>, vector<8x1xbf16> -> vector<8x64xbf16>
    %cst_268 = arith.constant 0.000000e+00 : bf16
    %763 = vector.broadcast %cst_268 : bf16 to vector<8x64xbf16>
    %764 = vector.shape_cast %685 : vector<1x64xi1> to vector<1x64xi1>
    %765 = vector.broadcast %764 : vector<1x64xi1> to vector<8x64xi1>
    %766 = arith.select %765, %762, %763 : vector<8x64xi1>, vector<8x64xbf16>
    %cst_269 = arith.constant 0.000000e+00 : bf16
    %767 = vector.broadcast %cst_269 : bf16 to vector<8x7xbf16>
    %768 = vector.extract_strided_slice %735 {offsets = [0, 7], sizes = [8, 57], strides = [1, 1]} : vector<8x64xbf16> to vector<8x57xbf16>
    %769 = tpu.concatenate %768, %767 in 1 : vector<8x57xbf16>, vector<8x7xbf16> -> vector<8x64xbf16>
    %cst_270 = arith.constant 0.000000e+00 : bf16
    %770 = vector.broadcast %cst_270 : bf16 to vector<8x64xbf16>
    %771 = vector.shape_cast %683 : vector<1x64xi1> to vector<1x64xi1>
    %772 = vector.broadcast %771 : vector<1x64xi1> to vector<8x64xi1>
    %773 = arith.select %772, %769, %770 : vector<8x64xi1>, vector<8x64xbf16>
    %cst_271 = arith.constant 0.000000e+00 : bf16
    %774 = vector.broadcast %cst_271 : bf16 to vector<8x8xbf16>
    %775 = vector.extract_strided_slice %735 {offsets = [0, 8], sizes = [8, 56], strides = [1, 1]} : vector<8x64xbf16> to vector<8x56xbf16>
    %776 = tpu.concatenate %775, %774 in 1 : vector<8x56xbf16>, vector<8x8xbf16> -> vector<8x64xbf16>
    %cst_272 = arith.constant 0.000000e+00 : bf16
    %777 = vector.broadcast %cst_272 : bf16 to vector<8x9xbf16>
    %778 = vector.extract_strided_slice %735 {offsets = [0, 9], sizes = [8, 55], strides = [1, 1]} : vector<8x64xbf16> to vector<8x55xbf16>
    %779 = tpu.concatenate %778, %777 in 1 : vector<8x55xbf16>, vector<8x9xbf16> -> vector<8x64xbf16>
    %cst_273 = arith.constant 0.000000e+00 : bf16
    %780 = vector.broadcast %cst_273 : bf16 to vector<8x64xbf16>
    %781 = vector.shape_cast %685 : vector<1x64xi1> to vector<1x64xi1>
    %782 = vector.broadcast %781 : vector<1x64xi1> to vector<8x64xi1>
    %783 = arith.select %782, %779, %780 : vector<8x64xi1>, vector<8x64xbf16>
    %784 = tpu.concatenate %693, %696, %703, %710, %686, %717, %724, %727, %734, %742, %745, %752, %759, %735, %766, %773 in 0 : vector<8x64xbf16>, vector<8x64xbf16>, vector<8x64xbf16>, vector<8x64xbf16>, vector<8x64xbf16>, vector<8x64xbf16>, vector<8x64xbf16>, vector<8x64xbf16>, vector<8x64xbf16>, vector<8x64xbf16>, vector<8x64xbf16>, vector<8x64xbf16>, vector<8x64xbf16>, vector<8x64xbf16>, vector<8x64xbf16>, vector<8x64xbf16> -> vector<128x64xbf16>
    %785 = tpu.concatenate %776, %783 in 0 : vector<8x64xbf16>, vector<8x64xbf16> -> vector<16x64xbf16>
    %786 = tpu.concatenate %784, %785 in 0 : vector<128x64xbf16>, vector<16x64xbf16> -> vector<144x64xbf16>
    %c680 = arith.constant 680 : index
    %c0_274 = arith.constant 0 : index
    %787 = vector.load %arg2[%c680, %c0_274] : memref<992x288xbf16, #tpu.memory_space<vmem>>, vector<8x144xbf16>
    %cst_275 = arith.constant dense<0.000000e+00> : vector<8x64xf32>
    %788 = tpu.matmul %787, %786, %cst_275 {dimension_numbers = #tpu.dot_dimension_numbers<[1], [0], [0], [1], [0, 0, 1, 1], [], []>} : vector<8x144xbf16>, vector<144x64xbf16>, vector<8x64xf32> -> vector<8x64xf32>
    %c112 = arith.constant 112 : index
    %c0_276 = arith.constant 0 : index
    %789 = vector.load %arg3[%c112, %c0_276] : memref<144x1xf32, #tpu.memory_space<vmem>>, vector<8x1xf32>
    %790 = vector.broadcast %789 : vector<8x1xf32> to vector<8x64xf32>
    %791 = arith.addf %788, %790 : vector<8x64xf32>
    %cst_277 = arith.constant 0.000000e+00 : f32
    %792 = vector.broadcast %cst_277 : f32 to vector<8x64xf32>
    %793 = arith.maximumf %791, %792 : vector<8x64xf32>
    %794 = arith.truncf %793 : vector<8x64xf32> to vector<8x64xbf16>
    %c944 = arith.constant 944 : index
    %c0_278 = arith.constant 0 : index
    %795 = vector.load %arg2[%c944, %c0_278] : memref<992x288xbf16, #tpu.memory_space<vmem>>, vector<32x8xbf16>
    %cst_279 = arith.constant dense<0.000000e+00> : vector<32x64xf32>
    %796 = tpu.matmul %795, %794, %cst_279 {dimension_numbers = #tpu.dot_dimension_numbers<[1], [0], [0], [1], [0, 0, 1, 1], [], []>} : vector<32x8xbf16>, vector<8x64xbf16>, vector<32x64xf32> -> vector<32x64xf32>
    %797 = arith.truncf %796 : vector<32x64xf32> to vector<32x64xbf16>
    %c688 = arith.constant 688 : index
    %c0_280 = arith.constant 0 : index
    %798 = vector.load %arg2[%c688, %c0_280] : memref<992x288xbf16, #tpu.memory_space<vmem>>, vector<64x256xbf16>
    %799 = vector.extract_strided_slice %797 {offsets = [0, 0], sizes = [8, 64], strides = [1, 1]} : vector<32x64xbf16> to vector<8x64xbf16>
    %cst_281 = arith.constant dense<0.000000e+00> : vector<8x256xf32>
    %800 = tpu.matmul %799, %798, %cst_281 {dimension_numbers = #tpu.dot_dimension_numbers<[1], [0], [0], [1], [0, 0, 1, 1], [], []>} : vector<8x64xbf16>, vector<64x256xbf16>, vector<8x256xf32> -> vector<8x256xf32>
    %c752 = arith.constant 752 : index
    %c0_282 = arith.constant 0 : index
    %801 = vector.load %arg2[%c752, %c0_282] : memref<992x288xbf16, #tpu.memory_space<vmem>>, vector<64x256xbf16>
    %802 = vector.extract_strided_slice %797 {offsets = [8, 0], sizes = [8, 64], strides = [1, 1]} : vector<32x64xbf16> to vector<8x64xbf16>
    %cst_283 = arith.constant dense<0.000000e+00> : vector<8x256xf32>
    %803 = tpu.matmul %802, %801, %cst_283 {dimension_numbers = #tpu.dot_dimension_numbers<[1], [0], [0], [1], [0, 0, 1, 1], [], []>} : vector<8x64xbf16>, vector<64x256xbf16>, vector<8x256xf32> -> vector<8x256xf32>
    %804 = arith.addf %800, %803 : vector<8x256xf32>
    %c816 = arith.constant 816 : index
    %c0_284 = arith.constant 0 : index
    %805 = vector.load %arg2[%c816, %c0_284] : memref<992x288xbf16, #tpu.memory_space<vmem>>, vector<64x256xbf16>
    %806 = vector.extract_strided_slice %797 {offsets = [16, 0], sizes = [8, 64], strides = [1, 1]} : vector<32x64xbf16> to vector<8x64xbf16>
    %cst_285 = arith.constant dense<0.000000e+00> : vector<8x256xf32>
    %807 = tpu.matmul %806, %805, %cst_285 {dimension_numbers = #tpu.dot_dimension_numbers<[1], [0], [0], [1], [0, 0, 1, 1], [], []>} : vector<8x64xbf16>, vector<64x256xbf16>, vector<8x256xf32> -> vector<8x256xf32>
    %808 = arith.addf %804, %807 : vector<8x256xf32>
    %c880 = arith.constant 880 : index
    %c0_286 = arith.constant 0 : index
    %809 = vector.load %arg2[%c880, %c0_286] : memref<992x288xbf16, #tpu.memory_space<vmem>>, vector<64x256xbf16>
    %810 = vector.extract_strided_slice %797 {offsets = [24, 0], sizes = [8, 64], strides = [1, 1]} : vector<32x64xbf16> to vector<8x64xbf16>
    %cst_287 = arith.constant dense<0.000000e+00> : vector<8x256xf32>
    %811 = tpu.matmul %810, %809, %cst_287 {dimension_numbers = #tpu.dot_dimension_numbers<[1], [0], [0], [1], [0, 0, 1, 1], [], []>} : vector<8x64xbf16>, vector<64x256xbf16>, vector<8x256xf32> -> vector<8x256xf32>
    %812 = arith.addf %808, %811 : vector<8x256xf32>
    %c120 = arith.constant 120 : index
    %c0_288 = arith.constant 0 : index
    %813 = vector.load %arg3[%c120, %c0_288] : memref<144x1xf32, #tpu.memory_space<vmem>>, vector<8x1xf32>
    %814 = vector.broadcast %813 : vector<8x1xf32> to vector<8x256xf32>
    %815 = arith.addf %812, %814 : vector<8x256xf32>
    %816 = tpu.iota {dimensions = array<i32: 1>} : vector<1x256xi32>
    %c16_i32_289 = arith.constant 16 : i32
    %c0_i32_290 = arith.constant 0 : i32
    %817 = arith.cmpi eq, %c16_i32_289, %c0_i32_290 : i32
    %c1_i32_291 = arith.constant 1 : i32
    %818 = arith.select %817, %c1_i32_291, %c16_i32_289 : i32
    %819 = vector.broadcast %818 : i32 to vector<1x256xi32>
    %820 = arith.remsi %816, %819 : vector<1x256xi32>
    %c0_i32_292 = arith.constant 0 : i32
    %821 = vector.broadcast %c0_i32_292 : i32 to vector<1x256xi32>
    %822 = arith.cmpi ne, %820, %821 : vector<1x256xi32>
    %c0_i32_293 = arith.constant 0 : i32
    %823 = vector.broadcast %c0_i32_293 : i32 to vector<1x256xi32>
    %824 = arith.cmpi slt, %820, %823 : vector<1x256xi32>
    %c0_i32_294 = arith.constant 0 : i32
    %825 = arith.cmpi slt, %818, %c0_i32_294 : i32
    %826 = vector.broadcast %825 : i1 to vector<1x256xi1>
    %827 = vector.broadcast %826 : vector<1x256xi1> to vector<1x256xi1>
    %828 = arith.xori %824, %827 : vector<1x256xi1>
    %829 = arith.andi %828, %822 : vector<1x256xi1>
    %830 = vector.broadcast %818 : i32 to vector<1x256xi32>
    %831 = arith.addi %820, %830 : vector<1x256xi32>
    %832 = arith.select %829, %831, %820 : vector<1x256xi1>, vector<1x256xi32>
    %c1_i32_295 = arith.constant 1 : i32
    %833 = vector.broadcast %c1_i32_295 : i32 to vector<1x256xi32>
    %834 = arith.cmpi sge, %832, %833 : vector<1x256xi32>
    %c15_i32_296 = arith.constant 15 : i32
    %835 = vector.broadcast %c15_i32_296 : i32 to vector<1x256xi32>
    %836 = arith.cmpi slt, %832, %835 : vector<1x256xi32>
    %837 = arith.truncf %815 : vector<8x256xf32> to vector<8x256xbf16>
    %cst_297 = arith.constant 0.000000e+00 : bf16
    %838 = vector.broadcast %cst_297 : bf16 to vector<8x17xbf16>
    %839 = vector.extract_strided_slice %837 {offsets = [0, 0], sizes = [8, 239], strides = [1, 1]} : vector<8x256xbf16> to vector<8x239xbf16>
    %840 = tpu.concatenate %838, %839 in 1 : vector<8x17xbf16>, vector<8x239xbf16> -> vector<8x256xbf16>
    %cst_298 = arith.constant 0.000000e+00 : bf16
    %841 = vector.broadcast %cst_298 : bf16 to vector<8x256xbf16>
    %842 = vector.shape_cast %834 : vector<1x256xi1> to vector<1x256xi1>
    %843 = vector.broadcast %842 : vector<1x256xi1> to vector<8x256xi1>
    %844 = arith.select %843, %840, %841 : vector<8x256xi1>, vector<8x256xbf16>
    %cst_299 = arith.constant 0.000000e+00 : bf16
    %845 = vector.broadcast %cst_299 : bf16 to vector<8x16xbf16>
    %846 = vector.extract_strided_slice %837 {offsets = [0, 0], sizes = [8, 240], strides = [1, 1]} : vector<8x256xbf16> to vector<8x240xbf16>
    %847 = tpu.concatenate %845, %846 in 1 : vector<8x16xbf16>, vector<8x240xbf16> -> vector<8x256xbf16>
    %cst_300 = arith.constant 0.000000e+00 : bf16
    %848 = vector.broadcast %cst_300 : bf16 to vector<8x15xbf16>
    %849 = vector.extract_strided_slice %837 {offsets = [0, 0], sizes = [8, 241], strides = [1, 1]} : vector<8x256xbf16> to vector<8x241xbf16>
    %850 = tpu.concatenate %848, %849 in 1 : vector<8x15xbf16>, vector<8x241xbf16> -> vector<8x256xbf16>
    %cst_301 = arith.constant 0.000000e+00 : bf16
    %851 = vector.broadcast %cst_301 : bf16 to vector<8x256xbf16>
    %852 = vector.shape_cast %836 : vector<1x256xi1> to vector<1x256xi1>
    %853 = vector.broadcast %852 : vector<1x256xi1> to vector<8x256xi1>
    %854 = arith.select %853, %850, %851 : vector<8x256xi1>, vector<8x256xbf16>
    %cst_302 = arith.constant 0.000000e+00 : bf16
    %855 = vector.broadcast %cst_302 : bf16 to vector<8x1xbf16>
    %856 = vector.extract_strided_slice %837 {offsets = [0, 0], sizes = [8, 255], strides = [1, 1]} : vector<8x256xbf16> to vector<8x255xbf16>
    %857 = tpu.concatenate %855, %856 in 1 : vector<8x1xbf16>, vector<8x255xbf16> -> vector<8x256xbf16>
    %cst_303 = arith.constant 0.000000e+00 : bf16
    %858 = vector.broadcast %cst_303 : bf16 to vector<8x256xbf16>
    %859 = vector.shape_cast %834 : vector<1x256xi1> to vector<1x256xi1>
    %860 = vector.broadcast %859 : vector<1x256xi1> to vector<8x256xi1>
    %861 = arith.select %860, %857, %858 : vector<8x256xi1>, vector<8x256xbf16>
    %cst_304 = arith.constant 0.000000e+00 : bf16
    %862 = vector.broadcast %cst_304 : bf16 to vector<8x1xbf16>
    %863 = vector.extract_strided_slice %837 {offsets = [0, 1], sizes = [8, 255], strides = [1, 1]} : vector<8x256xbf16> to vector<8x255xbf16>
    %864 = tpu.concatenate %863, %862 in 1 : vector<8x255xbf16>, vector<8x1xbf16> -> vector<8x256xbf16>
    %cst_305 = arith.constant 0.000000e+00 : bf16
    %865 = vector.broadcast %cst_305 : bf16 to vector<8x256xbf16>
    %866 = vector.shape_cast %836 : vector<1x256xi1> to vector<1x256xi1>
    %867 = vector.broadcast %866 : vector<1x256xi1> to vector<8x256xi1>
    %868 = arith.select %867, %864, %865 : vector<8x256xi1>, vector<8x256xbf16>
    %cst_306 = arith.constant 0.000000e+00 : bf16
    %869 = vector.broadcast %cst_306 : bf16 to vector<8x15xbf16>
    %870 = vector.extract_strided_slice %837 {offsets = [0, 15], sizes = [8, 241], strides = [1, 1]} : vector<8x256xbf16> to vector<8x241xbf16>
    %871 = tpu.concatenate %870, %869 in 1 : vector<8x241xbf16>, vector<8x15xbf16> -> vector<8x256xbf16>
    %cst_307 = arith.constant 0.000000e+00 : bf16
    %872 = vector.broadcast %cst_307 : bf16 to vector<8x256xbf16>
    %873 = vector.shape_cast %834 : vector<1x256xi1> to vector<1x256xi1>
    %874 = vector.broadcast %873 : vector<1x256xi1> to vector<8x256xi1>
    %875 = arith.select %874, %871, %872 : vector<8x256xi1>, vector<8x256xbf16>
    %cst_308 = arith.constant 0.000000e+00 : bf16
    %876 = vector.broadcast %cst_308 : bf16 to vector<8x16xbf16>
    %877 = vector.extract_strided_slice %837 {offsets = [0, 16], sizes = [8, 240], strides = [1, 1]} : vector<8x256xbf16> to vector<8x240xbf16>
    %878 = tpu.concatenate %877, %876 in 1 : vector<8x240xbf16>, vector<8x16xbf16> -> vector<8x256xbf16>
    %cst_309 = arith.constant 0.000000e+00 : bf16
    %879 = vector.broadcast %cst_309 : bf16 to vector<8x17xbf16>
    %880 = vector.extract_strided_slice %837 {offsets = [0, 17], sizes = [8, 239], strides = [1, 1]} : vector<8x256xbf16> to vector<8x239xbf16>
    %881 = tpu.concatenate %880, %879 in 1 : vector<8x239xbf16>, vector<8x17xbf16> -> vector<8x256xbf16>
    %cst_310 = arith.constant 0.000000e+00 : bf16
    %882 = vector.broadcast %cst_310 : bf16 to vector<8x256xbf16>
    %883 = vector.shape_cast %836 : vector<1x256xi1> to vector<1x256xi1>
    %884 = vector.broadcast %883 : vector<1x256xi1> to vector<8x256xi1>
    %885 = arith.select %884, %881, %882 : vector<8x256xi1>, vector<8x256xbf16>
    %c0_311 = arith.constant 0 : index
    %c0_312 = arith.constant 0 : index
    %886 = vector.load %arg5[%c0_311, %c0_312] : memref<8x256xbf16, #tpu.memory_space<vmem>>, vector<8x256xbf16>
    %cst_313 = arith.constant 0.000000e+00 : bf16
    %887 = vector.broadcast %cst_313 : bf16 to vector<8x17xbf16>
    %888 = vector.extract_strided_slice %886 {offsets = [0, 0], sizes = [8, 239], strides = [1, 1]} : vector<8x256xbf16> to vector<8x239xbf16>
    %889 = tpu.concatenate %887, %888 in 1 : vector<8x17xbf16>, vector<8x239xbf16> -> vector<8x256xbf16>
    %cst_314 = arith.constant 0.000000e+00 : bf16
    %890 = vector.broadcast %cst_314 : bf16 to vector<8x256xbf16>
    %891 = vector.shape_cast %834 : vector<1x256xi1> to vector<1x256xi1>
    %892 = vector.broadcast %891 : vector<1x256xi1> to vector<8x256xi1>
    %893 = arith.select %892, %889, %890 : vector<8x256xi1>, vector<8x256xbf16>
    %cst_315 = arith.constant 0.000000e+00 : bf16
    %894 = vector.broadcast %cst_315 : bf16 to vector<8x16xbf16>
    %895 = vector.extract_strided_slice %886 {offsets = [0, 0], sizes = [8, 240], strides = [1, 1]} : vector<8x256xbf16> to vector<8x240xbf16>
    %896 = tpu.concatenate %894, %895 in 1 : vector<8x16xbf16>, vector<8x240xbf16> -> vector<8x256xbf16>
    %cst_316 = arith.constant 0.000000e+00 : bf16
    %897 = vector.broadcast %cst_316 : bf16 to vector<8x15xbf16>
    %898 = vector.extract_strided_slice %886 {offsets = [0, 0], sizes = [8, 241], strides = [1, 1]} : vector<8x256xbf16> to vector<8x241xbf16>
    %899 = tpu.concatenate %897, %898 in 1 : vector<8x15xbf16>, vector<8x241xbf16> -> vector<8x256xbf16>
    %cst_317 = arith.constant 0.000000e+00 : bf16
    %900 = vector.broadcast %cst_317 : bf16 to vector<8x256xbf16>
    %901 = vector.shape_cast %836 : vector<1x256xi1> to vector<1x256xi1>
    %902 = vector.broadcast %901 : vector<1x256xi1> to vector<8x256xi1>
    %903 = arith.select %902, %899, %900 : vector<8x256xi1>, vector<8x256xbf16>
    %cst_318 = arith.constant 0.000000e+00 : bf16
    %904 = vector.broadcast %cst_318 : bf16 to vector<8x1xbf16>
    %905 = vector.extract_strided_slice %886 {offsets = [0, 0], sizes = [8, 255], strides = [1, 1]} : vector<8x256xbf16> to vector<8x255xbf16>
    %906 = tpu.concatenate %904, %905 in 1 : vector<8x1xbf16>, vector<8x255xbf16> -> vector<8x256xbf16>
    %cst_319 = arith.constant 0.000000e+00 : bf16
    %907 = vector.broadcast %cst_319 : bf16 to vector<8x256xbf16>
    %908 = vector.shape_cast %834 : vector<1x256xi1> to vector<1x256xi1>
    %909 = vector.broadcast %908 : vector<1x256xi1> to vector<8x256xi1>
    %910 = arith.select %909, %906, %907 : vector<8x256xi1>, vector<8x256xbf16>
    %cst_320 = arith.constant 0.000000e+00 : bf16
    %911 = vector.broadcast %cst_320 : bf16 to vector<8x1xbf16>
    %912 = vector.extract_strided_slice %886 {offsets = [0, 1], sizes = [8, 255], strides = [1, 1]} : vector<8x256xbf16> to vector<8x255xbf16>
    %913 = tpu.concatenate %912, %911 in 1 : vector<8x255xbf16>, vector<8x1xbf16> -> vector<8x256xbf16>
    %cst_321 = arith.constant 0.000000e+00 : bf16
    %914 = vector.broadcast %cst_321 : bf16 to vector<8x256xbf16>
    %915 = vector.shape_cast %836 : vector<1x256xi1> to vector<1x256xi1>
    %916 = vector.broadcast %915 : vector<1x256xi1> to vector<8x256xi1>
    %917 = arith.select %916, %913, %914 : vector<8x256xi1>, vector<8x256xbf16>
    %cst_322 = arith.constant 0.000000e+00 : bf16
    %918 = vector.broadcast %cst_322 : bf16 to vector<8x15xbf16>
    %919 = vector.extract_strided_slice %886 {offsets = [0, 15], sizes = [8, 241], strides = [1, 1]} : vector<8x256xbf16> to vector<8x241xbf16>
    %920 = tpu.concatenate %919, %918 in 1 : vector<8x241xbf16>, vector<8x15xbf16> -> vector<8x256xbf16>
    %cst_323 = arith.constant 0.000000e+00 : bf16
    %921 = vector.broadcast %cst_323 : bf16 to vector<8x256xbf16>
    %922 = vector.shape_cast %834 : vector<1x256xi1> to vector<1x256xi1>
    %923 = vector.broadcast %922 : vector<1x256xi1> to vector<8x256xi1>
    %924 = arith.select %923, %920, %921 : vector<8x256xi1>, vector<8x256xbf16>
    %cst_324 = arith.constant 0.000000e+00 : bf16
    %925 = vector.broadcast %cst_324 : bf16 to vector<8x16xbf16>
    %926 = vector.extract_strided_slice %886 {offsets = [0, 16], sizes = [8, 240], strides = [1, 1]} : vector<8x256xbf16> to vector<8x240xbf16>
    %927 = tpu.concatenate %926, %925 in 1 : vector<8x240xbf16>, vector<8x16xbf16> -> vector<8x256xbf16>
    %cst_325 = arith.constant 0.000000e+00 : bf16
    %928 = vector.broadcast %cst_325 : bf16 to vector<8x17xbf16>
    %929 = vector.extract_strided_slice %886 {offsets = [0, 17], sizes = [8, 239], strides = [1, 1]} : vector<8x256xbf16> to vector<8x239xbf16>
    %930 = tpu.concatenate %929, %928 in 1 : vector<8x239xbf16>, vector<8x17xbf16> -> vector<8x256xbf16>
    %cst_326 = arith.constant 0.000000e+00 : bf16
    %931 = vector.broadcast %cst_326 : bf16 to vector<8x256xbf16>
    %932 = vector.shape_cast %836 : vector<1x256xi1> to vector<1x256xi1>
    %933 = vector.broadcast %932 : vector<1x256xi1> to vector<8x256xi1>
    %934 = arith.select %933, %930, %931 : vector<8x256xi1>, vector<8x256xbf16>
    %935 = tpu.concatenate %844, %847, %854, %861, %837, %868, %875, %878, %885, %893, %896, %903, %910, %886, %917, %924 in 0 : vector<8x256xbf16>, vector<8x256xbf16>, vector<8x256xbf16>, vector<8x256xbf16>, vector<8x256xbf16>, vector<8x256xbf16>, vector<8x256xbf16>, vector<8x256xbf16>, vector<8x256xbf16>, vector<8x256xbf16>, vector<8x256xbf16>, vector<8x256xbf16>, vector<8x256xbf16>, vector<8x256xbf16>, vector<8x256xbf16>, vector<8x256xbf16> -> vector<128x256xbf16>
    %936 = tpu.concatenate %927, %934 in 0 : vector<8x256xbf16>, vector<8x256xbf16> -> vector<16x256xbf16>
    %937 = tpu.concatenate %935, %936 in 0 : vector<128x256xbf16>, vector<16x256xbf16> -> vector<144x256xbf16>
    %c976 = arith.constant 976 : index
    %c0_327 = arith.constant 0 : index
    %938 = vector.load %arg2[%c976, %c0_327] : memref<992x288xbf16, #tpu.memory_space<vmem>>, vector<8x144xbf16>
    %cst_328 = arith.constant dense<0.000000e+00> : vector<8x256xf32>
    %939 = tpu.matmul %938, %937, %cst_328 {dimension_numbers = #tpu.dot_dimension_numbers<[1], [0], [0], [1], [0, 0, 1, 1], [], []>} : vector<8x144xbf16>, vector<144x256xbf16>, vector<8x256xf32> -> vector<8x256xf32>
    %c128 = arith.constant 128 : index
    %c0_329 = arith.constant 0 : index
    %940 = vector.load %arg3[%c128, %c0_329] : memref<144x1xf32, #tpu.memory_space<vmem>>, vector<8x1xf32>
    %941 = vector.broadcast %940 : vector<8x1xf32> to vector<8x256xf32>
    %942 = arith.addf %939, %941 : vector<8x256xf32>
    %cst_330 = arith.constant 0.000000e+00 : f32
    %943 = vector.broadcast %cst_330 : f32 to vector<8x256xf32>
    %944 = arith.maximumf %942, %943 : vector<8x256xf32>
    %945 = arith.truncf %944 : vector<8x256xf32> to vector<8x256xbf16>
    %c984 = arith.constant 984 : index
    %c0_331 = arith.constant 0 : index
    %946 = vector.load %arg2[%c984, %c0_331] : memref<992x288xbf16, #tpu.memory_space<vmem>>, vector<8x8xbf16>
    %cst_332 = arith.constant dense<0.000000e+00> : vector<8x256xf32>
    %947 = tpu.matmul %946, %945, %cst_332 {dimension_numbers = #tpu.dot_dimension_numbers<[1], [0], [0], [1], [0, 0, 1, 1], [], []>} : vector<8x8xbf16>, vector<8x256xbf16>, vector<8x256xf32> -> vector<8x256xf32>
    %c136 = arith.constant 136 : index
    %c0_333 = arith.constant 0 : index
    %948 = vector.load %arg3[%c136, %c0_333] : memref<144x1xf32, #tpu.memory_space<vmem>>, vector<8x1xf32>
    %949 = vector.broadcast %948 : vector<8x1xf32> to vector<8x256xf32>
    %950 = arith.addf %947, %949 : vector<8x256xf32>
    %c0_334 = arith.constant 0 : index
    %c0_335 = arith.constant 0 : index
    %c0_336 = arith.constant 0 : index
    %951 = vector.load %arg4[%c0_334, %c0_335, %c0_336] : memref<1x8x256xf32, #tpu.memory_space<vmem>>, vector<1x8x256xf32>
    %952 = vector.shape_cast %951 : vector<1x8x256xf32> to vector<8x256xf32>
    %953 = vector.shape_cast %950 : vector<8x256xf32> to vector<1x8x256xf32>
    tpu.vector_store %arg4[%c0_334, %c0_335, %c0_336], %953 {strides = array<i32>} : memref<1x8x256xf32, #tpu.memory_space<vmem>>, vector<1x8x256xf32>,
    return
  }
  func.func @transform_0(%arg0: i32) -> (i32, i32, i32) {
    %c0_i32 = arith.constant 0 : i32
    %c0_i32_0 = arith.constant 0 : i32
    %c0_i32_1 = arith.constant 0 : i32
    return %arg0, %c0_i32, %c0_i32_0 : i32, i32, i32
  }
  func.func @transform_1(%arg0: i32) -> (i32, i32) {
    %c0_i32 = arith.constant 0 : i32
    %c0_i32_0 = arith.constant 0 : i32
    %c0_i32_1 = arith.constant 0 : i32
    return %c0_i32, %c0_i32_0 : i32, i32
  }
  func.func @transform_2(%arg0: i32) -> (i32, i32) {
    %c0_i32 = arith.constant 0 : i32
    %c0_i32_0 = arith.constant 0 : i32
    %c0_i32_1 = arith.constant 0 : i32
    return %c0_i32, %c0_i32_0 : i32, i32
  }
  func.func @transform_3(%arg0: i32) -> (i32, i32, i32) {
    %c0_i32 = arith.constant 0 : i32
    %c0_i32_0 = arith.constant 0 : i32
    %c0_i32_1 = arith.constant 0 : i32
    return %arg0, %c0_i32, %c0_i32_0 : i32, i32, i32
  }
}

</mosaic_0001>

<llo_original>
// kernel: unet_forward.1
$region0: #{unet_forward.1}
  #allocation0 [shape = 'u32[]', space=smem, size = 0x4, offset = 0x4, fixed_abs, tag = 'smem constant byte address 0x4 - core index']
  #allocation1 [shape = 'u32[72,128]{1,0:T(1,128)}', space=vmem, size = 0x9000, scoped, tag = 'internal scratch']
  #allocation2 [shape = 'bf16[8,256]{1,0:T(8,128)(2,1)}', space=vmem, size = 0x1000, scoped, tag = 'scratch operand']
  #allocation3 [shape = 'bf16[8,64]{1,0:T(8,128)(2,1)}', space=vmem, size = 0x800, scoped, tag = 'scratch operand']
  #allocation4 [shape = 'bf16[8,16]{1,0:T(8,128)(2,1)}', space=vmem, size = 0x800, scoped, tag = 'scratch operand']
  #allocation5 [shape = 'bf16[16,4]{1,0:T(8,128)(2,1)}', space=vmem, size = 0x1000, scoped, tag = 'scratch operand']
  %s0 = inlined_call_operand.vmem [shape: f32[2,8,256], index: 0, kind: input, shape index: {}]
  %s1 = inlined_call_operand.vmem [shape: bf16[992,288], index: 1, kind: input, shape index: {}]
  %s2 = inlined_call_operand.vmem [shape: f32[144,1], index: 2, kind: input, shape index: {}]
  %s3 = inlined_call_operand.vmem [shape: f32[2,8,256], index: 3, kind: output, shape index: {}]
  %s4 = sld [smem:[#allocation0]]
  $region45: #{unet_forward.1} parent=0
    _
  %s6 = ssub.s32 1, %s4
  %s7 = scalar_select 0, %s6, %s4
  loop: start=0, step=1, limit=4
  $region2: #{unet_forward.1} parent=0 // loop_pre_header
    _
  $region3: #{unet_forward.1} parent=0 // loop_header
    %s9 = sphi 0, %s13
    %p10 = scmp.ge.s32.totalorder %s9, 4
    %s19 = sphi 0, %s21
    %s22 = sphi 0, %s19
    %s23 = sphi 0, %s22
    %s39 = sphi 0, %s23
    %s43 = sphi 0, %s43
    %s45 = sphi 0, %s43
    %s46 = sphi 0, %s45
    %s60 = sphi 0, %s46
    %s64 = sphi 0, %s64
    %s66 = sphi 0, %s64
    %s67 = sphi 0, %s66
    %s81 = sphi 0, %s67
    %s87 = sphi 0, %s89
    %s90 = sphi 0, %s87
    %s91 = sphi 0, %s90
    %s107 = sphi 0, %s91
  $region4: #{unet_forward.1} parent=0 // loop_header_branch
    %12 = sbr.rel (%p10) target = $region8
  $region5: #{unet_forward.1} parent=0 // loop_body
    %s14 = ssub.s32 %s9, 1
    %s15 = ssub.s32 %s9, 2
    %s16 = sadd.s32 %s9, 1
    %s17 = ssub.s32 %s9, %s16
    %p18 = scmp.eq.s32.totalorder %s17, 0
    %s20 = sadd.s32 %s19, 1
    %s21 = scalar_select %p18, %s19, %s20
    %p24 = pneg %p18
    %p25 = scmp.eq.s32.totalorder %s9, 1
    %p26 = por %p24, %p25
    %p27 = scmp.ne.s32.totalorder %s19, %s22
    %p28 = scmp.eq.s32.totalorder %s9, 0
    %p29 = por %p27, %p28
    %p30 = scmp.ne.s32.totalorder %s19, %s22
    %p31 = scmp.eq.s32.totalorder %s14, 1
    %p32 = por %p30, %p31
    %p33 = scmp.ne.s32.totalorder %s22, %s23
    %p34 = scmp.eq.s32.totalorder %s14, 0
    %p35 = por %p33, %p34
    %p36 = scmp.ne.s32.totalorder %s22, %s23
    %p37 = scmp.eq.s32.totalorder %s15, 1
    %p38 = por %p36, %p37
    %p40 = scmp.ne.s32.totalorder %s23, %s39
    %p41 = scmp.eq.s32.totalorder %s15, 0
    %p42 = por %p40, %p41
    %s44 = sadd.s32 %s43, 1
    %p47 = scmp.eq.s32.totalorder %s9, 1
    %p48 = scmp.ne.s32.totalorder %s43, %s45
    %p49 = scmp.eq.s32.totalorder %s9, 0
    %p50 = por %p48, %p49
    %p51 = scmp.ne.s32.totalorder %s43, %s45
    %p52 = scmp.eq.s32.totalorder %s14, 1
    %p53 = por %p51, %p52
    %p54 = scmp.ne.s32.totalorder %s45, %s46
    %p55 = scmp.eq.s32.totalorder %s14, 0
    %p56 = por %p54, %p55
    %p57 = scmp.ne.s32.totalorder %s45, %s46
    %p58 = scmp.eq.s32.totalorder %s15, 1
    %p59 = por %p57, %p58
    %p61 = scmp.ne.s32.totalorder %s46, %s60
    %p62 = scmp.eq.s32.totalorder %s15, 0
    %p63 = por %p61, %p62
    %s65 = sadd.s32 %s64, 1
    %p68 = scmp.eq.s32.totalorder %s9, 1
    %p69 = scmp.ne.s32.totalorder %s64, %s66
    %p70 = scmp.eq.s32.totalorder %s9, 0
    %p71 = por %p69, %p70
    %p72 = scmp.ne.s32.totalorder %s64, %s66
    %p73 = scmp.eq.s32.totalorder %s14, 1
    %p74 = por %p72, %p73
    %p75 = scmp.ne.s32.totalorder %s66, %s67
    %p76 = scmp.eq.s32.totalorder %s14, 0
    %p77 = por %p75, %p76
    %p78 = scmp.ne.s32.totalorder %s66, %s67
    %p79 = scmp.eq.s32.totalorder %s15, 1
    %p80 = por %p78, %p79
    %p82 = scmp.ne.s32.totalorder %s67, %s81
    %p83 = scmp.eq.s32.totalorder %s15, 0
    %p84 = por %p82, %p83
    %s85 = ssub.s32 %s9, %s16
    %p86 = scmp.eq.s32.totalorder %s85, 0
    %s88 = sadd.s32 %s87, 1
    %s89 = scalar_select %p86, %s87, %s88
    %p92 = pneg %p86
    %p93 = scmp.eq.s32.totalorder %s9, 1
    %p94 = por %p92, %p93
    %p95 = scmp.ne.s32.totalorder %s87, %s90
    %p96 = scmp.eq.s32.totalorder %s9, 0
    %p97 = por %p95, %p96
    %p98 = scmp.ne.s32.totalorder %s87, %s90
    %p99 = scmp.eq.s32.totalorder %s14, 1
    %p100 = por %p98, %p99
    %p101 = scmp.ne.s32.totalorder %s90, %s91
    %p102 = scmp.eq.s32.totalorder %s14, 0
    %p103 = por %p101, %p102
    %p104 = scmp.ne.s32.totalorder %s90, %s91
    %p105 = scmp.eq.s32.totalorder %s15, 1
    %p106 = por %p104, %p105
    %p108 = scmp.ne.s32.totalorder %s91, %s107
    %p109 = scmp.eq.s32.totalorder %s15, 0
    %p110 = por %p108, %p109
    %p111 = scmp.le.s32.totalorder 1, %s9
    %p112 = scmp.lt.s32.totalorder %s9, 3
    %p113 = pnand %p111, %p112
    %p114 = pneg %p113
    // Predicated region
    $region9: #{unet_forward.1} parent=5 // pred_check
      _
    $region10: #{unet_forward.1} parent=5 // pred_check_branch
      %116 = sbr.rel (%p113) target = $region12
    $region11: #{unet_forward.1} parent=5 // pred_region
      %s117 = ssub.s32 %s9, 1
      // Predicated region
      $region13: #{unet_forward.1} parent=11 // pred_check
        %p118 = pneg %p56
      $region14: #{unet_forward.1} parent=11 // pred_check_branch
        %120 = sbr.rel (%p118) target = $region16
      $region15: #{unet_forward.1} parent=11 // pred_region
        _
      $region16: #{unet_forward.1} parent=11 // pred_fallthru
        _
      // Predicated region
      $region17: #{unet_forward.1} parent=11 // pred_check
        %p121 = pneg %p77
      $region18: #{unet_forward.1} parent=11 // pred_check_branch
        %123 = sbr.rel (%p121) target = $region20
      $region19: #{unet_forward.1} parent=11 // pred_region
        _
      $region20: #{unet_forward.1} parent=11 // pred_fallthru
        _
    $region12: #{unet_forward.1} parent=5 // pred_fallthru
      _
    %p124 = scmp.lt.s32.totalorder %s9, 2
    // Predicated region
    $region21: #{unet_forward.1} parent=5 // pred_check
      %p125 = pneg %p124
    $region22: #{unet_forward.1} parent=5 // pred_check_branch
      %127 = sbr.rel (%p125) target = $region24
    $region23: #{unet_forward.1} parent=5 // pred_region
      // Predicated region
      $region25: #{unet_forward.1} parent=23 // pred_check
        %p128 = pneg %p29
      $region26: #{unet_forward.1} parent=23 // pred_check_branch
        %130 = sbr.rel (%p128) target = $region28
      $region27: #{unet_forward.1} parent=23 // pred_region
        %p131 = scmp.lt.s32.totalorder %s9, 1
        %s132 = scalar_select %p131, %s9, 1
        %s133 = smul.addr %s132, 2
        %s134 = smul.addr %s133, 8
        %s135 = scalar_lea.vmem %s0, %s134
      $region28: #{unet_forward.1} parent=23 // pred_fallthru
        _
    $region24: #{unet_forward.1} parent=5 // pred_fallthru
      _
    %p136 = scmp.le.s32.totalorder 1, %s9
    %p137 = scmp.lt.s32.totalorder %s9, 3
    %p138 = pnand %p136, %p137
    %p139 = pneg %p138
    // Predicated region
    $region29: #{unet_forward.1} parent=5 // pred_check
      _
    $region30: #{unet_forward.1} parent=5 // pred_check_branch
      %141 = sbr.rel (%p138) target = $region32
    $region31: #{unet_forward.1} parent=5 // pred_region
      %s142 = ssub.s32 %s9, 1
      %p143 = scmp.lt.s32.totalorder %s14, 1
      %s144 = scalar_select %p143, %s14, 1
      %s145 = smul.addr %s144, 2
      %s146 = smul.addr %s145, 8
      %s147 = scalar_lea.vmem %s0, %s146
      %p148 = pneg %p35
      %p149 = pneg %p32
      %p150 = pneg %p56
      %p151 = pneg %p53
      %p152 = pneg %p77
      %p153 = pneg %p74
      %p154 = pneg %p103
      %p155 = pneg %p100
      %p156 = scmp.lt.s32.totalorder %s14, 1
      %s157 = scalar_select %p156, %s14, 1
      %s158 = smul.addr %s157, 2
      %s159 = smul.addr %s158, 8
      %s160 = scalar_lea.vmem %s3, %s159
      %p161 = scmp.lt.s32.totalorder %s14, 1
      %s162 = scalar_select %p161, %s14, 1
      %s163 = smul.addr %s162, 2
      %s164 = smul.addr %s163, 8
      %s165 = scalar_lea.vmem %s0, %s164
      %p166 = scmp.lt.s32.totalorder %s14, 1
      %s167 = scalar_select %p166, %s14, 1
      %s168 = smul.addr %s167, 2
      %s169 = smul.addr %s168, 8
      %s170 = scalar_lea.vmem %s3, %s169
      %v174 = vld [vmem:[%s165] sm:$0xff]
      %v175 = vld [vmem:[%s165 + $0x8] sm:$0xff]
      %v176 = vlaneseq
      %v177 = vand.u32 %v176, 127
      %v178 = vadd.s32 %v177, 128
      %vm179 = vcmp.lt.s32.totalorder %v177, 0
      %v180 = vsub.s32 0, %v177
      %v181 = vsel %vm179, %v180, %v177
      %v182 = vshrl.u32 %v181, 4
      %v183 = vand.u32 %v181, 15
      %v184 = vsub.s32 0, %v183
      %v185 = vsel %vm179, %v184, %v183
      %vm186 = vcmp.lt.s32.totalorder %v178, 0
      %v187 = vsub.s32 0, %v178
      %v188 = vsel %vm186, %v187, %v178
      %v189 = vshrl.u32 %v188, 4
      %v190 = vand.u32 %v188, 15
      %v191 = vsub.s32 0, %v190
      %v192 = vsel %vm186, %v191, %v190
      %vm193 = vcmp.ne.s32.totalorder %v185, 0
      %vm194 = vcmp.ne.s32.totalorder %v192, 0
      %vm195 = vcmp.lt.s32.totalorder %v185, 0
      %vm196 = vcmp.lt.s32.totalorder %v192, 0
      %vm197 = vmand %vm195, %vm193
      %vm198 = vmand %vm196, %vm194
      %v199 = vadd.s32 %v185, 16
      %v200 = vadd.s32 %v192, 16
      %v201 = vsel %vm197, %v199, %v185
      %v202 = vsel %vm198, %v200, %v192
      %vm203 = vcmp.ge.s32.totalorder %v201, 1
      %vm204 = vcmp.ge.s32.totalorder %v202, 1
      %vm205 = vcmp.lt.s32.totalorder %v201, 15
      %vm206 = vcmp.lt.s32.totalorder %v202, 15
      %v207 = vpack.c.bf16 %v175, %v174
      %v209 = vunpack.c.l.b16 %v207
      %v210 = vunpack.c.h.b16 %v207
      %v211 = vpack.c.b16 %v209, %v209
      %v212 = vpack.c.b16 %v210, %v210
      %213 = vrot.lane.b32.xlu0 %v211, 17
      %v214 = vpop.permute.xlu0 %213
      %215 = vrot.lane.b32.xlu0 %v212, 17
      %v216 = vpop.permute.xlu0 %215
      %vm217 = vcmask 138240
      %v218 = vsel %vm217, %v214, %v216
      %vm220 = vcmask 138240
      %v223 = vsel %vm220, 0, %v214
      %v225 = vsel %vm203, 1, 0
      %v226 = vsel %vm204, 1, 0
      %vm227 = vcmp.eq.s32.totalorder %v225, 1
      %vm228 = vcmp.eq.s32.totalorder %v226, 1
      %vm229 = vmpackc.low %vm228, %vm227
      %v230 = vsel %vm229, 65537, 0
      %v231 = vperm.slane %v230, 0
      %v232 = vperm.slane %v230, 4
      %v233 = vunpack.c.l.b16 %v231
      %v234 = vunpack.c.h.b16 %v231
      %v235 = vunpack.c.l.b16 0
      %v236 = vunpack.c.h.b16 0
      %vm237 = vcmp.ne.s32.totalorder %v233, %v235
      %vm238 = vcmp.ne.s32.totalorder %v234, %v236
      %vm239 = vmpackc.low %vm238, %vm237
      %v240 = vunpack.c.l.b16 %v232
      %v241 = vunpack.c.h.b16 %v232
      %v242 = vunpack.c.l.b16 0
      %v243 = vunpack.c.h.b16 0
      %vm244 = vcmp.ne.s32.totalorder %v240, %v242
      %vm245 = vcmp.ne.s32.totalorder %v241, %v243
      %vm246 = vmpackc.low %vm245, %vm244
      %v247 = vsel %vm239, %v223, 0
      %v248 = vsel %vm246, %v218, 0
      %249 = vrot.lane.b32.xlu0 %v211, 16
      %v250 = vpop.permute.xlu0 %249
      %251 = vrot.lane.b32.xlu0 %v212, 16
      %v252 = vpop.permute.xlu0 %251
      %vm253 = vcmask 130048
      %v254 = vsel %vm253, %v250, %v252
      %vm255 = vcmask 130048
      %v257 = vsel %vm255, 0, %v250
      %258 = vrot.lane.b32.xlu0 %v211, 15
      %v259 = vpop.permute.xlu0 %258
      %260 = vrot.lane.b32.xlu0 %v212, 15
      %v261 = vpop.permute.xlu0 %260
      %vm262 = vcmask 121856
      %v263 = vsel %vm262, %v259, %v261
      %vm265 = vcmask 121856
      %v267 = vsel %vm265, 0, %v259
      %v269 = vsel %vm205, 1, 0
      %v270 = vsel %vm206, 1, 0
      %vm271 = vcmp.eq.s32.totalorder %v269, 1
      %vm272 = vcmp.eq.s32.totalorder %v270, 1
      %vm273 = vmpackc.low %vm272, %vm271
      %v274 = vsel %vm273, 65537, 0
      %v275 = vperm.slane %v274, 0
      %v276 = vperm.slane %v274, 4
      %v277 = vunpack.c.l.b16 %v275
      %v278 = vunpack.c.h.b16 %v275
      %v279 = vunpack.c.l.b16 0
      %v280 = vunpack.c.h.b16 0
      %vm281 = vcmp.ne.s32.totalorder %v277, %v279
      %vm282 = vcmp.ne.s32.totalorder %v278, %v280
      %vm283 = vmpackc.low %vm282, %vm281
      %v284 = vunpack.c.l.b16 %v276
      %v285 = vunpack.c.h.b16 %v276
      %v286 = vunpack.c.l.b16 0
      %v287 = vunpack.c.h.b16 0
      %vm288 = vcmp.ne.s32.totalorder %v284, %v286
      %vm289 = vcmp.ne.s32.totalorder %v285, %v287
      %vm290 = vmpackc.low %vm289, %vm288
      %v291 = vsel %vm283, %v267, 0
      %v292 = vsel %vm290, %v263, 0
      %293 = vrot.lane.b32.xlu0 %v211, 1
      %v294 = vpop.permute.xlu0 %293
      %295 = vrot.lane.b32.xlu0 %v212, 1
      %v296 = vpop.permute.xlu0 %295
      %vm297 = vcmask 7168
      %v298 = vsel %vm297, %v294, %v296
      %vm300 = vcmask 7168
      %v302 = vsel %vm300, 0, %v294
      %v304 = vsel %vm239, %v302, 0
      %v305 = vsel %vm246, %v298, 0
      %306 = vrot.lane.b32.xlu0 %v211, 127
      %v307 = vpop.permute.xlu0 %306
      %308 = vrot.lane.b32.xlu0 %v212, 127
      %v309 = vpop.permute.xlu0 %308
      %vm310 = vcmask 1039360
      %v311 = vsel %vm310, %v307, %v309
      %vm313 = vcmask 1039360
      %v315 = vsel %vm313, %v309, 0
      %v317 = vsel %vm283, %v311, 0
      %v318 = vsel %vm290, %v315, 0
      %319 = vrot.lane.b32.xlu0 %v211, 113
      %v320 = vpop.permute.xlu0 %319
      %321 = vrot.lane.b32.xlu0 %v212, 113
      %v322 = vpop.permute.xlu0 %321
      %vm323 = vcmask 924672
      %v324 = vsel %vm323, %v320, %v322
      %vm326 = vcmask 924672
      %v328 = vsel %vm326, %v322, 0
      %v330 = vsel %vm239, %v324, 0
      %v331 = vsel %vm246, %v328, 0
      %332 = vrot.lane.b32.xlu0 %v211, 112
      %v333 = vpop.permute.xlu0 %332
      %334 = vrot.lane.b32.xlu0 %v212, 112
      %v335 = vpop.permute.xlu0 %334
      %vm336 = vcmask 916480
      %v337 = vsel %vm336, %v333, %v335
      %vm338 = vcmask 916480
      %v340 = vsel %vm338, %v335, 0
      %341 = vrot.lane.b32.xlu0 %v211, 111
      %v342 = vpop.permute.xlu0 %341
      %343 = vrot.lane.b32.xlu0 %v212, 111
      %v344 = vpop.permute.xlu0 %343
      %vm345 = vcmask 908288
      %v346 = vsel %vm345, %v342, %v344
      %vm348 = vcmask 908288
      %v350 = vsel %vm348, %v344, 0
      %v352 = vsel %vm283, %v346, 0
      %v353 = vsel %vm290, %v350, 0
      %v355 = vrot.slane %v257, 4
      %v356 = vrot.slane %v254, 4
      %v359 = vrot.slane %v304, 4
      %v360 = vrot.slane %v305, 4
      %v363 = vrot.slane %v317, 4
      %v364 = vrot.slane %v318, 4
      %v366 = vrot.slane %v337, 4
      %v367 = vrot.slane %v340, 4
      %vm368 = vcmask 1043456
      %v371 = vsel %vm368, %v247, %v355
      %v375 = vsel %vm368, %v248, %v356
      %v379 = vsel %vm368, %v291, %v359
      %v383 = vsel %vm368, %v292, %v360
      %v387 = vsel %vm368, %v211, %v363
      %v391 = vsel %vm368, %v212, %v364
      %v395 = vsel %vm368, %v330, %v366
      %v399 = vsel %vm368, %v331, %v367
      %v401 = vld [vmem:[%s1] sm:$0xf]
      %v402 = vld [vmem:[%s2] sm:$0xff]
      %404 = vset.pattern.permute.xlu0 0
      %405 = vperm.xlu0 %404, %v402
      %v406 = vpop.permute.xlu0 %405
      %vm408 = vcmask 588800
      %v410 = vsel %vm408, %v401, 0
      %v413 = vsel %vm368, %v352, 0
      %v416 = vsel %vm368, %v353, 0
      %418 = vmatpush.bf16.msra.mxu0 0
      %419 = vmatpush.bf16.msra.mxu0 0
      %420 = vmatpush.bf16.msra.mxu0 0
      %421 = vmatpush.bf16.msra.mxu0 %v413
      %422 = vmatpush.bf16.msra.mxu0 %v395
      %423 = vmatpush.bf16.msra.mxu0 %v387
      %424 = vmatpush.bf16.msra.mxu0 %v379
      %425 = vmatpush.bf16.msra.mxu0 %v371
      %426 = vmatmul.bf16.gmra.mxu0 %v410
      %v427 = vpop.f32.mrf.mxu0
      %v428 = vadd.f32 %v406, %v427
      %v429 = vpop.f32.mrf.mxu0
      %430 = vdwg.mxu0
      %431 = vmatpush.bf16.msra.mxu0 0
      %432 = vmatpush.bf16.msra.mxu0 0
      %433 = vmatpush.bf16.msra.mxu0 0
      %434 = vmatpush.bf16.msra.mxu0 %v416
      %435 = vmatpush.bf16.msra.mxu0 %v399
      %436 = vmatpush.bf16.msra.mxu0 %v391
      %437 = vmatpush.bf16.msra.mxu0 %v383
      %438 = vmatpush.bf16.msra.mxu0 %v375
      %439 = vmatmul.bf16.gmra.mxu0 %v410
      %v440 = vpop.f32.mrf.mxu0
      %v441 = vadd.f32 %v406, %v440
      %v442 = vpop.f32.mrf.mxu0
      %443 = vdwg.mxu0
      %v444 = vmax.f32 %v428, 0.0
      %v445 = vmax.f32 %v441, 0.0
      %v446 = vpack.c.bf16 %v445, %v444
      %447 = vst [vmem:[#allocation2] sm:$0xff] %v446
      %v448 = vld [vmem:[%s1 + $0xc] sm:$0xf]
      %v449 = vld [vmem:[%s1 + $0x18] sm:$0xf]
      %v450 = vld [vmem:[%s1 + $0x24] sm:$0xf]
      %v451 = vld [vmem:[%s1 + $0x30] sm:$0xf]
      %v452 = vld [vmem:[%s1 + $0x3c] sm:$0xf]
      %v453 = vld [vmem:[%s1 + $0x48] sm:$0xf]
      %v454 = vld [vmem:[%s1 + $0x54] sm:$0xf]
      %v455 = vld [vmem:[%s1 + $0x60] sm:$0xf]
      %v456 = vld [vmem:[%s1 + $0x6c] sm:$0xf]
      %v457 = vld [vmem:[%s1 + $0x78] sm:$0xf]
      %v458 = vld [vmem:[%s1 + $0x84] sm:$0xf]
      %v459 = vld [vmem:[%s1 + $0x90] sm:$0xf]
      %v460 = vld [vmem:[%s1 + $0x9c] sm:$0xf]
      %v461 = vld [vmem:[%s1 + $0xa8] sm:$0xf]
      %v462 = vld [vmem:[%s1 + $0xb4] sm:$0xf]
      %v463 = vld [vmem:[%s1 + $0xc0] sm:$0xf]
      %v464 = vld [vmem:[%s1 + $0xcc] sm:$0xf]
      %v465 = vld [vmem:[%s1 + $0xd8] sm:$0xf]
      %v466 = vld [vmem:[%s1 + $0xe4] sm:$0xf]
      %v467 = vld [vmem:[%s1 + $0xf0] sm:$0xf]
      %v468 = vld [vmem:[%s1 + $0xfc] sm:$0xf]
      %v469 = vld [vmem:[%s1 + $0x108] sm:$0xf]
      %v470 = vld [vmem:[%s1 + $0x114] sm:$0xf]
      %v471 = vld [vmem:[%s1 + $0x120] sm:$0xf]
      %v472 = vld [vmem:[%s1 + $0x12c] sm:$0xf]
      %v473 = vld [vmem:[%s1 + $0x138] sm:$0xf]
      %v474 = vld [vmem:[%s1 + $0x144] sm:$0xf]
      %v475 = vld [vmem:[%s1 + $0x150] sm:$0xf]
      %v476 = vld [vmem:[%s1 + $0x15c] sm:$0xf]
      %v477 = vld [vmem:[%s1 + $0x168] sm:$0xf]
      %v478 = vld [vmem:[%s1 + $0x174] sm:$0xf]
      %v479 = vld [vmem:[%s1 + $0x180] sm:$0xf]
      %v481 = vunpack.c.l.b16 %v446
      %v482 = vunpack.c.h.b16 %v446
      %v483 = vpack.c.b16 %v481, %v481
      %v484 = vpack.c.b16 %v482, %v482
      %v519 = vunpack.c.l.b16 %v448
      %v520 = vunpack.c.l.b16 %v449
      %v521 = vunpack.c.l.b16 %v450
      %v522 = vunpack.c.l.b16 %v451
      %v523 = vunpack.c.l.b16 %v452
      %v524 = vunpack.c.l.b16 %v453
      %v525 = vunpack.c.l.b16 %v454
      %v526 = vunpack.c.l.b16 %v455
      %v527 = vunpack.c.l.b16 %v456
      %v528 = vunpack.c.l.b16 %v457
      %v529 = vunpack.c.l.b16 %v458
      %v530 = vunpack.c.l.b16 %v459
      %v531 = vunpack.c.l.b16 %v460
      %v532 = vunpack.c.l.b16 %v461
      %v533 = vunpack.c.l.b16 %v462
      %v534 = vunpack.c.l.b16 %v463
      %v535 = vunpack.c.l.b16 %v464
      %v536 = vunpack.c.l.b16 %v465
      %v537 = vunpack.c.l.b16 %v466
      %v538 = vunpack.c.l.b16 %v467
      %v539 = vunpack.c.l.b16 %v468
      %v540 = vunpack.c.l.b16 %v469
      %v541 = vunpack.c.l.b16 %v470
      %v542 = vunpack.c.l.b16 %v471
      %v543 = vunpack.c.l.b16 %v472
      %v544 = vunpack.c.l.b16 %v473
      %v545 = vunpack.c.l.b16 %v474
      %v546 = vunpack.c.l.b16 %v475
      %v547 = vunpack.c.l.b16 %v476
      %v548 = vunpack.c.l.b16 %v477
      %v549 = vunpack.c.l.b16 %v478
      %v550 = vunpack.c.l.b16 %v479
      %v551 = vpack.c.b16 %v520, %v519
      %v552 = vpack.c.b16 %v522, %v521
      %v553 = vpack.c.b16 %v524, %v523
      %v554 = vpack.c.b16 %v526, %v525
      %v555 = vpack.c.b16 %v528, %v527
      %v556 = vpack.c.b16 %v530, %v529
      %v557 = vpack.c.b16 %v532, %v531
      %v558 = vpack.c.b16 %v534, %v533
      %v559 = vpack.c.b16 %v536, %v535
      %v560 = vpack.c.b16 %v538, %v537
      %v561 = vpack.c.b16 %v540, %v539
      %v562 = vpack.c.b16 %v542, %v541
      %v563 = vpack.c.b16 %v544, %v543
      %v564 = vpack.c.b16 %v546, %v545
      %v565 = vpack.c.b16 %v548, %v547
      %v566 = vpack.c.b16 %v550, %v549
      %583 = vmatpush.bf16.msra.mxu0 %v558
      %584 = vmatpush.bf16.msra.mxu0 %v557
      %585 = vmatpush.bf16.msra.mxu0 %v556
      %586 = vmatpush.bf16.msra.mxu0 %v555
      %587 = vmatpush.bf16.msra.mxu0 %v554
      %588 = vmatpush.bf16.msra.mxu0 %v553
      %589 = vmatpush.bf16.msra.mxu0 %v552
      %590 = vmatpush.bf16.msra.mxu0 %v551
      %591 = vmatmul.bf16.gmra.mxu0 %v483
      %v592 = vpop.f32.mrf.mxu0
      %v593 = vadd.f32 0.0, %v592
      %v594 = vpop.f32.mrf.mxu0
      %595 = vdwg.mxu0
      %596 = vmatpush.bf16.msra.mxu0 %v566
      %597 = vmatpush.bf16.msra.mxu0 %v565
      %598 = vmatpush.bf16.msra.mxu0 %v564
      %599 = vmatpush.bf16.msra.mxu0 %v563
      %600 = vmatpush.bf16.msra.mxu0 %v562
      %601 = vmatpush.bf16.msra.mxu0 %v561
      %602 = vmatpush.bf16.msra.mxu0 %v560
      %603 = vmatpush.bf16.msra.mxu0 %v559
      %604 = vmatmul.bf16.gmra.mxu0 %v484
      %v605 = vpop.f32.mrf.mxu0
      %v606 = vadd.f32 %v593, %v605
      %v607 = vpop.f32.mrf.mxu0
      %608 = vdwg.mxu0
      %vm609 = vcmp.lt.s32.totalorder %v177, 0
      %v610 = vsub.s32 0, %v177
      %v611 = vsel %vm609, %v610, %v177
      %v612 = vshrl.u32 %v611, 3
      %v613 = vand.u32 %v611, 7
      %v614 = vsub.s32 0, %v613
      %v615 = vsel %vm609, %v614, %v613
      %vm616 = vcmp.ne.s32.totalorder %v615, 0
      %vm617 = vcmp.lt.s32.totalorder %v615, 0
      %vm618 = vmand %vm617, %vm616
      %v619 = vadd.s32 %v615, 8
      %v620 = vsel %vm618, %v619, %v615
      %vm621 = vcmp.ge.s32.totalorder %v620, 1
      %vm622 = vcmp.lt.s32.totalorder %v620, 7
      %v623 = vpack.c.bf16 %v606, %v606
      %v625 = vunpack.c.l.b16 %v623
      %v626 = vpack.c.b16 %v625, %v625
      %627 = vrot.lane.b32.xlu0 %v626, 9
      %v628 = vpop.permute.xlu0 %627
      %vm629 = vcmask 72704
      %v631 = vsel %vm629, 0, %v628
      %v633 = vsel %vm621, 1, 0
      %vm634 = vcmp.eq.s32.totalorder %v633, 1
      %vm635 = vmpackc.low %vm634, %vm634
      %v636 = vsel %vm635, %v631, 0
      %637 = vrot.lane.b32.xlu0 %v626, 8
      %v638 = vpop.permute.xlu0 %637
      %vm639 = vcmask 64512
      %v641 = vsel %vm639, 0, %v638
      %642 = vrot.lane.b32.xlu0 %v626, 7
      %v643 = vpop.permute.xlu0 %642
      %vm644 = vcmask 56320
      %v646 = vsel %vm644, 0, %v643
      %v648 = vsel %vm622, 1, 0
      %vm649 = vcmp.eq.s32.totalorder %v648, 1
      %vm650 = vmpackc.low %vm649, %vm649
      %v651 = vsel %vm650, %v646, 0
      %652 = vrot.lane.b32.xlu0 %v626, 1
      %v653 = vpop.permute.xlu0 %652
      %v655 = vsel %vm300, 0, %v653
      %v657 = vsel %vm635, %v655, 0
      %658 = vrot.lane.b32.xlu0 %v626, 127
      %v659 = vpop.permute.xlu0 %658
      %vm660 = vcmask 515072
      %v662 = vsel %vm660, %v659, 0
      %v664 = vsel %vm650, %v662, 0
      %665 = vrot.lane.b32.xlu0 %v626, 121
      %v666 = vpop.permute.xlu0 %665
      %vm667 = vcmask 465920
      %v669 = vsel %vm667, %v666, 0
      %v671 = vsel %vm635, %v669, 0
      %672 = vrot.lane.b32.xlu0 %v626, 120
      %v673 = vpop.permute.xlu0 %672
      %vm674 = vcmask 457728
      %v676 = vsel %vm674, %v673, 0
      %677 = vrot.lane.b32.xlu0 %v626, 119
      %v678 = vpop.permute.xlu0 %677
      %vm679 = vcmask 449536
      %v681 = vsel %vm679, %v678, 0
      %v683 = vsel %vm650, %v681, 0
      %v685 = vrot.slane %v641, 4
      %v687 = vrot.slane %v657, 4
      %v689 = vrot.slane %v664, 4
      %v691 = vrot.slane %v676, 4
      %v694 = vsel %vm368, %v636, %v685
      %v698 = vsel %vm368, %v651, %v687
      %v702 = vsel %vm368, %v623, %v689
      %v706 = vsel %vm368, %v671, %v691
      %v708 = vld [vmem:[%s1 + $0x18c] sm:$0xf]
      %v709 = vld [vmem:[%s2 + $0x8] sm:$0xff]
      %711 = vset.pattern.permute.xlu0 0
      %712 = vperm.xlu0 %711, %v709
      %v713 = vpop.permute.xlu0 %712
      %v716 = vsel %vm408, %v708, 0
      %v719 = vsel %vm368, %v683, 0
      %721 = vmatpush.bf16.msra.mxu0 0
      %722 = vmatpush.bf16.msra.mxu0 0
      %723 = vmatpush.bf16.msra.mxu0 0
      %724 = vmatpush.bf16.msra.mxu0 %v719
      %725 = vmatpush.bf16.msra.mxu0 %v706
      %726 = vmatpush.bf16.msra.mxu0 %v702
      %727 = vmatpush.bf16.msra.mxu0 %v698
      %728 = vmatpush.bf16.msra.mxu0 %v694
      %729 = vmatmul.bf16.gmra.mxu0 %v716
      %v730 = vpop.f32.mrf.mxu0
      %v731 = vadd.f32 %v713, %v730
      %v732 = vpop.f32.mrf.mxu0
      %733 = vdwg.mxu0
      %v734 = vmax.f32 %v731, 0.0
      %v735 = vpack.c.bf16 %v734, %v734
      %vm736 = vcmask 519168
      %737 = vst.msk [vmem:[#allocation3] sm:$0xf] %vm736, %v735
      %v738 = vld [vmem:[%s1 + $0x198] sm:$0xf]
      %v739 = vld [vmem:[%s1 + $0x1a4] sm:$0xf]
      %v740 = vld [vmem:[%s1 + $0x1b0] sm:$0xf]
      %v741 = vld [vmem:[%s1 + $0x1bc] sm:$0xf]
      %v742 = vld [vmem:[%s1 + $0x1c8] sm:$0xf]
      %v743 = vld [vmem:[%s1 + $0x1d4] sm:$0xf]
      %v744 = vld [vmem:[%s1 + $0x1e0] sm:$0xf]
      %v745 = vld [vmem:[%s1 + $0x1ec] sm:$0xf]
      %v754 = vunpack.c.l.b16 %v738
      %v755 = vunpack.c.l.b16 %v739
      %v756 = vunpack.c.l.b16 %v740
      %v757 = vunpack.c.l.b16 %v741
      %v758 = vunpack.c.l.b16 %v742
      %v759 = vunpack.c.l.b16 %v743
      %v760 = vunpack.c.l.b16 %v744
      %v761 = vunpack.c.l.b16 %v745
      %v762 = vpack.c.b16 %v755, %v754
      %v763 = vpack.c.b16 %v757, %v756
      %v764 = vpack.c.b16 %v759, %v758
      %v765 = vpack.c.b16 %v761, %v760
      %vm770 = vcmask 523264
      %v772 = vsel %vm770, %v735, 0
      %774 = vmatpush.bf16.msra.mxu0 0
      %775 = vmatpush.bf16.msra.mxu0 0
      %776 = vmatpush.bf16.msra.mxu0 0
      %777 = vmatpush.bf16.msra.mxu0 0
      %778 = vmatpush.bf16.msra.mxu0 %v765
      %779 = vmatpush.bf16.msra.mxu0 %v764
      %780 = vmatpush.bf16.msra.mxu0 %v763
      %781 = vmatpush.bf16.msra.mxu0 %v762
      %782 = vmatmul.bf16.gmra.mxu0 %v772
      %v783 = vpop.f32.mrf.mxu0
      %v784 = vadd.f32 0.0, %v783
      %v785 = vpop.f32.mrf.mxu0
      %786 = vdwg.mxu0
      %vm787 = vcmp.lt.s32.totalorder %v177, 0
      %v788 = vsub.s32 0, %v177
      %v789 = vsel %vm787, %v788, %v177
      %v790 = vshrl.u32 %v789, 2
      %v791 = vand.u32 %v789, 3
      %v792 = vsub.s32 0, %v791
      %v793 = vsel %vm787, %v792, %v791
      %vm794 = vcmp.ne.s32.totalorder %v793, 0
      %vm795 = vcmp.lt.s32.totalorder %v793, 0
      %vm796 = vmand %vm795, %vm794
      %v797 = vadd.s32 %v793, 4
      %v798 = vsel %vm796, %v797, %v793
      %vm799 = vcmp.ge.s32.totalorder %v798, 1
      %vm800 = vcmp.lt.s32.totalorder %v798, 3
      %v801 = vpack.c.bf16 %v784, %v784
      %v803 = vunpack.c.l.b16 %v801
      %v804 = vpack.c.b16 %v803, %v803
      %805 = vrot.lane.b32.xlu0 %v804, 5
      %v806 = vpop.permute.xlu0 %805
      %vm807 = vcmask 39936
      %v809 = vsel %vm807, 0, %v806
      %v811 = vsel %vm799, 1, 0
      %vm812 = vcmp.eq.s32.totalorder %v811, 1
      %vm813 = vmpackc.low %vm812, %vm812
      %v814 = vsel %vm813, %v809, 0
      %815 = vrot.lane.b32.xlu0 %v804, 4
      %v816 = vpop.permute.xlu0 %815
      %vm817 = vcmask 31744
      %v819 = vsel %vm817, 0, %v816
      %820 = vrot.lane.b32.xlu0 %v804, 3
      %v821 = vpop.permute.xlu0 %820
      %vm822 = vcmask 23552
      %v824 = vsel %vm822, 0, %v821
      %v826 = vsel %vm800, 1, 0
      %vm827 = vcmp.eq.s32.totalorder %v826, 1
      %vm828 = vmpackc.low %vm827, %vm827
      %v829 = vsel %vm828, %v824, 0
      %830 = vrot.lane.b32.xlu0 %v804, 1
      %v831 = vpop.permute.xlu0 %830
      %v833 = vsel %vm300, 0, %v831
      %v835 = vsel %vm813, %v833, 0
      %836 = vrot.lane.b32.xlu0 %v804, 127
      %v837 = vpop.permute.xlu0 %836
      %v839 = vsel %vm265, %v837, 0
      %v841 = vsel %vm828, %v839, 0
      %842 = vrot.lane.b32.xlu0 %v804, 125
      %v843 = vpop.permute.xlu0 %842
      %vm844 = vcmask 105472
      %v846 = vsel %vm844, %v843, 0
      %v848 = vsel %vm813, %v846, 0
      %849 = vrot.lane.b32.xlu0 %v804, 124
      %v850 = vpop.permute.xlu0 %849
      %vm851 = vcmask 97280
      %v853 = vsel %vm851, %v850, 0
      %854 = vrot.lane.b32.xlu0 %v804, 123
      %v855 = vpop.permute.xlu0 %854
      %vm856 = vcmask 89088
      %v858 = vsel %vm856, %v855, 0
      %v860 = vsel %vm828, %v858, 0
      %v862 = vrot.slane %v819, 4
      %v864 = vrot.slane %v835, 4
      %v866 = vrot.slane %v841, 4
      %v868 = vrot.slane %v853, 4
      %v871 = vsel %vm368, %v814, %v862
      %v875 = vsel %vm368, %v829, %v864
      %v879 = vsel %vm368, %v801, %v866
      %v883 = vsel %vm368, %v848, %v868
      %v885 = vld [vmem:[%s1 + $0x1f8] sm:$0xf]
      %v886 = vld [vmem:[%s2 + $0x10] sm:$0xff]
      %888 = vset.pattern.permute.xlu0 0
      %889 = vperm.xlu0 %888, %v886
      %v890 = vpop.permute.xlu0 %889
      %v893 = vsel %vm408, %v885, 0
      %v896 = vsel %vm368, %v860, 0
      %898 = vmatpush.bf16.msra.mxu0 0
      %899 = vmatpush.bf16.msra.mxu0 0
      %900 = vmatpush.bf16.msra.mxu0 0
      %901 = vmatpush.bf16.msra.mxu0 %v896
      %902 = vmatpush.bf16.msra.mxu0 %v883
      %903 = vmatpush.bf16.msra.mxu0 %v879
      %904 = vmatpush.bf16.msra.mxu0 %v875
      %905 = vmatpush.bf16.msra.mxu0 %v871
      %906 = vmatmul.bf16.gmra.mxu0 %v893
      %v907 = vpop.f32.mrf.mxu0
      %v908 = vadd.f32 %v890, %v907
      %v909 = vpop.f32.mrf.mxu0
      %910 = vdwg.mxu0
      %v911 = vmax.f32 %v908, 0.0
      %v912 = vpack.c.bf16 %v911, %v911
      %vm913 = vcmask 125952
      %914 = vst.msk [vmem:[#allocation4] sm:$0xf] %vm913, %v912
      %v915 = vld [vmem:[%s1 + $0x204] sm:$0xf]
      %v916 = vld [vmem:[%s1 + $0x210] sm:$0xf]
      %v919 = vunpack.c.l.b16 %v915
      %v920 = vunpack.c.l.b16 %v916
      %v921 = vpack.c.b16 %v920, %v919
      %v924 = vsel %vm255, %v912, 0
      %926 = vmatpush.bf16.msra.mxu0 0
      %927 = vmatpush.bf16.msra.mxu0 0
      %928 = vmatpush.bf16.msra.mxu0 0
      %929 = vmatpush.bf16.msra.mxu0 0
      %930 = vmatpush.bf16.msra.mxu0 0
      %931 = vmatpush.bf16.msra.mxu0 0
      %932 = vmatpush.bf16.msra.mxu0 0
      %933 = vmatpush.bf16.msra.mxu0 %v921
      %934 = vmatmul.bf16.gmra.mxu0 %v924
      %v935 = vpop.f32.mrf.mxu0
      %v936 = vadd.f32 0.0, %v935
      %v937 = vpop.f32.mrf.mxu0
      %938 = vdwg.mxu0
      %vm939 = vcmp.lt.s32.totalorder %v177, 0
      %v940 = vsub.s32 0, %v177
      %v941 = vsel %vm939, %v940, %v177
      %v942 = vshrl.u32 %v941, 1
      %v943 = vand.u32 %v941, 1
      %v944 = vsub.s32 0, %v943
      %v945 = vsel %vm939, %v944, %v943
      %vm946 = vcmp.ne.s32.totalorder %v945, 0
      %vm947 = vcmp.lt.s32.totalorder %v945, 0
      %vm948 = vmand %vm947, %vm946
      %v949 = vadd.s32 %v945, 2
      %v950 = vsel %vm948, %v949, %v945
      %vm951 = vcmp.ge.s32.totalorder %v950, 1
      %vm952 = vcmp.lt.s32.totalorder %v950, 1
      %v953 = vpack.c.bf16 %v936, %v936
      %v955 = vunpack.c.l.b16 %v953
      %v956 = vpack.c.b16 %v955, %v955
      %957 = vrot.lane.b32.xlu0 %v956, 3
      %v958 = vpop.permute.xlu0 %957
      %v960 = vsel %vm822, 0, %v958
      %v962 = vsel %vm951, 1, 0
      %vm963 = vcmp.eq.s32.totalorder %v962, 1
      %vm964 = vmpackc.low %vm963, %vm963
      %v965 = vsel %vm964, %v960, 0
      %966 = vrot.lane.b32.xlu0 %v956, 2
      %v967 = vpop.permute.xlu0 %966
      %vm968 = vcmask 15360
      %v970 = vsel %vm968, 0, %v967
      %971 = vrot.lane.b32.xlu0 %v956, 1
      %v972 = vpop.permute.xlu0 %971
      %v974 = vsel %vm300, 0, %v972
      %v976 = vsel %vm952, 1, 0
      %vm977 = vcmp.eq.s32.totalorder %v976, 1
      %vm978 = vmpackc.low %vm977, %vm977
      %v979 = vsel %vm978, %v974, 0
      %v980 = vsel %vm964, %v974, 0
      %981 = vrot.lane.b32.xlu0 %v956, 127
      %v982 = vpop.permute.xlu0 %981
      %v984 = vsel %vm822, %v982, 0
      %v986 = vsel %vm978, %v984, 0
      %v987 = vsel %vm964, %v984, 0
      %988 = vrot.lane.b32.xlu0 %v956, 126
      %v989 = vpop.permute.xlu0 %988
      %v991 = vsel %vm968, %v989, 0
      %992 = vrot.lane.b32.xlu0 %v956, 125
      %v993 = vpop.permute.xlu0 %992
      %v995 = vsel %vm300, %v993, 0
      %v997 = vsel %vm978, %v995, 0
      %v999 = vrot.slane %v970, 4
      %v1001 = vrot.slane %v980, 4
      %v1003 = vrot.slane %v986, 4
      %v1005 = vrot.slane %v991, 4
      %v1008 = vsel %vm368, %v965, %v999
      %v1012 = vsel %vm368, %v979, %v1001
      %v1016 = vsel %vm368, %v953, %v1003
      %v1020 = vsel %vm368, %v987, %v1005
      %v1022 = vld [vmem:[%s1 + $0x21c] sm:$0xf]
      %v1023 = vld [vmem:[%s1 + $0x228] sm:$0xf]
      %v1024 = vld [vmem:[%s2 + $0x18] sm:$0xff]
      %v1025 = vld [vmem:[%s2 + $0x20] sm:$0xff]
      %1027 = vset.pattern.permute.xlu0 0
      %1028 = vperm.xlu0 %1027, %v1024
      %v1029 = vpop.permute.xlu0 %1028
      %1032 = vset.pattern.permute.xlu0 0
      %1033 = vperm.xlu0 %1032, %v1025
      %v1034 = vpop.permute.xlu0 %1033
      %v1038 = vunpack.c.l.b16 %v1022
      %v1039 = vunpack.c.l.b16 %v1023
      %v1040 = vpack.c.b16 %v1039, %v1038
      %v1042 = vsel %vm408, %v1040, 0
      %v1045 = vsel %vm368, %v997, 0
      %1047 = vmatpush.bf16.msra.mxu0 0
      %1048 = vmatpush.bf16.msra.mxu0 0
      %1049 = vmatpush.bf16.msra.mxu0 0
      %1050 = vmatpush.bf16.msra.mxu0 %v1045
      %1051 = vmatpush.bf16.msra.mxu0 %v1020
      %1052 = vmatpush.bf16.msra.mxu0 %v1016
      %1053 = vmatpush.bf16.msra.mxu0 %v1012
      %1054 = vmatpush.bf16.msra.mxu0 %v1008
      %1055 = vmatmul.bf16.gmra.mxu0 %v1042
      %v1056 = vpop.f32.mrf.mxu0
      %v1057 = vadd.f32 %v1029, %v1056
      %v1058 = vpop.f32.mrf.mxu0
      %v1059 = vadd.f32 %v1034, %v1058
      %1060 = vdwg.mxu0
      %v1061 = vmax.f32 %v1057, 0.0
      %v1062 = vmax.f32 %v1059, 0.0
      %v1063 = vpack.c.bf16 %v1061, %v1061
      %v1064 = vpack.c.bf16 %v1062, %v1062
      %vm1065 = vcmask 27648
      %1066 = vst.msk [vmem:[#allocation5] sm:$0xf] %vm1065, %v1063
      %1067 = vst.msk [vmem:[#allocation5 + $0x4] sm:$0xf] %vm1065, %v1064
      %v1068 = vld [vmem:[%s1 + $0x234] sm:$0x3]
      %v1071 = vunpack.c.l.b16 %v1063
      %v1072 = vunpack.c.l.b16 %v1064
      %v1073 = vpack.c.b16 %v1072, %v1071
      %v1075 = vsel %vm817, %v1073, 0
      %vm1077 = vcmask 1041408
      %v1079 = vsel %vm1077, %v1068, 0
      %1081 = vmatpush.bf16.msra.mxu0 0
      %1082 = vmatpush.bf16.msra.mxu0 0
      %1083 = vmatpush.bf16.msra.mxu0 0
      %1084 = vmatpush.bf16.msra.mxu0 0
      %1085 = vmatpush.bf16.msra.mxu0 0
      %1086 = vmatpush.bf16.msra.mxu0 0
      %1087 = vmatpush.bf16.msra.mxu0 0
      %1088 = vmatpush.bf16.msra.mxu0 %v1079
      %1089 = vmatmul.bf16.gmra.mxu0 %v1075
      %v1090 = vpop.f32.mrf.mxu0
      %v1091 = vadd.f32 0.0, %v1090
      %v1092 = vpop.f32.mrf.mxu0
      %v1093 = vadd.f32 0.0, %v1092
      %1094 = vdwg.mxu0
      %v1095 = vpack.c.bf16 %v1093, %v1091
      %v1096 = vld [vmem:[%s1 + $0x240] sm:$0xf]
      %v1097 = vld [vmem:[%s1 + $0x24c] sm:$0xf]
      %v1098 = vld [vmem:[%s2 + $0x28] sm:$0xff]
      %v1099 = vld [vmem:[%s2 + $0x30] sm:$0xff]
      %v1102 = vunpack.c.l.b16 %v1096
      %v1103 = vunpack.c.l.b16 %v1097
      %v1104 = vpack.c.b16 %v1103, %v1102
      %v1106 = vsel %vm255, %v1104, 0
      %1108 = vmatpush.bf16.msra.mxu0 0
      %1109 = vmatpush.bf16.msra.mxu0 0
      %1110 = vmatpush.bf16.msra.mxu0 0
      %1111 = vmatpush.bf16.msra.mxu0 0
      %1112 = vmatpush.bf16.msra.mxu0 0
      %1113 = vmatpush.bf16.msra.mxu0 0
      %1114 = vmatpush.bf16.msra.mxu0 0
      %1115 = vmatpush.bf16.msra.mxu0 %v1095
      %1116 = vmatmul.bf16.gmra.mxu0 %v1106
      %v1117 = vpop.f32.mrf.mxu0
      %v1118 = vadd.f32 %v1098, %v1117
      %v1119 = vpop.f32.mrf.mxu0
      %v1120 = vadd.f32 %v1099, %v1119
      %1121 = vdwg.mxu0
      %v1122 = vmax.f32 %v1118, 0.0
      %v1123 = vmax.f32 %v1120, 0.0
      %v1124 = vpack.c.bf16 %v1123, %v1122
      %v1125 = vld [vmem:[%s1 + $0x288] sm:$0xf]
      %v1126 = vld [vmem:[%s1 + $0x294] sm:$0xf]
      %v1127 = vld [vmem:[%s1 + $0x2a0] sm:$0xf]
      %v1128 = vld [vmem:[%s1 + $0x2ac] sm:$0xf]
      %v1129 = vld [vmem:[%s1 + $0x2b8] sm:$0xf]
      %v1130 = vld [vmem:[%s1 + $0x2c4] sm:$0xf]
      %v1131 = vld [vmem:[%s1 + $0x2d0] sm:$0xf]
      %v1132 = vld [vmem:[%s1 + $0x2dc] sm:$0xf]
      %v1141 = vunpack.c.l.b16 %v1125
      %v1142 = vunpack.c.l.b16 %v1126
      %v1143 = vunpack.c.l.b16 %v1127
      %v1144 = vunpack.c.l.b16 %v1128
      %v1145 = vunpack.c.l.b16 %v1129
      %v1146 = vunpack.c.l.b16 %v1130
      %v1147 = vunpack.c.l.b16 %v1131
      %v1148 = vunpack.c.l.b16 %v1132
      %v1149 = vpack.c.b16 %v1142, %v1141
      %v1150 = vpack.c.b16 %v1144, %v1143
      %v1151 = vpack.c.b16 %v1146, %v1145
      %v1152 = vpack.c.b16 %v1148, %v1147
      %v1154 = vsel %vm255, %v1149, 0
      %v1157 = vsel %vm255, %v1150, 0
      %v1160 = vsel %vm255, %v1151, 0
      %v1163 = vsel %vm255, %v1152, 0
      %1165 = vmatpush.bf16.msra.mxu0 0
      %1166 = vmatpush.bf16.msra.mxu0 0
      %1167 = vmatpush.bf16.msra.mxu0 0
      %1168 = vmatpush.bf16.msra.mxu0 0
      %1169 = vmatpush.bf16.msra.mxu0 0
      %1170 = vmatpush.bf16.msra.mxu0 0
      %1171 = vmatpush.bf16.msra.mxu0 0
      %1172 = vmatpush.bf16.msra.mxu0 %v1124
      %1173 = vmatmul.bf16.gmra.mxu0 %v1154
      %v1174 = vpop.f32.mrf.mxu0
      %v1175 = vadd.f32 0.0, %v1174
      %v1176 = vpop.f32.mrf.mxu0
      %v1177 = vadd.f32 0.0, %v1176
      %1178 = vmatmul.bf16.gmra.mxu0 %v1157
      %v1179 = vpop.f32.mrf.mxu0
      %v1180 = vadd.f32 0.0, %v1179
      %v1181 = vpop.f32.mrf.mxu0
      %v1182 = vadd.f32 0.0, %v1181
      %1183 = vmatmul.bf16.gmra.mxu0 %v1160
      %v1184 = vpop.f32.mrf.mxu0
      %v1185 = vadd.f32 0.0, %v1184
      %v1186 = vpop.f32.mrf.mxu0
      %v1187 = vadd.f32 0.0, %v1186
      %1188 = vmatmul.bf16.gmra.mxu0 %v1163
      %v1189 = vpop.f32.mrf.mxu0
      %v1190 = vadd.f32 0.0, %v1189
      %v1191 = vpop.f32.mrf.mxu0
      %v1192 = vadd.f32 0.0, %v1191
      %1193 = vdwg.mxu0
      %v1194 = vpack.c.bf16 %v1175, %v1175
      %v1195 = vpack.c.bf16 %v1177, %v1177
      %v1196 = vpack.c.bf16 %v1180, %v1180
      %v1197 = vpack.c.bf16 %v1182, %v1182
      %v1198 = vpack.c.bf16 %v1185, %v1185
      %v1199 = vpack.c.bf16 %v1187, %v1187
      %v1200 = vpack.c.bf16 %v1190, %v1190
      %v1201 = vpack.c.bf16 %v1192, %v1192
      %v1202 = vld [vmem:[%s1 + $0x258] sm:$0x1]
      %v1203 = vld [vmem:[%s1 + $0x264] sm:$0x1]
      %v1206 = vunpack.c.l.b16 %v1196
      %v1207 = vunpack.c.l.b16 %v1197
      %v1208 = vpack.c.b16 %v1207, %v1206
      %v1210 = vsel %vm300, %v1208, 0
      %vm1212 = vcmask 1040384
      %v1213 = vsel 0, 4294967295, 65535
      %v1214 = vsel %vm1212, %v1213, 0
      %v1216 = vand.u32 %v1203, %v1214
      %1218 = vmatpush.bf16.msra.mxu0 0
      %1219 = vmatpush.bf16.msra.mxu0 0
      %1220 = vmatpush.bf16.msra.mxu0 0
      %1221 = vmatpush.bf16.msra.mxu0 0
      %1222 = vmatpush.bf16.msra.mxu0 0
      %1223 = vmatpush.bf16.msra.mxu0 0
      %1224 = vmatpush.bf16.msra.mxu0 0
      %1225 = vmatpush.bf16.msra.mxu0 %v1216
      %1226 = vmatmul.bf16.gmra.mxu0 %v1210
      %v1227 = vpop.f32.mrf.mxu0
      %v1228 = vadd.f32 0.0, %v1227
      %v1229 = vpop.f32.mrf.mxu0
      %v1230 = vadd.f32 0.0, %v1229
      %1231 = vdwg.mxu0
      %v1234 = vunpack.c.l.b16 %v1194
      %v1235 = vunpack.c.l.b16 %v1195
      %v1236 = vpack.c.b16 %v1235, %v1234
      %v1238 = vsel %vm300, %v1236, 0
      %v1241 = vand.u32 %v1202, %v1214
      %1243 = vmatpush.bf16.msra.mxu0 0
      %1244 = vmatpush.bf16.msra.mxu0 0
      %1245 = vmatpush.bf16.msra.mxu0 0
      %1246 = vmatpush.bf16.msra.mxu0 0
      %1247 = vmatpush.bf16.msra.mxu0 0
      %1248 = vmatpush.bf16.msra.mxu0 0
      %1249 = vmatpush.bf16.msra.mxu0 0
      %1250 = vmatpush.bf16.msra.mxu0 %v1241
      %1251 = vmatmul.bf16.gmra.mxu0 %v1238
      %v1252 = vpop.f32.mrf.mxu0
      %v1253 = vadd.f32 %v1228, %v1252
      %v1254 = vpop.f32.mrf.mxu0
      %v1255 = vadd.f32 %v1230, %v1254
      %1256 = vdwg.mxu0
      %v1257 = vld [vmem:[%s1 + $0x270] sm:$0x1]
      %v1260 = vunpack.c.l.b16 %v1198
      %v1261 = vunpack.c.l.b16 %v1199
      %v1262 = vpack.c.b16 %v1261, %v1260
      %v1264 = vsel %vm300, %v1262, 0
      %v1267 = vand.u32 %v1257, %v1214
      %1269 = vmatpush.bf16.msra.mxu0 0
      %1270 = vmatpush.bf16.msra.mxu0 0
      %1271 = vmatpush.bf16.msra.mxu0 0
      %1272 = vmatpush.bf16.msra.mxu0 0
      %1273 = vmatpush.bf16.msra.mxu0 0
      %1274 = vmatpush.bf16.msra.mxu0 0
      %1275 = vmatpush.bf16.msra.mxu0 0
      %1276 = vmatpush.bf16.msra.mxu0 %v1267
      %1277 = vmatmul.bf16.gmra.mxu0 %v1264
      %v1278 = vpop.f32.mrf.mxu0
      %v1279 = vadd.f32 0.0, %v1278
      %v1280 = vpop.f32.mrf.mxu0
      %v1281 = vadd.f32 0.0, %v1280
      %1282 = vdwg.mxu0
      %v1283 = vadd.f32 %v1253, %v1279
      %v1284 = vadd.f32 %v1255, %v1281
      %v1285 = vld [vmem:[%s1 + $0x27c] sm:$0x1]
      %v1288 = vunpack.c.l.b16 %v1200
      %v1289 = vunpack.c.l.b16 %v1201
      %v1290 = vpack.c.b16 %v1289, %v1288
      %v1292 = vsel %vm300, %v1290, 0
      %v1295 = vand.u32 %v1285, %v1214
      %1297 = vmatpush.bf16.msra.mxu0 0
      %1298 = vmatpush.bf16.msra.mxu0 0
      %1299 = vmatpush.bf16.msra.mxu0 0
      %1300 = vmatpush.bf16.msra.mxu0 0
      %1301 = vmatpush.bf16.msra.mxu0 0
      %1302 = vmatpush.bf16.msra.mxu0 0
      %1303 = vmatpush.bf16.msra.mxu0 0
      %1304 = vmatpush.bf16.msra.mxu0 %v1295
      %1305 = vmatmul.bf16.gmra.mxu0 %v1292
      %v1306 = vpop.f32.mrf.mxu0
      %v1307 = vadd.f32 0.0, %v1306
      %v1308 = vpop.f32.mrf.mxu0
      %v1309 = vadd.f32 0.0, %v1308
      %1310 = vdwg.mxu0
      %v1311 = vadd.f32 %v1283, %v1307
      %v1312 = vadd.f32 %v1284, %v1309
      %v1313 = vld [vmem:[%s2 + $0x38] sm:$0xff]
      %v1314 = vld [vmem:[%s2 + $0x40] sm:$0xff]
      %1316 = vset.pattern.permute.xlu0 0
      %1317 = vperm.xlu0 %1316, %v1313
      %v1318 = vpop.permute.xlu0 %1317
      %1321 = vset.pattern.permute.xlu0 0
      %1322 = vperm.xlu0 %1321, %v1314
      %v1323 = vpop.permute.xlu0 %1322
      %v1325 = vadd.f32 %v1311, %v1318
      %v1326 = vadd.f32 %v1312, %v1323
      %v1327 = vpack.c.bf16 %v1325, %v1325
      %v1328 = vpack.c.bf16 %v1326, %v1326
      %v1331 = vunpack.c.l.b16 %v1327
      %v1332 = vunpack.c.l.b16 %v1328
      %v1333 = vpack.c.b16 %v1332, %v1331
      %1334 = vrot.lane.b32.xlu0 %v1333, 3
      %v1335 = vpop.permute.xlu0 %1334
      %v1337 = vsel %vm822, 0, %v1335
      %v1339 = vsel %vm964, 65537, 0
      %v1340 = vperm.slane %v1339, 0
      %v1341 = vunpack.c.l.b16 %v1340
      %v1342 = vunpack.c.h.b16 %v1340
      %v1343 = vunpack.c.l.b16 0
      %v1344 = vunpack.c.h.b16 0
      %vm1345 = vcmp.ne.s32.totalorder %v1341, %v1343
      %vm1346 = vcmp.ne.s32.totalorder %v1342, %v1344
      %vm1347 = vmpackc.low %vm1346, %vm1345
      %v1348 = vsel %vm1347, %v1337, 0
      %1349 = vrot.lane.b32.xlu0 %v1333, 2
      %v1350 = vpop.permute.xlu0 %1349
      %v1352 = vsel %vm968, 0, %v1350
      %1354 = vrot.lane.b32.xlu0 %v1333, 1
      %v1355 = vpop.permute.xlu0 %1354
      %v1357 = vsel %vm300, 0, %v1355
      %v1359 = vsel %vm978, 65537, 0
      %v1360 = vperm.slane %v1359, 0
      %v1361 = vunpack.c.l.b16 %v1360
      %v1362 = vunpack.c.h.b16 %v1360
      %v1363 = vunpack.c.l.b16 0
      %v1364 = vunpack.c.h.b16 0
      %vm1365 = vcmp.ne.s32.totalorder %v1361, %v1363
      %vm1366 = vcmp.ne.s32.totalorder %v1362, %v1364
      %vm1367 = vmpackc.low %vm1366, %vm1365
      %v1368 = vsel %vm1367, %v1357, 0
      %v1369 = vsel %vm1347, %v1357, 0
      %1370 = vrot.lane.b32.xlu0 %v1333, 127
      %v1371 = vpop.permute.xlu0 %1370
      %v1373 = vsel %vm822, %v1371, 0
      %v1375 = vsel %vm1367, %v1373, 0
      %v1376 = vsel %vm1347, %v1373, 0
      %1377 = vrot.lane.b32.xlu0 %v1333, 126
      %v1378 = vpop.permute.xlu0 %1377
      %v1380 = vsel %vm968, %v1378, 0
      %1382 = vrot.lane.b32.xlu0 %v1333, 125
      %v1383 = vpop.permute.xlu0 %1382
      %v1385 = vsel %vm300, %v1383, 0
      %v1387 = vsel %vm1367, %v1385, 0
      %v1388 = vld [vmem:[#allocation5] sm:$0xf]
      %v1389 = vld [vmem:[#allocation5 + $0x4] sm:$0xf]
      %v1392 = vunpack.c.l.b16 %v1388
      %v1393 = vunpack.c.l.b16 %v1389
      %v1394 = vpack.c.b16 %v1393, %v1392
      %1395 = vrot.lane.b32.xlu0 %v1394, 3
      %v1396 = vpop.permute.xlu0 %1395
      %v1398 = vsel %vm822, 0, %v1396
      %v1400 = vsel %vm1347, %v1398, 0
      %1401 = vrot.lane.b32.xlu0 %v1394, 2
      %v1402 = vpop.permute.xlu0 %1401
      %v1404 = vsel %vm968, 0, %v1402
      %1406 = vrot.lane.b32.xlu0 %v1394, 1
      %v1407 = vpop.permute.xlu0 %1406
      %v1409 = vsel %vm300, 0, %v1407
      %v1411 = vsel %vm1367, %v1409, 0
      %v1412 = vsel %vm1347, %v1409, 0
      %1413 = vrot.lane.b32.xlu0 %v1394, 127
      %v1414 = vpop.permute.xlu0 %1413
      %v1416 = vsel %vm822, %v1414, 0
      %v1418 = vsel %vm1367, %v1416, 0
      %v1419 = vsel %vm1347, %v1416, 0
      %1420 = vrot.lane.b32.xlu0 %v1394, 126
      %v1421 = vpop.permute.xlu0 %1420
      %v1423 = vsel %vm968, %v1421, 0
      %1425 = vrot.lane.b32.xlu0 %v1394, 125
      %v1426 = vpop.permute.xlu0 %1425
      %v1428 = vsel %vm300, %v1426, 0
      %v1430 = vsel %vm1367, %v1428, 0
      %v1433 = vld [vmem:[%s1 + $0x2e8] sm:$0xff]
      %v1434 = vld [vmem:[%s1 + $0x2f0] sm:$0xf]
      %v1435 = vld [vmem:[%s1 + $0x2f4] sm:$0xff]
      %v1436 = vld [vmem:[%s1 + $0x2fc] sm:$0xf]
      %v1437 = vld [vmem:[%s2 + $0x48] sm:$0xff]
      %v1438 = vld [vmem:[%s2 + $0x50] sm:$0xff]
      %1440 = vset.pattern.permute.xlu0 0
      %1441 = vperm.xlu0 %1440, %v1437
      %v1442 = vpop.permute.xlu0 %1441
      %1445 = vset.pattern.permute.xlu0 0
      %1446 = vperm.xlu0 %1445, %v1438
      %v1447 = vpop.permute.xlu0 %1446
      %v1453 = vunpack.c.l.b16 %v1433
      %v1454 = vunpack.c.h.b16 %v1433
      %v1455 = vunpack.c.l.b16 %v1434
      %v1456 = vunpack.c.l.b16 %v1435
      %v1457 = vunpack.c.h.b16 %v1435
      %v1458 = vunpack.c.l.b16 %v1436
      %v1459 = vpack.c.b16 %v1456, %v1453
      %v1460 = vpack.c.b16 %v1457, %v1454
      %v1461 = vpack.c.b16 %v1458, %v1455
      %vm1464 = vcmask 261120
      %v1466 = vsel %vm1464, %v1461, 0
      %1468 = vmatpush.bf16.msra.mxu0 %v1380
      %1469 = vmatpush.bf16.msra.mxu0 %v1376
      %1470 = vmatpush.bf16.msra.mxu0 %v1375
      %1471 = vmatpush.bf16.msra.mxu0 %v1333
      %1472 = vmatpush.bf16.msra.mxu0 %v1369
      %1473 = vmatpush.bf16.msra.mxu0 %v1368
      %1474 = vmatpush.bf16.msra.mxu0 %v1352
      %1475 = vmatpush.bf16.msra.mxu0 %v1348
      %1476 = vmatmul.bf16.gmra.mxu0 %v1459
      %v1477 = vpop.f32.mrf.mxu0
      %v1478 = vadd.f32 %v1442, %v1477
      %v1479 = vpop.f32.mrf.mxu0
      %v1480 = vadd.f32 %v1447, %v1479
      %1481 = vdwg.mxu0
      %1482 = vmatpush.bf16.msra.mxu0 %v1419
      %1483 = vmatpush.bf16.msra.mxu0 %v1418
      %1484 = vmatpush.bf16.msra.mxu0 %v1394
      %1485 = vmatpush.bf16.msra.mxu0 %v1412
      %1486 = vmatpush.bf16.msra.mxu0 %v1411
      %1487 = vmatpush.bf16.msra.mxu0 %v1404
      %1488 = vmatpush.bf16.msra.mxu0 %v1400
      %1489 = vmatpush.bf16.msra.mxu0 %v1387
      %1490 = vmatmul.bf16.gmra.mxu0 %v1460
      %v1491 = vpop.f32.mrf.mxu0
      %v1492 = vadd.f32 %v1478, %v1491
      %v1493 = vpop.f32.mrf.mxu0
      %v1494 = vadd.f32 %v1480, %v1493
      %1495 = vdwg.mxu0
      %1496 = vmatpush.bf16.msra.mxu0 0
      %1497 = vmatpush.bf16.msra.mxu0 0
      %1498 = vmatpush.bf16.msra.mxu0 0
      %1499 = vmatpush.bf16.msra.mxu0 0
      %1500 = vmatpush.bf16.msra.mxu0 0
      %1501 = vmatpush.bf16.msra.mxu0 0
      %1502 = vmatpush.bf16.msra.mxu0 %v1430
      %1503 = vmatpush.bf16.msra.mxu0 %v1423
      %1504 = vmatmul.bf16.gmra.mxu0 %v1466
      %v1505 = vpop.f32.mrf.mxu0
      %v1506 = vadd.f32 %v1492, %v1505
      %v1507 = vpop.f32.mrf.mxu0
      %v1508 = vadd.f32 %v1494, %v1507
      %1509 = vdwg.mxu0
      %v1510 = vmax.f32 %v1506, 0.0
      %v1511 = vmax.f32 %v1508, 0.0
      %v1512 = vpack.c.bf16 %v1511, %v1510
      %v1513 = vld [vmem:[%s1 + $0x330] sm:$0xf]
      %v1514 = vld [vmem:[%s1 + $0x33c] sm:$0xf]
      %v1515 = vld [vmem:[%s1 + $0x348] sm:$0xf]
      %v1516 = vld [vmem:[%s1 + $0x354] sm:$0xf]
      %v1521 = vunpack.c.l.b16 %v1513
      %v1522 = vunpack.c.l.b16 %v1514
      %v1523 = vunpack.c.l.b16 %v1515
      %v1524 = vunpack.c.l.b16 %v1516
      %v1525 = vpack.c.b16 %v1522, %v1521
      %v1526 = vpack.c.b16 %v1524, %v1523
      %v1528 = vsel %vm255, %v1525, 0
      %v1531 = vsel %vm255, %v1526, 0
      %1533 = vmatpush.bf16.msra.mxu0 0
      %1534 = vmatpush.bf16.msra.mxu0 0
      %1535 = vmatpush.bf16.msra.mxu0 0
      %1536 = vmatpush.bf16.msra.mxu0 0
      %1537 = vmatpush.bf16.msra.mxu0 0
      %1538 = vmatpush.bf16.msra.mxu0 0
      %1539 = vmatpush.bf16.msra.mxu0 0
      %1540 = vmatpush.bf16.msra.mxu0 %v1512
      %1541 = vmatmul.bf16.gmra.mxu0 %v1528
      %v1542 = vpop.f32.mrf.mxu0
      %v1543 = vadd.f32 0.0, %v1542
      %v1544 = vpop.f32.mrf.mxu0
      %v1545 = vadd.f32 0.0, %v1544
      %1546 = vmatmul.bf16.gmra.mxu0 %v1531
      %v1547 = vpop.f32.mrf.mxu0
      %v1548 = vadd.f32 0.0, %v1547
      %v1549 = vpop.f32.mrf.mxu0
      %v1550 = vadd.f32 0.0, %v1549
      %1551 = vdwg.mxu0
      %v1552 = vpack.c.bf16 %v1543, %v1543
      %v1553 = vpack.c.bf16 %v1545, %v1545
      %v1554 = vpack.c.bf16 %v1548, %v1548
      %v1555 = vpack.c.bf16 %v1550, %v1550
      %v1556 = vld [vmem:[%s1 + $0x300] sm:$0x3]
      %v1557 = vld [vmem:[%s1 + $0x30c] sm:$0x3]
      %v1559 = vsel %vm817, %v1553, 0
      %v1562 = vsel %vm1077, %v1557, 0
      %1564 = vmatpush.bf16.msra.mxu0 0
      %1565 = vmatpush.bf16.msra.mxu0 0
      %1566 = vmatpush.bf16.msra.mxu0 0
      %1567 = vmatpush.bf16.msra.mxu0 0
      %1568 = vmatpush.bf16.msra.mxu0 0
      %1569 = vmatpush.bf16.msra.mxu0 0
      %1570 = vmatpush.bf16.msra.mxu0 0
      %1571 = vmatpush.bf16.msra.mxu0 %v1562
      %1572 = vmatmul.bf16.gmra.mxu0 %v1559
      %v1573 = vpop.f32.mrf.mxu0
      %v1574 = vadd.f32 0.0, %v1573
      %v1575 = vpop.f32.mrf.mxu0
      %1576 = vdwg.mxu0
      %v1578 = vsel %vm817, %v1552, 0
      %v1581 = vsel %vm1077, %v1556, 0
      %1583 = vmatpush.bf16.msra.mxu0 0
      %1584 = vmatpush.bf16.msra.mxu0 0
      %1585 = vmatpush.bf16.msra.mxu0 0
      %1586 = vmatpush.bf16.msra.mxu0 0
      %1587 = vmatpush.bf16.msra.mxu0 0
      %1588 = vmatpush.bf16.msra.mxu0 0
      %1589 = vmatpush.bf16.msra.mxu0 0
      %1590 = vmatpush.bf16.msra.mxu0 %v1581
      %1591 = vmatmul.bf16.gmra.mxu0 %v1578
      %v1592 = vpop.f32.mrf.mxu0
      %v1593 = vadd.f32 %v1574, %v1592
      %v1594 = vpop.f32.mrf.mxu0
      %1595 = vdwg.mxu0
      %v1596 = vld [vmem:[%s1 + $0x318] sm:$0x3]
      %v1598 = vsel %vm817, %v1554, 0
      %v1601 = vsel %vm1077, %v1596, 0
      %1603 = vmatpush.bf16.msra.mxu0 0
      %1604 = vmatpush.bf16.msra.mxu0 0
      %1605 = vmatpush.bf16.msra.mxu0 0
      %1606 = vmatpush.bf16.msra.mxu0 0
      %1607 = vmatpush.bf16.msra.mxu0 0
      %1608 = vmatpush.bf16.msra.mxu0 0
      %1609 = vmatpush.bf16.msra.mxu0 0
      %1610 = vmatpush.bf16.msra.mxu0 %v1601
      %1611 = vmatmul.bf16.gmra.mxu0 %v1598
      %v1612 = vpop.f32.mrf.mxu0
      %v1613 = vadd.f32 0.0, %v1612
      %v1614 = vpop.f32.mrf.mxu0
      %1615 = vdwg.mxu0
      %v1616 = vadd.f32 %v1593, %v1613
      %v1617 = vld [vmem:[%s1 + $0x324] sm:$0x3]
      %v1619 = vsel %vm817, %v1555, 0
      %v1622 = vsel %vm1077, %v1617, 0
      %1624 = vmatpush.bf16.msra.mxu0 0
      %1625 = vmatpush.bf16.msra.mxu0 0
      %1626 = vmatpush.bf16.msra.mxu0 0
      %1627 = vmatpush.bf16.msra.mxu0 0
      %1628 = vmatpush.bf16.msra.mxu0 0
      %1629 = vmatpush.bf16.msra.mxu0 0
      %1630 = vmatpush.bf16.msra.mxu0 0
      %1631 = vmatpush.bf16.msra.mxu0 %v1622
      %1632 = vmatmul.bf16.gmra.mxu0 %v1619
      %v1633 = vpop.f32.mrf.mxu0
      %v1634 = vadd.f32 0.0, %v1633
      %v1635 = vpop.f32.mrf.mxu0
      %1636 = vdwg.mxu0
      %v1637 = vadd.f32 %v1616, %v1634
      %v1638 = vld [vmem:[%s2 + $0x58] sm:$0xff]
      %1640 = vset.pattern.permute.xlu0 0
      %1641 = vperm.xlu0 %1640, %v1638
      %v1642 = vpop.permute.xlu0 %1641
      %v1644 = vadd.f32 %v1637, %v1642
      %v1645 = vpack.c.bf16 %v1644, %v1644
      %v1647 = vunpack.c.l.b16 %v1645
      %v1648 = vpack.c.b16 %v1647, %v1647
      %1649 = vrot.lane.b32.xlu0 %v1648, 5
      %v1650 = vpop.permute.xlu0 %1649
      %v1652 = vsel %vm807, 0, %v1650
      %v1654 = vsel %vm813, %v1652, 0
      %1655 = vrot.lane.b32.xlu0 %v1648, 4
      %v1656 = vpop.permute.xlu0 %1655
      %v1658 = vsel %vm817, 0, %v1656
      %1659 = vrot.lane.b32.xlu0 %v1648, 3
      %v1660 = vpop.permute.xlu0 %1659
      %v1662 = vsel %vm822, 0, %v1660
      %v1664 = vsel %vm828, %v1662, 0
      %1665 = vrot.lane.b32.xlu0 %v1648, 1
      %v1666 = vpop.permute.xlu0 %1665
      %v1668 = vsel %vm300, 0, %v1666
      %v1670 = vsel %vm813, %v1668, 0
      %1671 = vrot.lane.b32.xlu0 %v1648, 127
      %v1672 = vpop.permute.xlu0 %1671
      %v1674 = vsel %vm265, %v1672, 0
      %v1676 = vsel %vm828, %v1674, 0
      %1677 = vrot.lane.b32.xlu0 %v1648, 125
      %v1678 = vpop.permute.xlu0 %1677
      %v1680 = vsel %vm844, %v1678, 0
      %v1682 = vsel %vm813, %v1680, 0
      %1683 = vrot.lane.b32.xlu0 %v1648, 124
      %v1684 = vpop.permute.xlu0 %1683
      %v1686 = vsel %vm851, %v1684, 0
      %1687 = vrot.lane.b32.xlu0 %v1648, 123
      %v1688 = vpop.permute.xlu0 %1687
      %v1690 = vsel %vm856, %v1688, 0
      %v1692 = vsel %vm828, %v1690, 0
      %v1693 = vld [vmem:[#allocation4] sm:$0xf]
      %v1695 = vunpack.c.l.b16 %v1693
      %v1696 = vpack.c.b16 %v1695, %v1695
      %1697 = vrot.lane.b32.xlu0 %v1696, 5
      %v1698 = vpop.permute.xlu0 %1697
      %v1700 = vsel %vm807, 0, %v1698
      %v1702 = vsel %vm813, %v1700, 0
      %1703 = vrot.lane.b32.xlu0 %v1696, 4
      %v1704 = vpop.permute.xlu0 %1703
      %v1706 = vsel %vm817, 0, %v1704
      %1707 = vrot.lane.b32.xlu0 %v1696, 3
      %v1708 = vpop.permute.xlu0 %1707
      %v1710 = vsel %vm822, 0, %v1708
      %v1712 = vsel %vm828, %v1710, 0
      %1713 = vrot.lane.b32.xlu0 %v1696, 1
      %v1714 = vpop.permute.xlu0 %1713
      %v1716 = vsel %vm300, 0, %v1714
      %v1718 = vsel %vm813, %v1716, 0
      %1719 = vrot.lane.b32.xlu0 %v1696, 127
      %v1720 = vpop.permute.xlu0 %1719
      %v1722 = vsel %vm265, %v1720, 0
      %v1724 = vsel %vm828, %v1722, 0
      %1725 = vrot.lane.b32.xlu0 %v1696, 125
      %v1726 = vpop.permute.xlu0 %1725
      %v1728 = vsel %vm844, %v1726, 0
      %v1730 = vsel %vm813, %v1728, 0
      %1731 = vrot.lane.b32.xlu0 %v1696, 124
      %v1732 = vpop.permute.xlu0 %1731
      %v1734 = vsel %vm851, %v1732, 0
      %1735 = vrot.lane.b32.xlu0 %v1696, 123
      %v1736 = vpop.permute.xlu0 %1735
      %v1738 = vsel %vm856, %v1736, 0
      %v1740 = vsel %vm828, %v1738, 0
      %v1742 = vrot.slane %v1658, 4
      %v1744 = vrot.slane %v1670, 4
      %v1746 = vrot.slane %v1676, 4
      %v1748 = vrot.slane %v1686, 4
      %v1750 = vrot.slane %v1702, 4
      %v1752 = vrot.slane %v1712, 4
      %v1754 = vrot.slane %v1730, 4
      %v1757 = vsel %vm368, %v1654, %v1742
      %v1761 = vsel %vm368, %v1664, %v1744
      %v1765 = vsel %vm368, %v1645, %v1746
      %v1769 = vsel %vm368, %v1682, %v1748
      %v1773 = vsel %vm368, %v1692, %v1750
      %v1776 = vsel %vm368, %v1706, %v1752
      %v1780 = vsel %vm368, %v1718, %v1696
      %v1784 = vsel %vm368, %v1724, %v1754
      %v1787 = vrot.slane %v1740, 4
      %v1789 = vsel %vm368, %v1734, %v1787
      %v1791 = vld [vmem:[%s1 + $0x360] sm:$0xff]
      %v1792 = vld [vmem:[%s2 + $0x60] sm:$0xff]
      %1794 = vset.pattern.permute.xlu0 0
      %1795 = vperm.xlu0 %1794, %v1792
      %v1796 = vpop.permute.xlu0 %1795
      %v1799 = vunpack.c.l.b16 %v1791
      %v1800 = vunpack.c.h.b16 %v1791
      %v1801 = vpack.c.b16 %v1799, %v1799
      %v1802 = vpack.c.b16 %v1800, %v1800
      %v1805 = vsel %vm255, %v1802, 0
      %1807 = vmatpush.bf16.msra.mxu0 %v1784
      %1808 = vmatpush.bf16.msra.mxu0 %v1780
      %1809 = vmatpush.bf16.msra.mxu0 %v1776
      %1810 = vmatpush.bf16.msra.mxu0 %v1773
      %1811 = vmatpush.bf16.msra.mxu0 %v1769
      %1812 = vmatpush.bf16.msra.mxu0 %v1765
      %1813 = vmatpush.bf16.msra.mxu0 %v1761
      %1814 = vmatpush.bf16.msra.mxu0 %v1757
      %1815 = vmatmul.bf16.gmra.mxu0 %v1801
      %v1816 = vpop.f32.mrf.mxu0
      %v1817 = vadd.f32 %v1796, %v1816
      %v1818 = vpop.f32.mrf.mxu0
      %1819 = vdwg.mxu0
      %1820 = vmatpush.bf16.msra.mxu0 0
      %1821 = vmatpush.bf16.msra.mxu0 0
      %1822 = vmatpush.bf16.msra.mxu0 0
      %1823 = vmatpush.bf16.msra.mxu0 0
      %1824 = vmatpush.bf16.msra.mxu0 0
      %1825 = vmatpush.bf16.msra.mxu0 0
      %1826 = vmatpush.bf16.msra.mxu0 0
      %1827 = vmatpush.bf16.msra.mxu0 %v1789
      %1828 = vmatmul.bf16.gmra.mxu0 %v1805
      %v1829 = vpop.f32.mrf.mxu0
      %v1830 = vadd.f32 %v1817, %v1829
      %v1831 = vpop.f32.mrf.mxu0
      %1832 = vdwg.mxu0
      %v1833 = vmax.f32 %v1830, 0.0
      %v1834 = vpack.c.bf16 %v1833, %v1833
      %v1835 = vld [vmem:[%s1 + $0x3cc] sm:$0xf]
      %v1836 = vld [vmem:[%s1 + $0x3d8] sm:$0xf]
      %v1837 = vld [vmem:[%s1 + $0x3e4] sm:$0xf]
      %v1838 = vld [vmem:[%s1 + $0x3f0] sm:$0xf]
      %v1843 = vunpack.c.l.b16 %v1835
      %v1844 = vunpack.c.l.b16 %v1836
      %v1845 = vunpack.c.l.b16 %v1837
      %v1846 = vunpack.c.l.b16 %v1838
      %v1847 = vpack.c.b16 %v1844, %v1843
      %v1848 = vpack.c.b16 %v1846, %v1845
      %v1850 = vsel %vm639, %v1847, 0
      %v1853 = vsel %vm639, %v1848, 0
      %v1856 = vsel %vm368, %v1834, 0
      %1858 = vmatpush.bf16.msra.mxu0 0
      %1859 = vmatpush.bf16.msra.mxu0 0
      %1860 = vmatpush.bf16.msra.mxu0 0
      %1861 = vmatpush.bf16.msra.mxu0 0
      %1862 = vmatpush.bf16.msra.mxu0 0
      %1863 = vmatpush.bf16.msra.mxu0 0
      %1864 = vmatpush.bf16.msra.mxu0 0
      %1865 = vmatpush.bf16.msra.mxu0 %v1856
      %1866 = vmatmul.bf16.gmra.mxu0 %v1850
      %v1867 = vpop.f32.mrf.mxu0
      %v1868 = vadd.f32 0.0, %v1867
      %v1869 = vpop.f32.mrf.mxu0
      %v1870 = vadd.f32 0.0, %v1869
      %1871 = vmatmul.bf16.gmra.mxu0 %v1853
      %v1872 = vpop.f32.mrf.mxu0
      %v1873 = vadd.f32 0.0, %v1872
      %v1874 = vpop.f32.mrf.mxu0
      %v1875 = vadd.f32 0.0, %v1874
      %1876 = vdwg.mxu0
      %v1877 = vpack.c.bf16 %v1868, %v1868
      %v1878 = vpack.c.bf16 %v1870, %v1870
      %v1879 = vpack.c.bf16 %v1873, %v1873
      %v1880 = vpack.c.bf16 %v1875, %v1875
      %v1881 = vld [vmem:[%s1 + $0x36c] sm:$0xf]
      %v1882 = vld [vmem:[%s1 + $0x378] sm:$0xf]
      %v1883 = vld [vmem:[%s1 + $0x384] sm:$0xf]
      %v1884 = vld [vmem:[%s1 + $0x390] sm:$0xf]
      %v1887 = vunpack.c.l.b16 %v1883
      %v1888 = vunpack.c.l.b16 %v1884
      %v1889 = vpack.c.b16 %v1888, %v1887
      %v1892 = vsel %vm255, %v1878, 0
      %1894 = vmatpush.bf16.msra.mxu0 0
      %1895 = vmatpush.bf16.msra.mxu0 0
      %1896 = vmatpush.bf16.msra.mxu0 0
      %1897 = vmatpush.bf16.msra.mxu0 0
      %1898 = vmatpush.bf16.msra.mxu0 0
      %1899 = vmatpush.bf16.msra.mxu0 0
      %1900 = vmatpush.bf16.msra.mxu0 0
      %1901 = vmatpush.bf16.msra.mxu0 %v1889
      %1902 = vmatmul.bf16.gmra.mxu0 %v1892
      %v1903 = vpop.f32.mrf.mxu0
      %v1904 = vadd.f32 0.0, %v1903
      %v1905 = vpop.f32.mrf.mxu0
      %1906 = vdwg.mxu0
      %v1909 = vunpack.c.l.b16 %v1881
      %v1910 = vunpack.c.l.b16 %v1882
      %v1911 = vpack.c.b16 %v1910, %v1909
      %v1914 = vsel %vm255, %v1877, 0
      %1916 = vmatpush.bf16.msra.mxu0 0
      %1917 = vmatpush.bf16.msra.mxu0 0
      %1918 = vmatpush.bf16.msra.mxu0 0
      %1919 = vmatpush.bf16.msra.mxu0 0
      %1920 = vmatpush.bf16.msra.mxu0 0
      %1921 = vmatpush.bf16.msra.mxu0 0
      %1922 = vmatpush.bf16.msra.mxu0 0
      %1923 = vmatpush.bf16.msra.mxu0 %v1911
      %1924 = vmatmul.bf16.gmra.mxu0 %v1914
      %v1925 = vpop.f32.mrf.mxu0
      %v1926 = vadd.f32 %v1904, %v1925
      %v1927 = vpop.f32.mrf.mxu0
      %1928 = vdwg.mxu0
      %v1929 = vld [vmem:[%s1 + $0x39c] sm:$0xf]
      %v1930 = vld [vmem:[%s1 + $0x3a8] sm:$0xf]
      %v1933 = vunpack.c.l.b16 %v1929
      %v1934 = vunpack.c.l.b16 %v1930
      %v1935 = vpack.c.b16 %v1934, %v1933
      %v1938 = vsel %vm255, %v1879, 0
      %1940 = vmatpush.bf16.msra.mxu0 0
      %1941 = vmatpush.bf16.msra.mxu0 0
      %1942 = vmatpush.bf16.msra.mxu0 0
      %1943 = vmatpush.bf16.msra.mxu0 0
      %1944 = vmatpush.bf16.msra.mxu0 0
      %1945 = vmatpush.bf16.msra.mxu0 0
      %1946 = vmatpush.bf16.msra.mxu0 0
      %1947 = vmatpush.bf16.msra.mxu0 %v1935
      %1948 = vmatmul.bf16.gmra.mxu0 %v1938
      %v1949 = vpop.f32.mrf.mxu0
      %v1950 = vadd.f32 0.0, %v1949
      %v1951 = vpop.f32.mrf.mxu0
      %1952 = vdwg.mxu0
      %v1953 = vadd.f32 %v1926, %v1950
      %v1954 = vld [vmem:[%s1 + $0x3b4] sm:$0xf]
      %v1955 = vld [vmem:[%s1 + $0x3c0] sm:$0xf]
      %v1958 = vunpack.c.l.b16 %v1954
      %v1959 = vunpack.c.l.b16 %v1955
      %v1960 = vpack.c.b16 %v1959, %v1958
      %v1963 = vsel %vm255, %v1880, 0
      %1965 = vmatpush.bf16.msra.mxu0 0
      %1966 = vmatpush.bf16.msra.mxu0 0
      %1967 = vmatpush.bf16.msra.mxu0 0
      %1968 = vmatpush.bf16.msra.mxu0 0
      %1969 = vmatpush.bf16.msra.mxu0 0
      %1970 = vmatpush.bf16.msra.mxu0 0
      %1971 = vmatpush.bf16.msra.mxu0 0
      %1972 = vmatpush.bf16.msra.mxu0 %v1960
      %1973 = vmatmul.bf16.gmra.mxu0 %v1963
      %v1974 = vpop.f32.mrf.mxu0
      %v1975 = vadd.f32 0.0, %v1974
      %v1976 = vpop.f32.mrf.mxu0
      %1977 = vdwg.mxu0
      %v1978 = vadd.f32 %v1953, %v1975
      %v1979 = vld [vmem:[%s2 + $0x68] sm:$0xff]
      %1981 = vset.pattern.permute.xlu0 0
      %1982 = vperm.xlu0 %1981, %v1979
      %v1983 = vpop.permute.xlu0 %1982
      %v1985 = vadd.f32 %v1978, %v1983
      %v1986 = vpack.c.bf16 %v1985, %v1985
      %v1988 = vunpack.c.l.b16 %v1986
      %v1989 = vpack.c.b16 %v1988, %v1988
      %1990 = vrot.lane.b32.xlu0 %v1989, 9
      %v1991 = vpop.permute.xlu0 %1990
      %v1993 = vsel %vm629, 0, %v1991
      %v1995 = vsel %vm635, %v1993, 0
      %1996 = vrot.lane.b32.xlu0 %v1989, 8
      %v1997 = vpop.permute.xlu0 %1996
      %v1999 = vsel %vm639, 0, %v1997
      %2000 = vrot.lane.b32.xlu0 %v1989, 7
      %v2001 = vpop.permute.xlu0 %2000
      %v2003 = vsel %vm644, 0, %v2001
      %v2005 = vsel %vm650, %v2003, 0
      %2006 = vrot.lane.b32.xlu0 %v1989, 1
      %v2007 = vpop.permute.xlu0 %2006
      %v2009 = vsel %vm300, 0, %v2007
      %v2011 = vsel %vm635, %v2009, 0
      %2012 = vrot.lane.b32.xlu0 %v1989, 127
      %v2013 = vpop.permute.xlu0 %2012
      %v2015 = vsel %vm660, %v2013, 0
      %v2017 = vsel %vm650, %v2015, 0
      %2018 = vrot.lane.b32.xlu0 %v1989, 121
      %v2019 = vpop.permute.xlu0 %2018
      %v2021 = vsel %vm667, %v2019, 0
      %v2023 = vsel %vm635, %v2021, 0
      %2024 = vrot.lane.b32.xlu0 %v1989, 120
      %v2025 = vpop.permute.xlu0 %2024
      %v2027 = vsel %vm674, %v2025, 0
      %2028 = vrot.lane.b32.xlu0 %v1989, 119
      %v2029 = vpop.permute.xlu0 %2028
      %v2031 = vsel %vm679, %v2029, 0
      %v2033 = vsel %vm650, %v2031, 0
      %v2034 = vld [vmem:[#allocation3] sm:$0xf]
      %v2036 = vunpack.c.l.b16 %v2034
      %v2037 = vpack.c.b16 %v2036, %v2036
      %2038 = vrot.lane.b32.xlu0 %v2037, 9
      %v2039 = vpop.permute.xlu0 %2038
      %v2041 = vsel %vm629, 0, %v2039
      %v2043 = vsel %vm635, %v2041, 0
      %2044 = vrot.lane.b32.xlu0 %v2037, 8
      %v2045 = vpop.permute.xlu0 %2044
      %v2047 = vsel %vm639, 0, %v2045
      %2048 = vrot.lane.b32.xlu0 %v2037, 7
      %v2049 = vpop.permute.xlu0 %2048
      %v2051 = vsel %vm644, 0, %v2049
      %v2053 = vsel %vm650, %v2051, 0
      %2054 = vrot.lane.b32.xlu0 %v2037, 1
      %v2055 = vpop.permute.xlu0 %2054
      %v2057 = vsel %vm300, 0, %v2055
      %v2059 = vsel %vm635, %v2057, 0
      %2060 = vrot.lane.b32.xlu0 %v2037, 127
      %v2061 = vpop.permute.xlu0 %2060
      %v2063 = vsel %vm660, %v2061, 0
      %v2065 = vsel %vm650, %v2063, 0
      %2066 = vrot.lane.b32.xlu0 %v2037, 121
      %v2067 = vpop.permute.xlu0 %2066
      %v2069 = vsel %vm667, %v2067, 0
      %v2071 = vsel %vm635, %v2069, 0
      %2072 = vrot.lane.b32.xlu0 %v2037, 120
      %v2073 = vpop.permute.xlu0 %2072
      %v2075 = vsel %vm674, %v2073, 0
      %2076 = vrot.lane.b32.xlu0 %v2037, 119
      %v2077 = vpop.permute.xlu0 %2076
      %v2079 = vsel %vm679, %v2077, 0
      %v2081 = vsel %vm650, %v2079, 0
      %v2083 = vrot.slane %v1999, 4
      %v2085 = vrot.slane %v2011, 4
      %v2087 = vrot.slane %v2017, 4
      %v2089 = vrot.slane %v2027, 4
      %v2091 = vrot.slane %v2043, 4
      %v2093 = vrot.slane %v2053, 4
      %v2095 = vrot.slane %v2071, 4
      %v2098 = vsel %vm368, %v1995, %v2083
      %v2102 = vsel %vm368, %v2005, %v2085
      %v2106 = vsel %vm368, %v1986, %v2087
      %v2110 = vsel %vm368, %v2023, %v2089
      %v2114 = vsel %vm368, %v2033, %v2091
      %v2117 = vsel %vm368, %v2047, %v2093
      %v2121 = vsel %vm368, %v2059, %v2037
      %v2125 = vsel %vm368, %v2065, %v2095
      %v2128 = vrot.slane %v2081, 4
      %v2130 = vsel %vm368, %v2075, %v2128
      %v2132 = vld [vmem:[%s1 + $0x3fc] sm:$0xff]
      %v2133 = vld [vmem:[%s2 + $0x70] sm:$0xff]
      %2135 = vset.pattern.permute.xlu0 0
      %2136 = vperm.xlu0 %2135, %v2133
      %v2137 = vpop.permute.xlu0 %2136
      %v2140 = vunpack.c.l.b16 %v2132
      %v2141 = vunpack.c.h.b16 %v2132
      %v2142 = vpack.c.b16 %v2140, %v2140
      %v2143 = vpack.c.b16 %v2141, %v2141
      %v2146 = vsel %vm255, %v2143, 0
      %2148 = vmatpush.bf16.msra.mxu0 %v2125
      %2149 = vmatpush.bf16.msra.mxu0 %v2121
      %2150 = vmatpush.bf16.msra.mxu0 %v2117
      %2151 = vmatpush.bf16.msra.mxu0 %v2114
      %2152 = vmatpush.bf16.msra.mxu0 %v2110
      %2153 = vmatpush.bf16.msra.mxu0 %v2106
      %2154 = vmatpush.bf16.msra.mxu0 %v2102
      %2155 = vmatpush.bf16.msra.mxu0 %v2098
      %2156 = vmatmul.bf16.gmra.mxu0 %v2142
      %v2157 = vpop.f32.mrf.mxu0
      %v2158 = vadd.f32 %v2137, %v2157
      %v2159 = vpop.f32.mrf.mxu0
      %2160 = vdwg.mxu0
      %2161 = vmatpush.bf16.msra.mxu0 0
      %2162 = vmatpush.bf16.msra.mxu0 0
      %2163 = vmatpush.bf16.msra.mxu0 0
      %2164 = vmatpush.bf16.msra.mxu0 0
      %2165 = vmatpush.bf16.msra.mxu0 0
      %2166 = vmatpush.bf16.msra.mxu0 0
      %2167 = vmatpush.bf16.msra.mxu0 0
      %2168 = vmatpush.bf16.msra.mxu0 %v2130
      %2169 = vmatmul.bf16.gmra.mxu0 %v2146
      %v2170 = vpop.f32.mrf.mxu0
      %v2171 = vadd.f32 %v2158, %v2170
      %v2172 = vpop.f32.mrf.mxu0
      %2173 = vdwg.mxu0
      %v2174 = vmax.f32 %v2171, 0.0
      %v2175 = vpack.c.bf16 %v2174, %v2174
      %v2176 = vld [vmem:[%s1 + $0x588] sm:$0xf]
      %v2177 = vld [vmem:[%s1 + $0x594] sm:$0xf]
      %v2178 = vld [vmem:[%s1 + $0x5a0] sm:$0xf]
      %v2179 = vld [vmem:[%s1 + $0x5ac] sm:$0xf]
      %v2184 = vunpack.c.l.b16 %v2176
      %v2185 = vunpack.c.l.b16 %v2177
      %v2186 = vunpack.c.l.b16 %v2178
      %v2187 = vunpack.c.l.b16 %v2179
      %v2188 = vpack.c.b16 %v2185, %v2184
      %v2189 = vpack.c.b16 %v2187, %v2186
      %v2191 = vsel %vm639, %v2188, 0
      %v2194 = vsel %vm639, %v2189, 0
      %v2197 = vsel %vm368, %v2175, 0
      %2199 = vmatpush.bf16.msra.mxu0 0
      %2200 = vmatpush.bf16.msra.mxu0 0
      %2201 = vmatpush.bf16.msra.mxu0 0
      %2202 = vmatpush.bf16.msra.mxu0 0
      %2203 = vmatpush.bf16.msra.mxu0 0
      %2204 = vmatpush.bf16.msra.mxu0 0
      %2205 = vmatpush.bf16.msra.mxu0 0
      %2206 = vmatpush.bf16.msra.mxu0 %v2197
      %2207 = vmatmul.bf16.gmra.mxu0 %v2191
      %v2208 = vpop.f32.mrf.mxu0
      %v2209 = vadd.f32 0.0, %v2208
      %v2210 = vpop.f32.mrf.mxu0
      %v2211 = vadd.f32 0.0, %v2210
      %2212 = vmatmul.bf16.gmra.mxu0 %v2194
      %v2213 = vpop.f32.mrf.mxu0
      %v2214 = vadd.f32 0.0, %v2213
      %v2215 = vpop.f32.mrf.mxu0
      %v2216 = vadd.f32 0.0, %v2215
      %2217 = vdwg.mxu0
      %v2218 = vpack.c.bf16 %v2209, %v2209
      %v2219 = vpack.c.bf16 %v2211, %v2211
      %v2220 = vpack.c.bf16 %v2214, %v2214
      %v2221 = vpack.c.bf16 %v2216, %v2216
      %v2222 = vld [vmem:[%s1 + $0x408] sm:$0xff]
      %v2223 = vld [vmem:[%s1 + $0x414] sm:$0xff]
      %v2224 = vld [vmem:[%s1 + $0x420] sm:$0xff]
      %v2225 = vld [vmem:[%s1 + $0x42c] sm:$0xff]
      %v2226 = vld [vmem:[%s1 + $0x438] sm:$0xff]
      %v2227 = vld [vmem:[%s1 + $0x444] sm:$0xff]
      %v2228 = vld [vmem:[%s1 + $0x450] sm:$0xff]
      %v2229 = vld [vmem:[%s1 + $0x45c] sm:$0xff]
      %v2230 = vld [vmem:[%s1 + $0x468] sm:$0xff]
      %v2231 = vld [vmem:[%s1 + $0x474] sm:$0xff]
      %v2232 = vld [vmem:[%s1 + $0x480] sm:$0xff]
      %v2233 = vld [vmem:[%s1 + $0x48c] sm:$0xff]
      %v2234 = vld [vmem:[%s1 + $0x498] sm:$0xff]
      %v2235 = vld [vmem:[%s1 + $0x4a4] sm:$0xff]
      %v2236 = vld [vmem:[%s1 + $0x4b0] sm:$0xff]
      %v2237 = vld [vmem:[%s1 + $0x4bc] sm:$0xff]
      %v2246 = vunpack.c.l.b16 %v2230
      %v2247 = vunpack.c.h.b16 %v2230
      %v2248 = vunpack.c.l.b16 %v2231
      %v2249 = vunpack.c.h.b16 %v2231
      %v2250 = vunpack.c.l.b16 %v2232
      %v2251 = vunpack.c.h.b16 %v2232
      %v2252 = vunpack.c.l.b16 %v2233
      %v2253 = vunpack.c.h.b16 %v2233
      %v2254 = vunpack.c.l.b16 %v2234
      %v2255 = vunpack.c.h.b16 %v2234
      %v2256 = vunpack.c.l.b16 %v2235
      %v2257 = vunpack.c.h.b16 %v2235
      %v2258 = vunpack.c.l.b16 %v2236
      %v2259 = vunpack.c.h.b16 %v2236
      %v2260 = vunpack.c.l.b16 %v2237
      %v2261 = vunpack.c.h.b16 %v2237
      %v2262 = vpack.c.b16 %v2248, %v2246
      %v2263 = vpack.c.b16 %v2249, %v2247
      %v2264 = vpack.c.b16 %v2252, %v2250
      %v2265 = vpack.c.b16 %v2253, %v2251
      %v2266 = vpack.c.b16 %v2256, %v2254
      %v2267 = vpack.c.b16 %v2257, %v2255
      %v2268 = vpack.c.b16 %v2260, %v2258
      %v2269 = vpack.c.b16 %v2261, %v2259
      %v2279 = vsel %vm770, %v2219, 0
      %2281 = vmatpush.bf16.msra.mxu0 0
      %2282 = vmatpush.bf16.msra.mxu0 0
      %2283 = vmatpush.bf16.msra.mxu0 0
      %2284 = vmatpush.bf16.msra.mxu0 0
      %2285 = vmatpush.bf16.msra.mxu0 %v2268
      %2286 = vmatpush.bf16.msra.mxu0 %v2266
      %2287 = vmatpush.bf16.msra.mxu0 %v2264
      %2288 = vmatpush.bf16.msra.mxu0 %v2262
      %2289 = vmatmul.bf16.gmra.mxu0 %v2279
      %v2290 = vpop.f32.mrf.mxu0
      %v2291 = vadd.f32 0.0, %v2290
      %v2292 = vpop.f32.mrf.mxu0
      %2293 = vdwg.mxu0
      %2294 = vmatpush.bf16.msra.mxu0 0
      %2295 = vmatpush.bf16.msra.mxu0 0
      %2296 = vmatpush.bf16.msra.mxu0 0
      %2297 = vmatpush.bf16.msra.mxu0 0
      %2298 = vmatpush.bf16.msra.mxu0 %v2269
      %2299 = vmatpush.bf16.msra.mxu0 %v2267
      %2300 = vmatpush.bf16.msra.mxu0 %v2265
      %2301 = vmatpush.bf16.msra.mxu0 %v2263
      %2302 = vmatmul.bf16.gmra.mxu0 %v2279
      %v2303 = vpop.f32.mrf.mxu0
      %v2304 = vadd.f32 0.0, %v2303
      %v2305 = vpop.f32.mrf.mxu0
      %2306 = vdwg.mxu0
      %v2315 = vunpack.c.l.b16 %v2222
      %v2316 = vunpack.c.h.b16 %v2222
      %v2317 = vunpack.c.l.b16 %v2223
      %v2318 = vunpack.c.h.b16 %v2223
      %v2319 = vunpack.c.l.b16 %v2224
      %v2320 = vunpack.c.h.b16 %v2224
      %v2321 = vunpack.c.l.b16 %v2225
      %v2322 = vunpack.c.h.b16 %v2225
      %v2323 = vunpack.c.l.b16 %v2226
      %v2324 = vunpack.c.h.b16 %v2226
      %v2325 = vunpack.c.l.b16 %v2227
      %v2326 = vunpack.c.h.b16 %v2227
      %v2327 = vunpack.c.l.b16 %v2228
      %v2328 = vunpack.c.h.b16 %v2228
      %v2329 = vunpack.c.l.b16 %v2229
      %v2330 = vunpack.c.h.b16 %v2229
      %v2331 = vpack.c.b16 %v2317, %v2315
      %v2332 = vpack.c.b16 %v2318, %v2316
      %v2333 = vpack.c.b16 %v2321, %v2319
      %v2334 = vpack.c.b16 %v2322, %v2320
      %v2335 = vpack.c.b16 %v2325, %v2323
      %v2336 = vpack.c.b16 %v2326, %v2324
      %v2337 = vpack.c.b16 %v2329, %v2327
      %v2338 = vpack.c.b16 %v2330, %v2328
      %v2348 = vsel %vm770, %v2218, 0
      %2350 = vmatpush.bf16.msra.mxu0 0
      %2351 = vmatpush.bf16.msra.mxu0 0
      %2352 = vmatpush.bf16.msra.mxu0 0
      %2353 = vmatpush.bf16.msra.mxu0 0
      %2354 = vmatpush.bf16.msra.mxu0 %v2337
      %2355 = vmatpush.bf16.msra.mxu0 %v2335
      %2356 = vmatpush.bf16.msra.mxu0 %v2333
      %2357 = vmatpush.bf16.msra.mxu0 %v2331
      %2358 = vmatmul.bf16.gmra.mxu0 %v2348
      %v2359 = vpop.f32.mrf.mxu0
      %v2360 = vadd.f32 %v2291, %v2359
      %v2361 = vpop.f32.mrf.mxu0
      %2362 = vdwg.mxu0
      %2363 = vmatpush.bf16.msra.mxu0 0
      %2364 = vmatpush.bf16.msra.mxu0 0
      %2365 = vmatpush.bf16.msra.mxu0 0
      %2366 = vmatpush.bf16.msra.mxu0 0
      %2367 = vmatpush.bf16.msra.mxu0 %v2338
      %2368 = vmatpush.bf16.msra.mxu0 %v2336
      %2369 = vmatpush.bf16.msra.mxu0 %v2334
      %2370 = vmatpush.bf16.msra.mxu0 %v2332
      %2371 = vmatmul.bf16.gmra.mxu0 %v2348
      %v2372 = vpop.f32.mrf.mxu0
      %v2373 = vadd.f32 %v2304, %v2372
      %v2374 = vpop.f32.mrf.mxu0
      %2375 = vdwg.mxu0
      %v2376 = vld [vmem:[%s1 + $0x4c8] sm:$0xff]
      %v2377 = vld [vmem:[%s1 + $0x4d4] sm:$0xff]
      %v2378 = vld [vmem:[%s1 + $0x4e0] sm:$0xff]
      %v2379 = vld [vmem:[%s1 + $0x4ec] sm:$0xff]
      %v2380 = vld [vmem:[%s1 + $0x4f8] sm:$0xff]
      %v2381 = vld [vmem:[%s1 + $0x504] sm:$0xff]
      %v2382 = vld [vmem:[%s1 + $0x510] sm:$0xff]
      %v2383 = vld [vmem:[%s1 + $0x51c] sm:$0xff]
      %v2392 = vunpack.c.l.b16 %v2376
      %v2393 = vunpack.c.h.b16 %v2376
      %v2394 = vunpack.c.l.b16 %v2377
      %v2395 = vunpack.c.h.b16 %v2377
      %v2396 = vunpack.c.l.b16 %v2378
      %v2397 = vunpack.c.h.b16 %v2378
      %v2398 = vunpack.c.l.b16 %v2379
      %v2399 = vunpack.c.h.b16 %v2379
      %v2400 = vunpack.c.l.b16 %v2380
      %v2401 = vunpack.c.h.b16 %v2380
      %v2402 = vunpack.c.l.b16 %v2381
      %v2403 = vunpack.c.h.b16 %v2381
      %v2404 = vunpack.c.l.b16 %v2382
      %v2405 = vunpack.c.h.b16 %v2382
      %v2406 = vunpack.c.l.b16 %v2383
      %v2407 = vunpack.c.h.b16 %v2383
      %v2408 = vpack.c.b16 %v2394, %v2392
      %v2409 = vpack.c.b16 %v2395, %v2393
      %v2410 = vpack.c.b16 %v2398, %v2396
      %v2411 = vpack.c.b16 %v2399, %v2397
      %v2412 = vpack.c.b16 %v2402, %v2400
      %v2413 = vpack.c.b16 %v2403, %v2401
      %v2414 = vpack.c.b16 %v2406, %v2404
      %v2415 = vpack.c.b16 %v2407, %v2405
      %v2425 = vsel %vm770, %v2220, 0
      %2427 = vmatpush.bf16.msra.mxu0 0
      %2428 = vmatpush.bf16.msra.mxu0 0
      %2429 = vmatpush.bf16.msra.mxu0 0
      %2430 = vmatpush.bf16.msra.mxu0 0
      %2431 = vmatpush.bf16.msra.mxu0 %v2414
      %2432 = vmatpush.bf16.msra.mxu0 %v2412
      %2433 = vmatpush.bf16.msra.mxu0 %v2410
      %2434 = vmatpush.bf16.msra.mxu0 %v2408
      %2435 = vmatmul.bf16.gmra.mxu0 %v2425
      %v2436 = vpop.f32.mrf.mxu0
      %v2437 = vadd.f32 0.0, %v2436
      %v2438 = vpop.f32.mrf.mxu0
      %2439 = vdwg.mxu0
      %2440 = vmatpush.bf16.msra.mxu0 0
      %2441 = vmatpush.bf16.msra.mxu0 0
      %2442 = vmatpush.bf16.msra.mxu0 0
      %2443 = vmatpush.bf16.msra.mxu0 0
      %2444 = vmatpush.bf16.msra.mxu0 %v2415
      %2445 = vmatpush.bf16.msra.mxu0 %v2413
      %2446 = vmatpush.bf16.msra.mxu0 %v2411
      %2447 = vmatpush.bf16.msra.mxu0 %v2409
      %2448 = vmatmul.bf16.gmra.mxu0 %v2425
      %v2449 = vpop.f32.mrf.mxu0
      %v2450 = vadd.f32 0.0, %v2449
      %v2451 = vpop.f32.mrf.mxu0
      %2452 = vdwg.mxu0
      %v2453 = vadd.f32 %v2360, %v2437
      %v2454 = vadd.f32 %v2373, %v2450
      %v2455 = vld [vmem:[%s1 + $0x528] sm:$0xff]
      %v2456 = vld [vmem:[%s1 + $0x534] sm:$0xff]
      %v2457 = vld [vmem:[%s1 + $0x540] sm:$0xff]
      %v2458 = vld [vmem:[%s1 + $0x54c] sm:$0xff]
      %v2459 = vld [vmem:[%s1 + $0x558] sm:$0xff]
      %v2460 = vld [vmem:[%s1 + $0x564] sm:$0xff]
      %v2461 = vld [vmem:[%s1 + $0x570] sm:$0xff]
      %v2462 = vld [vmem:[%s1 + $0x57c] sm:$0xff]
      %v2471 = vunpack.c.l.b16 %v2455
      %v2472 = vunpack.c.h.b16 %v2455
      %v2473 = vunpack.c.l.b16 %v2456
      %v2474 = vunpack.c.h.b16 %v2456
      %v2475 = vunpack.c.l.b16 %v2457
      %v2476 = vunpack.c.h.b16 %v2457
      %v2477 = vunpack.c.l.b16 %v2458
      %v2478 = vunpack.c.h.b16 %v2458
      %v2479 = vunpack.c.l.b16 %v2459
      %v2480 = vunpack.c.h.b16 %v2459
      %v2481 = vunpack.c.l.b16 %v2460
      %v2482 = vunpack.c.h.b16 %v2460
      %v2483 = vunpack.c.l.b16 %v2461
      %v2484 = vunpack.c.h.b16 %v2461
      %v2485 = vunpack.c.l.b16 %v2462
      %v2486 = vunpack.c.h.b16 %v2462
      %v2487 = vpack.c.b16 %v2473, %v2471
      %v2488 = vpack.c.b16 %v2474, %v2472
      %v2489 = vpack.c.b16 %v2477, %v2475
      %v2490 = vpack.c.b16 %v2478, %v2476
      %v2491 = vpack.c.b16 %v2481, %v2479
      %v2492 = vpack.c.b16 %v2482, %v2480
      %v2493 = vpack.c.b16 %v2485, %v2483
      %v2494 = vpack.c.b16 %v2486, %v2484
      %v2504 = vsel %vm770, %v2221, 0
      %2506 = vmatpush.bf16.msra.mxu0 0
      %2507 = vmatpush.bf16.msra.mxu0 0
      %2508 = vmatpush.bf16.msra.mxu0 0
      %2509 = vmatpush.bf16.msra.mxu0 0
      %2510 = vmatpush.bf16.msra.mxu0 %v2493
      %2511 = vmatpush.bf16.msra.mxu0 %v2491
      %2512 = vmatpush.bf16.msra.mxu0 %v2489
      %2513 = vmatpush.bf16.msra.mxu0 %v2487
      %2514 = vmatmul.bf16.gmra.mxu0 %v2504
      %v2515 = vpop.f32.mrf.mxu0
      %v2516 = vadd.f32 0.0, %v2515
      %v2517 = vpop.f32.mrf.mxu0
      %2518 = vdwg.mxu0
      %2519 = vmatpush.bf16.msra.mxu0 0
      %2520 = vmatpush.bf16.msra.mxu0 0
      %2521 = vmatpush.bf16.msra.mxu0 0
      %2522 = vmatpush.bf16.msra.mxu0 0
      %2523 = vmatpush.bf16.msra.mxu0 %v2494
      %2524 = vmatpush.bf16.msra.mxu0 %v2492
      %2525 = vmatpush.bf16.msra.mxu0 %v2490
      %2526 = vmatpush.bf16.msra.mxu0 %v2488
      %2527 = vmatmul.bf16.gmra.mxu0 %v2504
      %v2528 = vpop.f32.mrf.mxu0
      %v2529 = vadd.f32 0.0, %v2528
      %v2530 = vpop.f32.mrf.mxu0
      %2531 = vdwg.mxu0
      %v2532 = vadd.f32 %v2453, %v2516
      %v2533 = vadd.f32 %v2454, %v2529
      %v2534 = vld [vmem:[%s2 + $0x78] sm:$0xff]
      %2536 = vset.pattern.permute.xlu0 0
      %2537 = vperm.xlu0 %2536, %v2534
      %v2538 = vpop.permute.xlu0 %2537
      %v2540 = vadd.f32 %v2532, %v2538
      %v2541 = vadd.f32 %v2533, %v2538
      %v2542 = vpack.c.bf16 %v2541, %v2540
      %v2544 = vunpack.c.l.b16 %v2542
      %v2545 = vunpack.c.h.b16 %v2542
      %v2546 = vpack.c.b16 %v2544, %v2544
      %v2547 = vpack.c.b16 %v2545, %v2545
      %2548 = vrot.lane.b32.xlu0 %v2546, 17
      %v2549 = vpop.permute.xlu0 %2548
      %2550 = vrot.lane.b32.xlu0 %v2547, 17
      %v2551 = vpop.permute.xlu0 %2550
      %v2552 = vsel %vm217, %v2549, %v2551
      %v2555 = vsel %vm220, 0, %v2549
      %v2557 = vsel %vm239, %v2555, 0
      %v2558 = vsel %vm246, %v2552, 0
      %2559 = vrot.lane.b32.xlu0 %v2546, 16
      %v2560 = vpop.permute.xlu0 %2559
      %2561 = vrot.lane.b32.xlu0 %v2547, 16
      %v2562 = vpop.permute.xlu0 %2561
      %v2563 = vsel %vm253, %v2560, %v2562
      %v2565 = vsel %vm255, 0, %v2560
      %2566 = vrot.lane.b32.xlu0 %v2546, 15
      %v2567 = vpop.permute.xlu0 %2566
      %2568 = vrot.lane.b32.xlu0 %v2547, 15
      %v2569 = vpop.permute.xlu0 %2568
      %v2570 = vsel %vm262, %v2567, %v2569
      %v2573 = vsel %vm265, 0, %v2567
      %v2575 = vsel %vm283, %v2573, 0
      %v2576 = vsel %vm290, %v2570, 0
      %2577 = vrot.lane.b32.xlu0 %v2546, 1
      %v2578 = vpop.permute.xlu0 %2577
      %2579 = vrot.lane.b32.xlu0 %v2547, 1
      %v2580 = vpop.permute.xlu0 %2579
      %v2581 = vsel %vm297, %v2578, %v2580
      %v2584 = vsel %vm300, 0, %v2578
      %v2586 = vsel %vm239, %v2584, 0
      %v2587 = vsel %vm246, %v2581, 0
      %2588 = vrot.lane.b32.xlu0 %v2546, 127
      %v2589 = vpop.permute.xlu0 %2588
      %2590 = vrot.lane.b32.xlu0 %v2547, 127
      %v2591 = vpop.permute.xlu0 %2590
      %v2592 = vsel %vm310, %v2589, %v2591
      %v2595 = vsel %vm313, %v2591, 0
      %v2597 = vsel %vm283, %v2592, 0
      %v2598 = vsel %vm290, %v2595, 0
      %2599 = vrot.lane.b32.xlu0 %v2546, 113
      %v2600 = vpop.permute.xlu0 %2599
      %2601 = vrot.lane.b32.xlu0 %v2547, 113
      %v2602 = vpop.permute.xlu0 %2601
      %v2603 = vsel %vm323, %v2600, %v2602
      %v2606 = vsel %vm326, %v2602, 0
      %v2608 = vsel %vm239, %v2603, 0
      %v2609 = vsel %vm246, %v2606, 0
      %2610 = vrot.lane.b32.xlu0 %v2546, 112
      %v2611 = vpop.permute.xlu0 %2610
      %2612 = vrot.lane.b32.xlu0 %v2547, 112
      %v2613 = vpop.permute.xlu0 %2612
      %v2614 = vsel %vm336, %v2611, %v2613
      %v2616 = vsel %vm338, %v2613, 0
      %2617 = vrot.lane.b32.xlu0 %v2546, 111
      %v2618 = vpop.permute.xlu0 %2617
      %2619 = vrot.lane.b32.xlu0 %v2547, 111
      %v2620 = vpop.permute.xlu0 %2619
      %v2621 = vsel %vm345, %v2618, %v2620
      %v2624 = vsel %vm348, %v2620, 0
      %v2626 = vsel %vm283, %v2621, 0
      %v2627 = vsel %vm290, %v2624, 0
      %v2628 = vld [vmem:[#allocation2] sm:$0xff]
      %v2630 = vunpack.c.l.b16 %v2628
      %v2631 = vunpack.c.h.b16 %v2628
      %v2632 = vpack.c.b16 %v2630, %v2630
      %v2633 = vpack.c.b16 %v2631, %v2631
      %2634 = vrot.lane.b32.xlu0 %v2632, 17
      %v2635 = vpop.permute.xlu0 %2634
      %2636 = vrot.lane.b32.xlu0 %v2633, 17
      %v2637 = vpop.permute.xlu0 %2636
      %v2638 = vsel %vm217, %v2635, %v2637
      %v2641 = vsel %vm220, 0, %v2635
      %v2643 = vsel %vm239, %v2641, 0
      %v2644 = vsel %vm246, %v2638, 0
      %2645 = vrot.lane.b32.xlu0 %v2632, 16
      %v2646 = vpop.permute.xlu0 %2645
      %2647 = vrot.lane.b32.xlu0 %v2633, 16
      %v2648 = vpop.permute.xlu0 %2647
      %v2649 = vsel %vm253, %v2646, %v2648
      %v2651 = vsel %vm255, 0, %v2646
      %2652 = vrot.lane.b32.xlu0 %v2632, 15
      %v2653 = vpop.permute.xlu0 %2652
      %2654 = vrot.lane.b32.xlu0 %v2633, 15
      %v2655 = vpop.permute.xlu0 %2654
      %v2656 = vsel %vm262, %v2653, %v2655
      %v2659 = vsel %vm265, 0, %v2653
      %v2661 = vsel %vm283, %v2659, 0
      %v2662 = vsel %vm290, %v2656, 0
      %2663 = vrot.lane.b32.xlu0 %v2632, 1
      %v2664 = vpop.permute.xlu0 %2663
      %2665 = vrot.lane.b32.xlu0 %v2633, 1
      %v2666 = vpop.permute.xlu0 %2665
      %v2667 = vsel %vm297, %v2664, %v2666
      %v2670 = vsel %vm300, 0, %v2664
      %v2672 = vsel %vm239, %v2670, 0
      %v2673 = vsel %vm246, %v2667, 0
      %2674 = vrot.lane.b32.xlu0 %v2632, 127
      %v2675 = vpop.permute.xlu0 %2674
      %2676 = vrot.lane.b32.xlu0 %v2633, 127
      %v2677 = vpop.permute.xlu0 %2676
      %v2678 = vsel %vm310, %v2675, %v2677
      %v2681 = vsel %vm313, %v2677, 0
      %v2683 = vsel %vm283, %v2678, 0
      %v2684 = vsel %vm290, %v2681, 0
      %2685 = vrot.lane.b32.xlu0 %v2632, 113
      %v2686 = vpop.permute.xlu0 %2685
      %2687 = vrot.lane.b32.xlu0 %v2633, 113
      %v2688 = vpop.permute.xlu0 %2687
      %v2689 = vsel %vm323, %v2686, %v2688
      %v2692 = vsel %vm326, %v2688, 0
      %v2694 = vsel %vm239, %v2689, 0
      %v2695 = vsel %vm246, %v2692, 0
      %2696 = vrot.lane.b32.xlu0 %v2632, 112
      %v2697 = vpop.permute.xlu0 %2696
      %2698 = vrot.lane.b32.xlu0 %v2633, 112
      %v2699 = vpop.permute.xlu0 %2698
      %v2700 = vsel %vm336, %v2697, %v2699
      %v2702 = vsel %vm338, %v2699, 0
      %2703 = vrot.lane.b32.xlu0 %v2632, 111
      %v2704 = vpop.permute.xlu0 %2703
      %2705 = vrot.lane.b32.xlu0 %v2633, 111
      %v2706 = vpop.permute.xlu0 %2705
      %v2707 = vsel %vm345, %v2704, %v2706
      %v2710 = vsel %vm348, %v2706, 0
      %v2712 = vsel %vm283, %v2707, 0
      %v2713 = vsel %vm290, %v2710, 0
      %v2715 = vrot.slane %v2565, 4
      %v2716 = vrot.slane %v2563, 4
      %v2719 = vrot.slane %v2586, 4
      %v2720 = vrot.slane %v2587, 4
      %v2723 = vrot.slane %v2597, 4
      %v2724 = vrot.slane %v2598, 4
      %v2726 = vrot.slane %v2614, 4
      %v2727 = vrot.slane %v2616, 4
      %v2730 = vrot.slane %v2643, 4
      %v2731 = vrot.slane %v2644, 4
      %v2734 = vrot.slane %v2661, 4
      %v2735 = vrot.slane %v2662, 4
      %v2738 = vrot.slane %v2694, 4
      %v2739 = vrot.slane %v2695, 4
      %v2742 = vsel %vm368, %v2557, %v2715
      %v2746 = vsel %vm368, %v2558, %v2716
      %v2750 = vsel %vm368, %v2575, %v2719
      %v2754 = vsel %vm368, %v2576, %v2720
      %v2758 = vsel %vm368, %v2546, %v2723
      %v2762 = vsel %vm368, %v2547, %v2724
      %v2766 = vsel %vm368, %v2608, %v2726
      %v2770 = vsel %vm368, %v2609, %v2727
      %v2774 = vsel %vm368, %v2626, %v2730
      %v2778 = vsel %vm368, %v2627, %v2731
      %v2781 = vsel %vm368, %v2651, %v2734
      %v2785 = vsel %vm368, %v2649, %v2735
      %v2789 = vsel %vm368, %v2672, %v2632
      %v2793 = vsel %vm368, %v2673, %v2633
      %v2797 = vsel %vm368, %v2683, %v2738
      %v2801 = vsel %vm368, %v2684, %v2739
      %v2805 = vrot.slane %v2712, 4
      %v2806 = vrot.slane %v2713, 4
      %v2809 = vsel %vm368, %v2700, %v2805
      %v2812 = vsel %vm368, %v2702, %v2806
      %v2814 = vld [vmem:[%s1 + $0x5b8] sm:$0xff]
      %v2815 = vld [vmem:[%s2 + $0x80] sm:$0xff]
      %2817 = vset.pattern.permute.xlu0 0
      %2818 = vperm.xlu0 %2817, %v2815
      %v2819 = vpop.permute.xlu0 %2818
      %v2822 = vunpack.c.l.b16 %v2814
      %v2823 = vunpack.c.h.b16 %v2814
      %v2824 = vpack.c.b16 %v2822, %v2822
      %v2825 = vpack.c.b16 %v2823, %v2823
      %v2828 = vsel %vm255, %v2825, 0
      %2830 = vmatpush.bf16.msra.mxu0 %v2797
      %2831 = vmatpush.bf16.msra.mxu0 %v2789
      %2832 = vmatpush.bf16.msra.mxu0 %v2781
      %2833 = vmatpush.bf16.msra.mxu0 %v2774
      %2834 = vmatpush.bf16.msra.mxu0 %v2766
      %2835 = vmatpush.bf16.msra.mxu0 %v2758
      %2836 = vmatpush.bf16.msra.mxu0 %v2750
      %2837 = vmatpush.bf16.msra.mxu0 %v2742
      %2838 = vmatmul.bf16.gmra.mxu0 %v2824
      %v2839 = vpop.f32.mrf.mxu0
      %v2840 = vadd.f32 %v2819, %v2839
      %v2841 = vpop.f32.mrf.mxu0
      %2842 = vdwg.mxu0
      %2843 = vmatpush.bf16.msra.mxu0 0
      %2844 = vmatpush.bf16.msra.mxu0 0
      %2845 = vmatpush.bf16.msra.mxu0 0
      %2846 = vmatpush.bf16.msra.mxu0 0
      %2847 = vmatpush.bf16.msra.mxu0 0
      %2848 = vmatpush.bf16.msra.mxu0 0
      %2849 = vmatpush.bf16.msra.mxu0 0
      %2850 = vmatpush.bf16.msra.mxu0 %v2809
      %2851 = vmatmul.bf16.gmra.mxu0 %v2828
      %v2852 = vpop.f32.mrf.mxu0
      %v2853 = vadd.f32 %v2840, %v2852
      %v2854 = vpop.f32.mrf.mxu0
      %2855 = vdwg.mxu0
      %2856 = vmatpush.bf16.msra.mxu0 %v2801
      %2857 = vmatpush.bf16.msra.mxu0 %v2793
      %2858 = vmatpush.bf16.msra.mxu0 %v2785
      %2859 = vmatpush.bf16.msra.mxu0 %v2778
      %2860 = vmatpush.bf16.msra.mxu0 %v2770
      %2861 = vmatpush.bf16.msra.mxu0 %v2762
      %2862 = vmatpush.bf16.msra.mxu0 %v2754
      %2863 = vmatpush.bf16.msra.mxu0 %v2746
      %2864 = vmatmul.bf16.gmra.mxu0 %v2824
      %v2865 = vpop.f32.mrf.mxu0
      %v2866 = vadd.f32 %v2819, %v2865
      %v2867 = vpop.f32.mrf.mxu0
      %2868 = vdwg.mxu0
      %2869 = vmatpush.bf16.msra.mxu0 0
      %2870 = vmatpush.bf16.msra.mxu0 0
      %2871 = vmatpush.bf16.msra.mxu0 0
      %2872 = vmatpush.bf16.msra.mxu0 0
      %2873 = vmatpush.bf16.msra.mxu0 0
      %2874 = vmatpush.bf16.msra.mxu0 0
      %2875 = vmatpush.bf16.msra.mxu0 0
      %2876 = vmatpush.bf16.msra.mxu0 %v2812
      %2877 = vmatmul.bf16.gmra.mxu0 %v2828
      %v2878 = vpop.f32.mrf.mxu0
      %v2879 = vadd.f32 %v2866, %v2878
      %v2880 = vpop.f32.mrf.mxu0
      %2881 = vdwg.mxu0
      %v2882 = vmax.f32 %v2853, 0.0
      %v2883 = vmax.f32 %v2879, 0.0
      %v2884 = vpack.c.bf16 %v2882, %v2882
      %v2885 = vpack.c.bf16 %v2883, %v2883
      %v2886 = vld [vmem:[%s1 + $0x5c4] sm:$0xf]
      %v2887 = vld [vmem:[%s2 + $0x88] sm:$0xff]
      %2889 = vset.pattern.permute.xlu0 0
      %2890 = vperm.xlu0 %2889, %v2887
      %v2891 = vpop.permute.xlu0 %2890
      %v2894 = vsel %vm639, %v2886, 0
      %v2897 = vsel %vm368, %v2884, 0
      %v2900 = vsel %vm368, %v2885, 0
      %2902 = vmatpush.bf16.msra.mxu0 0
      %2903 = vmatpush.bf16.msra.mxu0 0
      %2904 = vmatpush.bf16.msra.mxu0 0
      %2905 = vmatpush.bf16.msra.mxu0 0
      %2906 = vmatpush.bf16.msra.mxu0 0
      %2907 = vmatpush.bf16.msra.mxu0 0
      %2908 = vmatpush.bf16.msra.mxu0 0
      %2909 = vmatpush.bf16.msra.mxu0 %v2897
      %2910 = vmatmul.bf16.gmra.mxu0 %v2894
      %v2911 = vpop.f32.mrf.mxu0
      %v2912 = vadd.f32 %v2891, %v2911
      %v2913 = vpop.f32.mrf.mxu0
      %2914 = vdwg.mxu0
      %2915 = vmatpush.bf16.msra.mxu0 0
      %2916 = vmatpush.bf16.msra.mxu0 0
      %2917 = vmatpush.bf16.msra.mxu0 0
      %2918 = vmatpush.bf16.msra.mxu0 0
      %2919 = vmatpush.bf16.msra.mxu0 0
      %2920 = vmatpush.bf16.msra.mxu0 0
      %2921 = vmatpush.bf16.msra.mxu0 0
      %2922 = vmatpush.bf16.msra.mxu0 %v2900
      %2923 = vmatmul.bf16.gmra.mxu0 %v2894
      %v2924 = vpop.f32.mrf.mxu0
      %v2925 = vadd.f32 %v2891, %v2924
      %v2926 = vpop.f32.mrf.mxu0
      %2927 = vdwg.mxu0
      %2928 = vst [vmem:[%s170] sm:$0xff] %v2912
      %2929 = vst [vmem:[%s170 + $0x8] sm:$0xff] %v2925
      %p2930 = scmp.lt.s32.totalorder %s14, 1
      %s2931 = scalar_select %p2930, %s14, 1
      %s2932 = smul.addr %s2931, 2
      %s2933 = smul.addr %s2932, 8
      %s2934 = scalar_lea.vmem %s3, %s2933
      // Predicated region
      $region33: #{unet_forward.1} parent=31 // pred_check
        %p2935 = pneg %p100
      $region34: #{unet_forward.1} parent=31 // pred_check_branch
        %2937 = sbr.rel (%p2935) target = $region36
      $region35: #{unet_forward.1} parent=31 // pred_region
        _
      $region36: #{unet_forward.1} parent=31 // pred_fallthru
        _
    $region32: #{unet_forward.1} parent=5 // pred_fallthru
      _
    %p2938 = scmp.le.s32.totalorder 2, %s9
    // Predicated region
    $region37: #{unet_forward.1} parent=5 // pred_check
      %p2939 = pneg %p2938
    $region38: #{unet_forward.1} parent=5 // pred_check_branch
      %2941 = sbr.rel (%p2939) target = $region40
    $region39: #{unet_forward.1} parent=5 // pred_region
      %s2942 = ssub.s32 %s9, 2
      // Predicated region
      $region41: #{unet_forward.1} parent=39 // pred_check
        %p2943 = pneg %p106
      $region42: #{unet_forward.1} parent=39 // pred_check_branch
        %2945 = sbr.rel (%p2943) target = $region44
      $region43: #{unet_forward.1} parent=39 // pred_region
        %p2946 = scmp.lt.s32.totalorder %s15, 1
        %s2947 = scalar_select %p2946, %s15, 1
        %s2948 = smul.addr %s2947, 2
        %s2949 = smul.addr %s2948, 8
        %s2950 = scalar_lea.vmem %s3, %s2949
      $region44: #{unet_forward.1} parent=39 // pred_fallthru
        _
    $region40: #{unet_forward.1} parent=5 // pred_fallthru
      _
  $region6: #{unet_forward.1} parent=0 // loop_footer
    %s13 = sadd.s32 1, %s9
  $region7: #{unet_forward.1} parent=0 // loop_footer_branch
    %8 = sbr.rel target = $region3
  $region8: #{unet_forward.1} parent=0 // loop_exit
    _

</llo_original>
